<compile_context>
chip_gen: v7x
topology: tpu7x:2x2x1
jax: 0.10.0
libtpu: 0.0.40
codegen_flags: <defaults>
</compile_context>

<pallas_src>
import jax
import jax.numpy as jnp
import numpy as np
from jax.experimental import pallas as pl
from jax.experimental.pallas import tpu as pltpu

# Hyperparameters from the PyTorch module
IN_CHANNELS = 3
OUT_CHANNELS = 16
KERNEL_SIZE = 3
STRIDE = 2
PADDING = 1
OUTPUT_PADDING = 1
POOL_S = 2


# ----------------------------- Pallas kernel -------------------------------

def _fused_kernel(p_ref, w_ref, b_ref, sub_ref, o_ref):
    """p_ref:   (8, K, TILE) im2col patches; 8 = 2x2x2 pool-window members
       w_ref:   (C, K)       transposed conv-transpose weight matrix
       b_ref:   (C, 1)       conv bias
       sub_ref: (C, 1)       subtract parameter
       o_ref:   (1, 1, TILE) lane-dense output row for this tile."""
    wt = w_ref[...]                                            # (C, K)

    # ConvTranspose3d (as GEMM) fused with MaxPool3d: running max over the
    # 8 pool-window members.  Bias is per-channel so it commutes with the max.
    pooled = jnp.dot(wt, p_ref[0], preferred_element_type=jnp.float32)
    for widx in range(1, p_ref.shape[0]):
        pooled = jnp.maximum(
            pooled,
            jnp.dot(wt, p_ref[widx], preferred_element_type=jnp.float32))
    pooled = pooled + b_ref[...]                               # (C, TILE)

    # Softmax over channels (sublane axis), EUP reciprocal instead of divide.
    m = jnp.max(pooled, axis=0, keepdims=True)                 # (1, TILE)
    e = jnp.exp(pooled - m)
    denom = jnp.sum(e, axis=0, keepdims=True)
    sm = e * pl.reciprocal(denom)

    # Subtract, swish (sigmoid(y) * y), max over channels.
    y = sm - sub_ref[...]
    sw = y * pl.reciprocal(1.0 + jnp.exp(-y))
    o_ref[0] = jnp.max(sw, axis=0, keepdims=True)              # (1, TILE)


# ------------------------------ JAX glue ------------------------------------

def _build_pooled_patches(x):
    """Zero-stuff / pad x so ConvTranspose3d == regular conv with the flipped
    kernel, then build im2col patches grouped as
        (pool-window member [8], kernel-offset*Cin [K], N*Dp*Hp*Wp)."""
    N, Cin, D, H, W = x.shape
    K, s, p, op = KERNEL_SIZE, STRIDE, PADDING, OUTPUT_PADDING
    Do = (D - 1) * s - 2 * p + K + op
    Ho = (H - 1) * s - 2 * p + K + op
    Wo = (W - 1) * s - 2 * p + K + op
    assert Do % POOL_S == 0 and Ho % POOL_S == 0 and Wo % POOL_S == 0, (
        "fused pooling layout requires even conv-transpose output dims")
    pad_l = K - 1 - p
    pad_r = K - 1 - p + op
    Dd = pad_l + s * (D - 1) + 1 + pad_r
    Hd = pad_l + s * (H - 1) + 1 + pad_r
    Wd = pad_l + s * (W - 1) + 1 + pad_r
    xd = jnp.zeros((N, Cin, Dd, Hd, Wd), x.dtype)
    xd = xd.at[:, :,
               pad_l:pad_l + s * (D - 1) + 1:s,
               pad_l:pad_l + s * (H - 1) + 1:s,
               pad_l:pad_l + s * (W - 1) + 1:s].set(x)
    # NOTE: at large N/D/H/W this XLA-side im2col (27x LHS expansion) should
    # move in-kernel as an offset-accumulation loop; at these sizes the
    # launch/DMA overhead dominates instead, so it stays in XLA.
    slices = []
    for kd in range(K):
        for kh in range(K):
            for kw in range(K):
                slices.append(xd[:, :, kd:kd + Do, kh:kh + Ho, kw:kw + Wo])
    pch = jnp.stack(slices, axis=0)                  # (K^3, N, Cin, Do, Ho, Wo)
    Dp, Hp, Wp = Do // POOL_S, Ho // POOL_S, Wo // POOL_S
    pch = pch.reshape(K ** 3, N, Cin, Dp, 2, Hp, 2, Wp, 2)
    # -> (dd, hh, ww, k_off, Cin, N, Dp, Hp, Wp)
    pch = pch.transpose(4, 6, 8, 0, 2, 1, 3, 5, 7)
    patches = pch.reshape(POOL_S ** 3, K ** 3 * Cin, N * Dp * Hp * Wp)
    return patches, (N, Dp, Hp, Wp)


def _pick_tile(m2):
    # Lane-dense tiles (multiple of 128); keep >=2 grid steps when possible
    # so both v7x TensorCores get work.  No silent remainder dropping.
    assert m2 % 128 == 0, "pooled-voxel count must be a multiple of 128"
    for cand in (2048, 1024, 512, 256, 128):
        if m2 % cand == 0 and m2 // cand >= 2:
            return cand
    return 128


def fused_convt_pool_softmax_swish_max(patches, w_t, bias, subtract):
    P8, Kdim, M2 = patches.shape
    C = w_t.shape[0]
    tile = _pick_tile(M2)
    num_tiles = M2 // tile
    assert num_tiles * tile == M2
    out = pl.pallas_call(
        _fused_kernel,
        out_shape=jax.ShapeDtypeStruct((num_tiles, 1, tile), jnp.float32),
        grid=(num_tiles,),
        in_specs=[
            pl.BlockSpec((P8, Kdim, tile), lambda i: (0, 0, i)),
            pl.BlockSpec((C, Kdim), lambda i: (0, 0)),
            pl.BlockSpec((C, 1), lambda i: (0, 0)),
            pl.BlockSpec((C, 1), lambda i: (0, 0)),
        ],
        out_specs=pl.BlockSpec((1, 1, tile), lambda i: (i, 0, 0)),
        compiler_params=pltpu.CompilerParams(
            dimension_semantics=("parallel",)),
    )(patches, w_t, bias.reshape(C, 1), subtract.reshape(C, 1))
    return out.reshape(M2)


@jax.jit
def model_forward(x, weight, bias, subtract):
    K = KERNEL_SIZE
    Cin, C = weight.shape[0], weight.shape[1]
    patches, (N, Dp, Hp, Wp) = _build_pooled_patches(x)
    # weight (Cin, Cout, K, K, K) -> flipped -> (Cout, kd, kh, kw, Cin) matrix
    wf = jnp.flip(weight, axis=(2, 3, 4))
    w_t = wf.transpose(1, 2, 3, 4, 0).reshape(C, K ** 3 * Cin)
    out = fused_convt_pool_softmax_swish_max(patches, w_t, bias, subtract)
    return out.reshape(N, Dp, Hp, Wp)


# --------------------------- pure-JAX reference -----------------------------

def reference_forward(x, weight, bias, subtract):
    K, s, p, op = KERNEL_SIZE, STRIDE, PADDING, OUTPUT_PADDING
    w_conv = jnp.flip(weight, (2, 3, 4)).transpose(1, 0, 2, 3, 4)  # (Cout,Cin,k,k,k)
    pad = (K - 1 - p, K - 1 - p + op)
    y = jax.lax.conv_general_dilated(
        x, w_conv, window_strides=(1, 1, 1),
        padding=[pad, pad, pad], lhs_dilation=(s, s, s),
        dimension_numbers=("NCDHW", "OIDHW", "NCDHW"),
        precision=jax.lax.Precision.HIGHEST)
    y = y + bias.reshape(1, -1, 1, 1, 1)
    N, C, Do, Ho, Wo = y.shape
    y = y.reshape(N, C, Do // 2, 2, Ho // 2, 2, Wo // 2, 2).max(axis=(3, 5, 7))
    y = jax.nn.softmax(y, axis=1)
    y = y - subtract.reshape(1, -1, 1, 1, 1)
    y = jax.nn.sigmoid(y) * y
    return jnp.max(y, axis=1)


# --------------------------------- main --------------------------------------

if __name__ == "__main__":
    key = jax.random.PRNGKey(0)
    k1, k2, k3, k4 = jax.random.split(key, 4)

    N, D, H, W = 2, 8, 8, 8
    x = jax.random.normal(k1, (N, IN_CHANNELS, D, H, W), jnp.float32)

    # Deterministic parameter init (shapes from nn.ConvTranspose3d / nn.Parameter)
    fan = IN_CHANNELS * KERNEL_SIZE ** 3
    bound = 1.0 / np.sqrt(fan)
    weight = jax.random.uniform(
        k2, (IN_CHANNELS, OUT_CHANNELS, KERNEL_SIZE, KERNEL_SIZE, KERNEL_SIZE),
        jnp.float32, minval=-bound, maxval=bound)
    bias = jax.random.uniform(k3, (OUT_CHANNELS,), jnp.float32,
                              minval=-bound, maxval=bound)
    subtract = jax.random.normal(k4, (OUT_CHANNELS,), jnp.float32)

    out = model_forward(x, weight, bias, subtract)
    out = jax.block_until_ready(out)

    ref = reference_forward(x, weight, bias, subtract)
    # Slightly looser than 1e-3: kernel GEMM uses default MXU precision
    # (bf16 passes) while the reference conv runs at Precision.HIGHEST.
    np.testing.assert_allclose(np.asarray(out), np.asarray(ref),
                               atol=2e-3, rtol=2e-3)
    print("KERNEL_OK")
</pallas_src>

<mosaic_0001>
module attributes {stable_mosaic.version = 11 : i64} {
  func.func @_fused_kernel(%arg0: i32, %arg1: memref<8x81x512xf32, #tpu.memory_space<vmem>>, %arg2: memref<16x81xf32, #tpu.memory_space<vmem>>, %arg3: memref<16x1xf32, #tpu.memory_space<vmem>>, %arg4: memref<16x1xf32, #tpu.memory_space<vmem>>, %arg5: memref<1x1x512xf32, #tpu.memory_space<vmem>>) attributes {dimension_semantics = [#tpu.dimension_semantics<parallel>], iteration_bounds = array<i64: 2>, scalar_prefetch = 0 : i64, scratch_operands = 0 : i64, tpu.core_type = #tpu.core_type<tc>, window_params = [{transform_indices = @transform_0, window_bounds = array<i64: 8, 81, 512>}, {pipeline_mode = #tpu.pipeline_mode<synchronous>, transform_indices = @transform_1, window_bounds = array<i64: 16, 81>}, {pipeline_mode = #tpu.pipeline_mode<synchronous>, transform_indices = @transform_2, window_bounds = array<i64: 16, 1>}, {pipeline_mode = #tpu.pipeline_mode<synchronous>, transform_indices = @transform_3, window_bounds = array<i64: 16, 1>}, {transform_indices = @transform_4, window_bounds = array<i64: 1, 1, 512>}]} {
    %c0 = arith.constant 0 : index
    %c0_0 = arith.constant 0 : index
    %0 = vector.load %arg2[%c0, %c0_0] : memref<16x81xf32, #tpu.memory_space<vmem>>, vector<16x81xf32>
    %c0_1 = arith.constant 0 : index
    %c0_2 = arith.constant 0 : index
    %c0_3 = arith.constant 0 : index
    %1 = vector.load %arg1[%c0_1, %c0_2, %c0_3] : memref<8x81x512xf32, #tpu.memory_space<vmem>>, vector<1x81x512xf32>
    %2 = vector.shape_cast %1 : vector<1x81x512xf32> to vector<81x512xf32>
    %cst = arith.constant dense<0.000000e+00> : vector<16x512xf32>
    %3 = tpu.matmul %0, %2, %cst {dimension_numbers = #tpu.dot_dimension_numbers<[1], [0], [0], [1], [0, 0, 1, 1], [], []>} : vector<16x81xf32>, vector<81x512xf32>, vector<16x512xf32> -> vector<16x512xf32>
    %c1 = arith.constant 1 : index
    %c0_4 = arith.constant 0 : index
    %c0_5 = arith.constant 0 : index
    %4 = vector.load %arg1[%c1, %c0_4, %c0_5] : memref<8x81x512xf32, #tpu.memory_space<vmem>>, vector<1x81x512xf32>
    %5 = vector.shape_cast %4 : vector<1x81x512xf32> to vector<81x512xf32>
    %cst_6 = arith.constant dense<0.000000e+00> : vector<16x512xf32>
    %6 = tpu.matmul %0, %5, %cst_6 {dimension_numbers = #tpu.dot_dimension_numbers<[1], [0], [0], [1], [0, 0, 1, 1], [], []>} : vector<16x81xf32>, vector<81x512xf32>, vector<16x512xf32> -> vector<16x512xf32>
    %7 = arith.maximumf %3, %6 : vector<16x512xf32>
    %c2 = arith.constant 2 : index
    %c0_7 = arith.constant 0 : index
    %c0_8 = arith.constant 0 : index
    %8 = vector.load %arg1[%c2, %c0_7, %c0_8] : memref<8x81x512xf32, #tpu.memory_space<vmem>>, vector<1x81x512xf32>
    %9 = vector.shape_cast %8 : vector<1x81x512xf32> to vector<81x512xf32>
    %cst_9 = arith.constant dense<0.000000e+00> : vector<16x512xf32>
    %10 = tpu.matmul %0, %9, %cst_9 {dimension_numbers = #tpu.dot_dimension_numbers<[1], [0], [0], [1], [0, 0, 1, 1], [], []>} : vector<16x81xf32>, vector<81x512xf32>, vector<16x512xf32> -> vector<16x512xf32>
    %11 = arith.maximumf %7, %10 : vector<16x512xf32>
    %c3 = arith.constant 3 : index
    %c0_10 = arith.constant 0 : index
    %c0_11 = arith.constant 0 : index
    %12 = vector.load %arg1[%c3, %c0_10, %c0_11] : memref<8x81x512xf32, #tpu.memory_space<vmem>>, vector<1x81x512xf32>
    %13 = vector.shape_cast %12 : vector<1x81x512xf32> to vector<81x512xf32>
    %cst_12 = arith.constant dense<0.000000e+00> : vector<16x512xf32>
    %14 = tpu.matmul %0, %13, %cst_12 {dimension_numbers = #tpu.dot_dimension_numbers<[1], [0], [0], [1], [0, 0, 1, 1], [], []>} : vector<16x81xf32>, vector<81x512xf32>, vector<16x512xf32> -> vector<16x512xf32>
    %15 = arith.maximumf %11, %14 : vector<16x512xf32>
    %c4 = arith.constant 4 : index
    %c0_13 = arith.constant 0 : index
    %c0_14 = arith.constant 0 : index
    %16 = vector.load %arg1[%c4, %c0_13, %c0_14] : memref<8x81x512xf32, #tpu.memory_space<vmem>>, vector<1x81x512xf32>
    %17 = vector.shape_cast %16 : vector<1x81x512xf32> to vector<81x512xf32>
    %cst_15 = arith.constant dense<0.000000e+00> : vector<16x512xf32>
    %18 = tpu.matmul %0, %17, %cst_15 {dimension_numbers = #tpu.dot_dimension_numbers<[1], [0], [0], [1], [0, 0, 1, 1], [], []>} : vector<16x81xf32>, vector<81x512xf32>, vector<16x512xf32> -> vector<16x512xf32>
    %19 = arith.maximumf %15, %18 : vector<16x512xf32>
    %c5 = arith.constant 5 : index
    %c0_16 = arith.constant 0 : index
    %c0_17 = arith.constant 0 : index
    %20 = vector.load %arg1[%c5, %c0_16, %c0_17] : memref<8x81x512xf32, #tpu.memory_space<vmem>>, vector<1x81x512xf32>
    %21 = vector.shape_cast %20 : vector<1x81x512xf32> to vector<81x512xf32>
    %cst_18 = arith.constant dense<0.000000e+00> : vector<16x512xf32>
    %22 = tpu.matmul %0, %21, %cst_18 {dimension_numbers = #tpu.dot_dimension_numbers<[1], [0], [0], [1], [0, 0, 1, 1], [], []>} : vector<16x81xf32>, vector<81x512xf32>, vector<16x512xf32> -> vector<16x512xf32>
    %23 = arith.maximumf %19, %22 : vector<16x512xf32>
    %c6 = arith.constant 6 : index
    %c0_19 = arith.constant 0 : index
    %c0_20 = arith.constant 0 : index
    %24 = vector.load %arg1[%c6, %c0_19, %c0_20] : memref<8x81x512xf32, #tpu.memory_space<vmem>>, vector<1x81x512xf32>
    %25 = vector.shape_cast %24 : vector<1x81x512xf32> to vector<81x512xf32>
    %cst_21 = arith.constant dense<0.000000e+00> : vector<16x512xf32>
    %26 = tpu.matmul %0, %25, %cst_21 {dimension_numbers = #tpu.dot_dimension_numbers<[1], [0], [0], [1], [0, 0, 1, 1], [], []>} : vector<16x81xf32>, vector<81x512xf32>, vector<16x512xf32> -> vector<16x512xf32>
    %27 = arith.maximumf %23, %26 : vector<16x512xf32>
    %c7 = arith.constant 7 : index
    %c0_22 = arith.constant 0 : index
    %c0_23 = arith.constant 0 : index
    %28 = vector.load %arg1[%c7, %c0_22, %c0_23] : memref<8x81x512xf32, #tpu.memory_space<vmem>>, vector<1x81x512xf32>
    %29 = vector.shape_cast %28 : vector<1x81x512xf32> to vector<81x512xf32>
    %cst_24 = arith.constant dense<0.000000e+00> : vector<16x512xf32>
    %30 = tpu.matmul %0, %29, %cst_24 {dimension_numbers = #tpu.dot_dimension_numbers<[1], [0], [0], [1], [0, 0, 1, 1], [], []>} : vector<16x81xf32>, vector<81x512xf32>, vector<16x512xf32> -> vector<16x512xf32>
    %31 = arith.maximumf %27, %30 : vector<16x512xf32>
    %c0_25 = arith.constant 0 : index
    %c0_26 = arith.constant 0 : index
    %32 = vector.load %arg3[%c0_25, %c0_26] : memref<16x1xf32, #tpu.memory_space<vmem>>, vector<16x1xf32>
    %33 = vector.broadcast %32 : vector<16x1xf32> to vector<16x512xf32>
    %34 = arith.addf %31, %33 : vector<16x512xf32>
    %cst_27 = arith.constant dense<0xFF800000> : vector<512xf32>
    %35 = vector.multi_reduction <maximumf>, %34, %cst_27 [0] : vector<16x512xf32> to vector<512xf32>
    %36 = vector.shape_cast %35 : vector<512xf32> to vector<1x512xf32>
    %37 = vector.broadcast %36 : vector<1x512xf32> to vector<16x512xf32>
    %38 = arith.subf %34, %37 : vector<16x512xf32>
    %39 = math.exp %38 : vector<16x512xf32>
    %cst_28 = arith.constant dense<0.000000e+00> : vector<512xf32>
    %40 = vector.multi_reduction <add>, %39, %cst_28 [0] : vector<16x512xf32> to vector<512xf32>
    %41 = vector.shape_cast %40 : vector<512xf32> to vector<1x512xf32>
    %42 = tpu.reciprocal %41 : vector<1x512xf32> -> vector<1x512xf32>
    %43 = vector.broadcast %42 : vector<1x512xf32> to vector<16x512xf32>
    %44 = arith.mulf %39, %43 : vector<16x512xf32>
    %c0_29 = arith.constant 0 : index
    %c0_30 = arith.constant 0 : index
    %45 = vector.load %arg4[%c0_29, %c0_30] : memref<16x1xf32, #tpu.memory_space<vmem>>, vector<16x1xf32>
    %46 = vector.broadcast %45 : vector<16x1xf32> to vector<16x512xf32>
    %47 = arith.subf %44, %46 : vector<16x512xf32>
    %cst_31 = arith.constant 0.000000e+00 : f32
    %48 = vector.broadcast %cst_31 : f32 to vector<16x512xf32>
    %49 = arith.subf %48, %47 : vector<16x512xf32>
    %50 = math.exp %49 : vector<16x512xf32>
    %cst_32 = arith.constant 1.000000e+00 : f32
    %51 = vector.broadcast %cst_32 : f32 to vector<16x512xf32>
    %52 = arith.addf %51, %50 : vector<16x512xf32>
    %53 = tpu.reciprocal %52 : vector<16x512xf32> -> vector<16x512xf32>
    %54 = arith.mulf %47, %53 : vector<16x512xf32>
    %cst_33 = arith.constant dense<0xFF800000> : vector<512xf32>
    %55 = vector.multi_reduction <maximumf>, %54, %cst_33 [0] : vector<16x512xf32> to vector<512xf32>
    %56 = vector.shape_cast %55 : vector<512xf32> to vector<1x512xf32>
    %c0_34 = arith.constant 0 : index
    %c0_35 = arith.constant 0 : index
    %c0_36 = arith.constant 0 : index
    %57 = vector.load %arg5[%c0_34, %c0_35, %c0_36] : memref<1x1x512xf32, #tpu.memory_space<vmem>>, vector<1x1x512xf32>
    %58 = vector.shape_cast %57 : vector<1x1x512xf32> to vector<1x512xf32>
    %59 = vector.shape_cast %56 : vector<1x512xf32> to vector<1x1x512xf32>
    tpu.vector_store %arg5[%c0_34, %c0_35, %c0_36], %59 {strides = array<i32>} : memref<1x1x512xf32, #tpu.memory_space<vmem>>, vector<1x1x512xf32>,
    return
  }
  func.func @transform_0(%arg0: i32) -> (i32, i32, i32) {
    %c0_i32 = arith.constant 0 : i32
    %c0_i32_0 = arith.constant 0 : i32
    %c0_i32_1 = arith.constant 0 : i32
    return %c0_i32, %c0_i32_0, %arg0 : i32, i32, i32
  }
  func.func @transform_1(%arg0: i32) -> (i32, i32) {
    %c0_i32 = arith.constant 0 : i32
    %c0_i32_0 = arith.constant 0 : i32
    %c0_i32_1 = arith.constant 0 : i32
    return %c0_i32, %c0_i32_0 : i32, i32
  }
  func.func @transform_2(%arg0: i32) -> (i32, i32) {
    %c0_i32 = arith.constant 0 : i32
    %c0_i32_0 = arith.constant 0 : i32
    %c0_i32_1 = arith.constant 0 : i32
    return %c0_i32, %c0_i32_0 : i32, i32
  }
  func.func @transform_3(%arg0: i32) -> (i32, i32) {
    %c0_i32 = arith.constant 0 : i32
    %c0_i32_0 = arith.constant 0 : i32
    %c0_i32_1 = arith.constant 0 : i32
    return %c0_i32, %c0_i32_0 : i32, i32
  }
  func.func @transform_4(%arg0: i32) -> (i32, i32, i32) {
    %c0_i32 = arith.constant 0 : i32
    %c0_i32_0 = arith.constant 0 : i32
    %c0_i32_1 = arith.constant 0 : i32
    return %arg0, %c0_i32, %c0_i32_0 : i32, i32, i32
  }
}

</mosaic_0001>

<llo_original>
// kernel: model_forward.1
$region0: #{model_forward.1}
  #allocation0 [shape = 'u32[]', space=smem, size = 0x4, offset = 0x4, fixed_abs, tag = 'smem constant byte address 0x4 - core index']
  #allocation1 [shape = 'u32[144,128]{1,0:T(1,128)}', space=vmem, size = 0x12000, scoped, tag = 'internal scratch']
  %s0 = inlined_call_operand.vmem [shape: f32[8,81,1024], index: 0, kind: input, shape index: {}]
  %s1 = inlined_call_operand.vmem [shape: f32[16,81], index: 1, kind: input, shape index: {}]
  %s2 = inlined_call_operand.vmem [shape: f32[16,1], index: 2, kind: input, shape index: {}]
  %s3 = inlined_call_operand.vmem [shape: f32[16,1], index: 3, kind: input, shape index: {}]
  %s4 = inlined_call_operand.vmem [shape: f32[2,1,512], index: 4, kind: output, shape index: {}]
  %s5 = sld [smem:[#allocation0]]
  $region72: #{model_forward.1} parent=0
    _
  %s7 = ssub.s32 1, %s5
  %s8 = scalar_select 0, %s7, %s5
  $region1: #{model_forward.1} parent=0
    #allocation2 [shape = 'u8[2883584]{0}', space=vmem, size = 0x2c0000, scoped, tag = 'input window, operand 0']
    loop: start=0, step=1, limit=4
    $region2: #{model_forward.1} parent=1 // loop_pre_header
      _
    $region3: #{model_forward.1} parent=1 // loop_header
      %s10 = sphi 0, %s14
      %p11 = scmp.ge.s32.totalorder %s10, 4
      %s20 = sphi 0, %s22
      %s23 = sphi 0, %s20
      %s24 = sphi 0, %s23
      %s40 = sphi 0, %s24
      %s44 = sphi 0, %s44
      %s46 = sphi 0, %s44
      %s47 = sphi 0, %s46
      %s61 = sphi 0, %s47
      %s65 = sphi 0, %s65
      %s67 = sphi 0, %s65
      %s68 = sphi 0, %s67
      %s82 = sphi 0, %s68
      %s86 = sphi 0, %s86
      %s88 = sphi 0, %s86
      %s89 = sphi 0, %s88
      %s103 = sphi 0, %s89
      %s109 = sphi 0, %s111
      %s112 = sphi 0, %s109
      %s113 = sphi 0, %s112
      %s129 = sphi 0, %s113
    $region4: #{model_forward.1} parent=1 // loop_header_branch
      %13 = sbr.rel (%p11) target = $region8
    $region5: #{model_forward.1} parent=1 // loop_body
      %s15 = ssub.s32 %s10, 1
      %s16 = ssub.s32 %s10, 2
      %s17 = sadd.s32 %s10, 1
      %s18 = ssub.s32 %s10, %s17
      %p19 = scmp.eq.s32.totalorder %s18, 0
      %s21 = sadd.s32 %s20, 1
      %s22 = scalar_select %p19, %s20, %s21
      %p25 = pneg %p19
      %p26 = scmp.eq.s32.totalorder %s10, 1
      %p27 = por %p25, %p26
      %p28 = scmp.ne.s32.totalorder %s20, %s23
      %p29 = scmp.eq.s32.totalorder %s10, 0
      %p30 = por %p28, %p29
      %p31 = scmp.ne.s32.totalorder %s20, %s23
      %p32 = scmp.eq.s32.totalorder %s15, 1
      %p33 = por %p31, %p32
      %p34 = scmp.ne.s32.totalorder %s23, %s24
      %p35 = scmp.eq.s32.totalorder %s15, 0
      %p36 = por %p34, %p35
      %p37 = scmp.ne.s32.totalorder %s23, %s24
      %p38 = scmp.eq.s32.totalorder %s16, 1
      %p39 = por %p37, %p38
      %p41 = scmp.ne.s32.totalorder %s24, %s40
      %p42 = scmp.eq.s32.totalorder %s16, 0
      %p43 = por %p41, %p42
      %s45 = sadd.s32 %s44, 1
      %p48 = scmp.eq.s32.totalorder %s10, 1
      %p49 = scmp.ne.s32.totalorder %s44, %s46
      %p50 = scmp.eq.s32.totalorder %s10, 0
      %p51 = por %p49, %p50
      %p52 = scmp.ne.s32.totalorder %s44, %s46
      %p53 = scmp.eq.s32.totalorder %s15, 1
      %p54 = por %p52, %p53
      %p55 = scmp.ne.s32.totalorder %s46, %s47
      %p56 = scmp.eq.s32.totalorder %s15, 0
      %p57 = por %p55, %p56
      %p58 = scmp.ne.s32.totalorder %s46, %s47
      %p59 = scmp.eq.s32.totalorder %s16, 1
      %p60 = por %p58, %p59
      %p62 = scmp.ne.s32.totalorder %s47, %s61
      %p63 = scmp.eq.s32.totalorder %s16, 0
      %p64 = por %p62, %p63
      %s66 = sadd.s32 %s65, 1
      %p69 = scmp.eq.s32.totalorder %s10, 1
      %p70 = scmp.ne.s32.totalorder %s65, %s67
      %p71 = scmp.eq.s32.totalorder %s10, 0
      %p72 = por %p70, %p71
      %p73 = scmp.ne.s32.totalorder %s65, %s67
      %p74 = scmp.eq.s32.totalorder %s15, 1
      %p75 = por %p73, %p74
      %p76 = scmp.ne.s32.totalorder %s67, %s68
      %p77 = scmp.eq.s32.totalorder %s15, 0
      %p78 = por %p76, %p77
      %p79 = scmp.ne.s32.totalorder %s67, %s68
      %p80 = scmp.eq.s32.totalorder %s16, 1
      %p81 = por %p79, %p80
      %p83 = scmp.ne.s32.totalorder %s68, %s82
      %p84 = scmp.eq.s32.totalorder %s16, 0
      %p85 = por %p83, %p84
      %s87 = sadd.s32 %s86, 1
      %p90 = scmp.eq.s32.totalorder %s10, 1
      %p91 = scmp.ne.s32.totalorder %s86, %s88
      %p92 = scmp.eq.s32.totalorder %s10, 0
      %p93 = por %p91, %p92
      %p94 = scmp.ne.s32.totalorder %s86, %s88
      %p95 = scmp.eq.s32.totalorder %s15, 1
      %p96 = por %p94, %p95
      %p97 = scmp.ne.s32.totalorder %s88, %s89
      %p98 = scmp.eq.s32.totalorder %s15, 0
      %p99 = por %p97, %p98
      %p100 = scmp.ne.s32.totalorder %s88, %s89
      %p101 = scmp.eq.s32.totalorder %s16, 1
      %p102 = por %p100, %p101
      %p104 = scmp.ne.s32.totalorder %s89, %s103
      %p105 = scmp.eq.s32.totalorder %s16, 0
      %p106 = por %p104, %p105
      %s107 = ssub.s32 %s10, %s17
      %p108 = scmp.eq.s32.totalorder %s107, 0
      %s110 = sadd.s32 %s109, 1
      %s111 = scalar_select %p108, %s109, %s110
      %p114 = pneg %p108
      %p115 = scmp.eq.s32.totalorder %s10, 1
      %p116 = por %p114, %p115
      %p117 = scmp.ne.s32.totalorder %s109, %s112
      %p118 = scmp.eq.s32.totalorder %s10, 0
      %p119 = por %p117, %p118
      %p120 = scmp.ne.s32.totalorder %s109, %s112
      %p121 = scmp.eq.s32.totalorder %s15, 1
      %p122 = por %p120, %p121
      %p123 = scmp.ne.s32.totalorder %s112, %s113
      %p124 = scmp.eq.s32.totalorder %s15, 0
      %p125 = por %p123, %p124
      %p126 = scmp.ne.s32.totalorder %s112, %s113
      %p127 = scmp.eq.s32.totalorder %s16, 1
      %p128 = por %p126, %p127
      %p130 = scmp.ne.s32.totalorder %s113, %s129
      %p131 = scmp.eq.s32.totalorder %s16, 0
      %p132 = por %p130, %p131
      %p133 = scmp.le.s32.totalorder 1, %s10
      %p134 = scmp.lt.s32.totalorder %s10, 3
      %p135 = pnand %p133, %p134
      %p136 = pneg %p135
      // Predicated region
      $region9: #{model_forward.1} parent=5 // pred_check
        _
      $region10: #{model_forward.1} parent=5 // pred_check_branch
        %138 = sbr.rel (%p135) target = $region12
      $region11: #{model_forward.1} parent=5 // pred_region
        %s139 = ssub.s32 %s10, 1
        // Predicated region
        $region13: #{model_forward.1} parent=11 // pred_check
          %p140 = pneg %p57
        $region14: #{model_forward.1} parent=11 // pred_check_branch
          %142 = sbr.rel (%p140) target = $region16
        $region15: #{model_forward.1} parent=11 // pred_region
          _
        $region16: #{model_forward.1} parent=11 // pred_fallthru
          _
        // Predicated region
        $region17: #{model_forward.1} parent=11 // pred_check
          %p143 = pneg %p78
        $region18: #{model_forward.1} parent=11 // pred_check_branch
          %145 = sbr.rel (%p143) target = $region20
        $region19: #{model_forward.1} parent=11 // pred_region
          _
        $region20: #{model_forward.1} parent=11 // pred_fallthru
          _
        // Predicated region
        $region21: #{model_forward.1} parent=11 // pred_check
          %p146 = pneg %p99
        $region22: #{model_forward.1} parent=11 // pred_check_branch
          %148 = sbr.rel (%p146) target = $region24
        $region23: #{model_forward.1} parent=11 // pred_region
          _
        $region24: #{model_forward.1} parent=11 // pred_fallthru
          _
      $region12: #{model_forward.1} parent=5 // pred_fallthru
        _
      %p149 = scmp.lt.s32.totalorder %s10, 2
      // Predicated region
      $region25: #{model_forward.1} parent=5 // pred_check
        %p150 = pneg %p149
      $region26: #{model_forward.1} parent=5 // pred_check_branch
        %152 = sbr.rel (%p150) target = $region28
      $region27: #{model_forward.1} parent=5 // pred_region
        // Predicated region
        $region29: #{model_forward.1} parent=27 // pred_check
          %p153 = pneg %p30
        $region30: #{model_forward.1} parent=27 // pred_check_branch
          %155 = sbr.rel (%p153) target = $region32
        $region31: #{model_forward.1} parent=27 // pred_region
          %s156 = sand.u32 %s20, 1
          %s157 = sand.u32 %s20, 1
          %s158 = smul.addr %s157, 2816
          %s159 = scalar_lea.vmem [#allocation2], %s158
          %s160 = smul.u32 4, %s10
          %s161 = smul.addr %s160, 8
          %s162 = scalar_lea.vmem %s0, %s161
          // Predicated region
          $region33: #{model_forward.1} parent=31 // pred_check
            _
          $region34: #{model_forward.1} parent=31 // pred_check_branch
            %164 = sbr.rel (0) target = $region36
          $region35: #{model_forward.1} parent=31 // pred_region
            // Predicated region
            $region37: #{model_forward.1} parent=35 // pred_check
              _
            $region38: #{model_forward.1} parent=35 // pred_check_branch
              %166 = sbr.rel (0) target = $region40
            $region39: #{model_forward.1} parent=35 // pred_region
              loop: start=0, step=1, limit=1
              $region41: #{model_forward.1} parent=39 // loop_pre_header
                _
              $region42: #{model_forward.1} parent=39 // loop_header
                %s168 = sphi 0, %s172
                %p169 = scmp.ge.s32.totalorder %s168, 1
                %s173 = sphi %s162, %s162
                %s174 = sphi %s159, %s159
              $region43: #{model_forward.1} parent=39 // loop_header_branch
                %171 = sbr.rel (%p169) target = $region47
              $region44: #{model_forward.1} parent=39 // loop_body
                %v175 = vld [vmem:[%s173] sm:$0xff]
                %176 = vst [vmem:[%s174] sm:$0xff] %v175
                %v177 = vld [vmem:[%s173 + $0x8] sm:$0xff]
                %178 = vst [vmem:[%s174 + $0x8] sm:$0xff] %v177
                %v179 = vld [vmem:[%s173 + $0x10] sm:$0xff]
                %180 = vst [vmem:[%s174 + $0x10] sm:$0xff] %v179
                %v181 = vld [vmem:[%s173 + $0x18] sm:$0xff]
                %182 = vst [vmem:[%s174 + $0x18] sm:$0xff] %v181
                %v183 = vld [vmem:[%s173 + $0x40] sm:$0xff]
                %184 = vst [vmem:[%s174 + $0x20] sm:$0xff] %v183
                %v185 = vld [vmem:[%s173 + $0x48] sm:$0xff]
                %186 = vst [vmem:[%s174 + $0x28] sm:$0xff] %v185
                %v187 = vld [vmem:[%s173 + $0x50] sm:$0xff]
                %188 = vst [vmem:[%s174 + $0x30] sm:$0xff] %v187
                %v189 = vld [vmem:[%s173 + $0x58] sm:$0xff]
                %190 = vst [vmem:[%s174 + $0x38] sm:$0xff] %v189
                %v191 = vld [vmem:[%s173 + $0x80] sm:$0xff]
                %192 = vst [vmem:[%s174 + $0x40] sm:$0xff] %v191
                %v193 = vld [vmem:[%s173 + $0x88] sm:$0xff]
                %194 = vst [vmem:[%s174 + $0x48] sm:$0xff] %v193
                %v195 = vld [vmem:[%s173 + $0x90] sm:$0xff]
                %196 = vst [vmem:[%s174 + $0x50] sm:$0xff] %v195
                %v197 = vld [vmem:[%s173 + $0x98] sm:$0xff]
                %198 = vst [vmem:[%s174 + $0x58] sm:$0xff] %v197
                %v199 = vld [vmem:[%s173 + $0xc0] sm:$0xff]
                %200 = vst [vmem:[%s174 + $0x60] sm:$0xff] %v199
                %v201 = vld [vmem:[%s173 + $0xc8] sm:$0xff]
                %202 = vst [vmem:[%s174 + $0x68] sm:$0xff] %v201
                %v203 = vld [vmem:[%s173 + $0xd0] sm:$0xff]
                %204 = vst [vmem:[%s174 + $0x70] sm:$0xff] %v203
                %v205 = vld [vmem:[%s173 + $0xd8] sm:$0xff]
                %206 = vst [vmem:[%s174 + $0x78] sm:$0xff] %v205
                %v207 = vld [vmem:[%s173 + $0x100] sm:$0xff]
                %208 = vst [vmem:[%s174 + $0x80] sm:$0xff] %v207
                %v209 = vld [vmem:[%s173 + $0x108] sm:$0xff]
                %210 = vst [vmem:[%s174 + $0x88] sm:$0xff] %v209
                %v211 = vld [vmem:[%s173 + $0x110] sm:$0xff]
                %212 = vst [vmem:[%s174 + $0x90] sm:$0xff] %v211
                %v213 = vld [vmem:[%s173 + $0x118] sm:$0xff]
                %214 = vst [vmem:[%s174 + $0x98] sm:$0xff] %v213
                %v215 = vld [vmem:[%s173 + $0x140] sm:$0xff]
                %216 = vst [vmem:[%s174 + $0xa0] sm:$0xff] %v215
                %v217 = vld [vmem:[%s173 + $0x148] sm:$0xff]
                %218 = vst [vmem:[%s174 + $0xa8] sm:$0xff] %v217
                %v219 = vld [vmem:[%s173 + $0x150] sm:$0xff]
                %220 = vst [vmem:[%s174 + $0xb0] sm:$0xff] %v219
                %v221 = vld [vmem:[%s173 + $0x158] sm:$0xff]
                %222 = vst [vmem:[%s174 + $0xb8] sm:$0xff] %v221
                %v223 = vld [vmem:[%s173 + $0x180] sm:$0xff]
                %224 = vst [vmem:[%s174 + $0xc0] sm:$0xff] %v223
                %v225 = vld [vmem:[%s173 + $0x188] sm:$0xff]
                %226 = vst [vmem:[%s174 + $0xc8] sm:$0xff] %v225
                %v227 = vld [vmem:[%s173 + $0x190] sm:$0xff]
                %228 = vst [vmem:[%s174 + $0xd0] sm:$0xff] %v227
                %v229 = vld [vmem:[%s173 + $0x198] sm:$0xff]
                %230 = vst [vmem:[%s174 + $0xd8] sm:$0xff] %v229
                %v231 = vld [vmem:[%s173 + $0x1c0] sm:$0xff]
                %232 = vst [vmem:[%s174 + $0xe0] sm:$0xff] %v231
                %v233 = vld [vmem:[%s173 + $0x1c8] sm:$0xff]
                %234 = vst [vmem:[%s174 + $0xe8] sm:$0xff] %v233
                %v235 = vld [vmem:[%s173 + $0x1d0] sm:$0xff]
                %236 = vst [vmem:[%s174 + $0xf0] sm:$0xff] %v235
                %v237 = vld [vmem:[%s173 + $0x1d8] sm:$0xff]
                %238 = vst [vmem:[%s174 + $0xf8] sm:$0xff] %v237
                %v239 = vld [vmem:[%s173 + $0x200] sm:$0xff]
                %240 = vst [vmem:[%s174 + $0x100] sm:$0xff] %v239
                %v241 = vld [vmem:[%s173 + $0x208] sm:$0xff]
                %242 = vst [vmem:[%s174 + $0x108] sm:$0xff] %v241
                %v243 = vld [vmem:[%s173 + $0x210] sm:$0xff]
                %244 = vst [vmem:[%s174 + $0x110] sm:$0xff] %v243
                %v245 = vld [vmem:[%s173 + $0x218] sm:$0xff]
                %246 = vst [vmem:[%s174 + $0x118] sm:$0xff] %v245
                %v247 = vld [vmem:[%s173 + $0x240] sm:$0xff]
                %248 = vst [vmem:[%s174 + $0x120] sm:$0xff] %v247
                %v249 = vld [vmem:[%s173 + $0x248] sm:$0xff]
                %250 = vst [vmem:[%s174 + $0x128] sm:$0xff] %v249
                %v251 = vld [vmem:[%s173 + $0x250] sm:$0xff]
                %252 = vst [vmem:[%s174 + $0x130] sm:$0xff] %v251
                %v253 = vld [vmem:[%s173 + $0x258] sm:$0xff]
                %254 = vst [vmem:[%s174 + $0x138] sm:$0xff] %v253
                %v255 = vld [vmem:[%s173 + $0x280] sm:$0xff]
                %256 = vst [vmem:[%s174 + $0x140] sm:$0xff] %v255
                %v257 = vld [vmem:[%s173 + $0x288] sm:$0xff]
                %258 = vst [vmem:[%s174 + $0x148] sm:$0xff] %v257
                %v259 = vld [vmem:[%s173 + $0x290] sm:$0xff]
                %260 = vst [vmem:[%s174 + $0x150] sm:$0xff] %v259
                %v261 = vld [vmem:[%s173 + $0x298] sm:$0xff]
                %262 = vst [vmem:[%s174 + $0x158] sm:$0xff] %v261
                %v263 = vld [vmem:[%s173 + $0x2c0] sm:$0xff]
                %264 = vst [vmem:[%s174 + $0x160] sm:$0xff] %v263
                %v265 = vld [vmem:[%s173 + $0x2c8] sm:$0xff]
                %266 = vst [vmem:[%s174 + $0x168] sm:$0xff] %v265
                %v267 = vld [vmem:[%s173 + $0x2d0] sm:$0xff]
                %268 = vst [vmem:[%s174 + $0x170] sm:$0xff] %v267
                %v269 = vld [vmem:[%s173 + $0x2d8] sm:$0xff]
                %270 = vst [vmem:[%s174 + $0x178] sm:$0xff] %v269
                %v271 = vld [vmem:[%s173 + $0x300] sm:$0xff]
                %272 = vst [vmem:[%s174 + $0x180] sm:$0xff] %v271
                %v273 = vld [vmem:[%s173 + $0x308] sm:$0xff]
                %274 = vst [vmem:[%s174 + $0x188] sm:$0xff] %v273
                %v275 = vld [vmem:[%s173 + $0x310] sm:$0xff]
                %276 = vst [vmem:[%s174 + $0x190] sm:$0xff] %v275
                %v277 = vld [vmem:[%s173 + $0x318] sm:$0xff]
                %278 = vst [vmem:[%s174 + $0x198] sm:$0xff] %v277
                %v279 = vld [vmem:[%s173 + $0x340] sm:$0xff]
                %280 = vst [vmem:[%s174 + $0x1a0] sm:$0xff] %v279
                %v281 = vld [vmem:[%s173 + $0x348] sm:$0xff]
                %282 = vst [vmem:[%s174 + $0x1a8] sm:$0xff] %v281
                %v283 = vld [vmem:[%s173 + $0x350] sm:$0xff]
                %284 = vst [vmem:[%s174 + $0x1b0] sm:$0xff] %v283
                %v285 = vld [vmem:[%s173 + $0x358] sm:$0xff]
                %286 = vst [vmem:[%s174 + $0x1b8] sm:$0xff] %v285
                %v287 = vld [vmem:[%s173 + $0x380] sm:$0xff]
                %288 = vst [vmem:[%s174 + $0x1c0] sm:$0xff] %v287
                %v289 = vld [vmem:[%s173 + $0x388] sm:$0xff]
                %290 = vst [vmem:[%s174 + $0x1c8] sm:$0xff] %v289
                %v291 = vld [vmem:[%s173 + $0x390] sm:$0xff]
                %292 = vst [vmem:[%s174 + $0x1d0] sm:$0xff] %v291
                %v293 = vld [vmem:[%s173 + $0x398] sm:$0xff]
                %294 = vst [vmem:[%s174 + $0x1d8] sm:$0xff] %v293
                %v295 = vld [vmem:[%s173 + $0x3c0] sm:$0xff]
                %296 = vst [vmem:[%s174 + $0x1e0] sm:$0xff] %v295
                %v297 = vld [vmem:[%s173 + $0x3c8] sm:$0xff]
                %298 = vst [vmem:[%s174 + $0x1e8] sm:$0xff] %v297
                %v299 = vld [vmem:[%s173 + $0x3d0] sm:$0xff]
                %300 = vst [vmem:[%s174 + $0x1f0] sm:$0xff] %v299
                %v301 = vld [vmem:[%s173 + $0x3d8] sm:$0xff]
                %302 = vst [vmem:[%s174 + $0x1f8] sm:$0xff] %v301
                %v303 = vld [vmem:[%s173 + $0x400] sm:$0xff]
                %304 = vst [vmem:[%s174 + $0x200] sm:$0xff] %v303
                %v305 = vld [vmem:[%s173 + $0x408] sm:$0xff]
                %306 = vst [vmem:[%s174 + $0x208] sm:$0xff] %v305
                %v307 = vld [vmem:[%s173 + $0x410] sm:$0xff]
                %308 = vst [vmem:[%s174 + $0x210] sm:$0xff] %v307
                %v309 = vld [vmem:[%s173 + $0x418] sm:$0xff]
                %310 = vst [vmem:[%s174 + $0x218] sm:$0xff] %v309
                %v311 = vld [vmem:[%s173 + $0x440] sm:$0xff]
                %312 = vst [vmem:[%s174 + $0x220] sm:$0xff] %v311
                %v313 = vld [vmem:[%s173 + $0x448] sm:$0xff]
                %314 = vst [vmem:[%s174 + $0x228] sm:$0xff] %v313
                %v315 = vld [vmem:[%s173 + $0x450] sm:$0xff]
                %316 = vst [vmem:[%s174 + $0x230] sm:$0xff] %v315
                %v317 = vld [vmem:[%s173 + $0x458] sm:$0xff]
                %318 = vst [vmem:[%s174 + $0x238] sm:$0xff] %v317
                %v319 = vld [vmem:[%s173 + $0x480] sm:$0xff]
                %320 = vst [vmem:[%s174 + $0x240] sm:$0xff] %v319
                %v321 = vld [vmem:[%s173 + $0x488] sm:$0xff]
                %322 = vst [vmem:[%s174 + $0x248] sm:$0xff] %v321
                %v323 = vld [vmem:[%s173 + $0x490] sm:$0xff]
                %324 = vst [vmem:[%s174 + $0x250] sm:$0xff] %v323
                %v325 = vld [vmem:[%s173 + $0x498] sm:$0xff]
                %326 = vst [vmem:[%s174 + $0x258] sm:$0xff] %v325
                %v327 = vld [vmem:[%s173 + $0x4c0] sm:$0xff]
                %328 = vst [vmem:[%s174 + $0x260] sm:$0xff] %v327
                %v329 = vld [vmem:[%s173 + $0x4c8] sm:$0xff]
                %330 = vst [vmem:[%s174 + $0x268] sm:$0xff] %v329
                %v331 = vld [vmem:[%s173 + $0x4d0] sm:$0xff]
                %332 = vst [vmem:[%s174 + $0x270] sm:$0xff] %v331
                %v333 = vld [vmem:[%s173 + $0x4d8] sm:$0xff]
                %334 = vst [vmem:[%s174 + $0x278] sm:$0xff] %v333
                %v335 = vld [vmem:[%s173 + $0x500] sm:$0xff]
                %336 = vst [vmem:[%s174 + $0x280] sm:$0xff] %v335
                %v337 = vld [vmem:[%s173 + $0x508] sm:$0xff]
                %338 = vst [vmem:[%s174 + $0x288] sm:$0xff] %v337
                %v339 = vld [vmem:[%s173 + $0x510] sm:$0xff]
                %340 = vst [vmem:[%s174 + $0x290] sm:$0xff] %v339
                %v341 = vld [vmem:[%s173 + $0x518] sm:$0xff]
                %342 = vst [vmem:[%s174 + $0x298] sm:$0xff] %v341
                %v343 = vld [vmem:[%s173 + $0x540] sm:$0xff]
                %344 = vst [vmem:[%s174 + $0x2a0] sm:$0xff] %v343
                %v345 = vld [vmem:[%s173 + $0x548] sm:$0xff]
                %346 = vst [vmem:[%s174 + $0x2a8] sm:$0xff] %v345
                %v347 = vld [vmem:[%s173 + $0x550] sm:$0xff]
                %348 = vst [vmem:[%s174 + $0x2b0] sm:$0xff] %v347
                %v349 = vld [vmem:[%s173 + $0x558] sm:$0xff]
                %350 = vst [vmem:[%s174 + $0x2b8] sm:$0xff] %v349
                %v351 = vld [vmem:[%s173 + $0x580] sm:$0xff]
                %352 = vst [vmem:[%s174 + $0x2c0] sm:$0xff] %v351
                %v353 = vld [vmem:[%s173 + $0x588] sm:$0xff]
                %354 = vst [vmem:[%s174 + $0x2c8] sm:$0xff] %v353
                %v355 = vld [vmem:[%s173 + $0x590] sm:$0xff]
                %356 = vst [vmem:[%s174 + $0x2d0] sm:$0xff] %v355
                %v357 = vld [vmem:[%s173 + $0x598] sm:$0xff]
                %358 = vst [vmem:[%s174 + $0x2d8] sm:$0xff] %v357
                %v359 = vld [vmem:[%s173 + $0x5c0] sm:$0xff]
                %360 = vst [vmem:[%s174 + $0x2e0] sm:$0xff] %v359
                %v361 = vld [vmem:[%s173 + $0x5c8] sm:$0xff]
                %362 = vst [vmem:[%s174 + $0x2e8] sm:$0xff] %v361
                %v363 = vld [vmem:[%s173 + $0x5d0] sm:$0xff]
                %364 = vst [vmem:[%s174 + $0x2f0] sm:$0xff] %v363
                %v365 = vld [vmem:[%s173 + $0x5d8] sm:$0xff]
                %366 = vst [vmem:[%s174 + $0x2f8] sm:$0xff] %v365
                %v367 = vld [vmem:[%s173 + $0x600] sm:$0xff]
                %368 = vst [vmem:[%s174 + $0x300] sm:$0xff] %v367
                %v369 = vld [vmem:[%s173 + $0x608] sm:$0xff]
                %370 = vst [vmem:[%s174 + $0x308] sm:$0xff] %v369
                %v371 = vld [vmem:[%s173 + $0x610] sm:$0xff]
                %372 = vst [vmem:[%s174 + $0x310] sm:$0xff] %v371
                %v373 = vld [vmem:[%s173 + $0x618] sm:$0xff]
                %374 = vst [vmem:[%s174 + $0x318] sm:$0xff] %v373
                %v375 = vld [vmem:[%s173 + $0x640] sm:$0xff]
                %376 = vst [vmem:[%s174 + $0x320] sm:$0xff] %v375
                %v377 = vld [vmem:[%s173 + $0x648] sm:$0xff]
                %378 = vst [vmem:[%s174 + $0x328] sm:$0xff] %v377
                %v379 = vld [vmem:[%s173 + $0x650] sm:$0xff]
                %380 = vst [vmem:[%s174 + $0x330] sm:$0xff] %v379
                %v381 = vld [vmem:[%s173 + $0x658] sm:$0xff]
                %382 = vst [vmem:[%s174 + $0x338] sm:$0xff] %v381
                %v383 = vld [vmem:[%s173 + $0x680] sm:$0xff]
                %384 = vst [vmem:[%s174 + $0x340] sm:$0xff] %v383
                %v385 = vld [vmem:[%s173 + $0x688] sm:$0xff]
                %386 = vst [vmem:[%s174 + $0x348] sm:$0xff] %v385
                %v387 = vld [vmem:[%s173 + $0x690] sm:$0xff]
                %388 = vst [vmem:[%s174 + $0x350] sm:$0xff] %v387
                %v389 = vld [vmem:[%s173 + $0x698] sm:$0xff]
                %390 = vst [vmem:[%s174 + $0x358] sm:$0xff] %v389
                %v391 = vld [vmem:[%s173 + $0x6c0] sm:$0xff]
                %392 = vst [vmem:[%s174 + $0x360] sm:$0xff] %v391
                %v393 = vld [vmem:[%s173 + $0x6c8] sm:$0xff]
                %394 = vst [vmem:[%s174 + $0x368] sm:$0xff] %v393
                %v395 = vld [vmem:[%s173 + $0x6d0] sm:$0xff]
                %396 = vst [vmem:[%s174 + $0x370] sm:$0xff] %v395
                %v397 = vld [vmem:[%s173 + $0x6d8] sm:$0xff]
                %398 = vst [vmem:[%s174 + $0x378] sm:$0xff] %v397
                %v399 = vld [vmem:[%s173 + $0x700] sm:$0xff]
                %400 = vst [vmem:[%s174 + $0x380] sm:$0xff] %v399
                %v401 = vld [vmem:[%s173 + $0x708] sm:$0xff]
                %402 = vst [vmem:[%s174 + $0x388] sm:$0xff] %v401
                %v403 = vld [vmem:[%s173 + $0x710] sm:$0xff]
                %404 = vst [vmem:[%s174 + $0x390] sm:$0xff] %v403
                %v405 = vld [vmem:[%s173 + $0x718] sm:$0xff]
                %406 = vst [vmem:[%s174 + $0x398] sm:$0xff] %v405
                %v407 = vld [vmem:[%s173 + $0x740] sm:$0xff]
                %408 = vst [vmem:[%s174 + $0x3a0] sm:$0xff] %v407
                %v409 = vld [vmem:[%s173 + $0x748] sm:$0xff]
                %410 = vst [vmem:[%s174 + $0x3a8] sm:$0xff] %v409
                %v411 = vld [vmem:[%s173 + $0x750] sm:$0xff]
                %412 = vst [vmem:[%s174 + $0x3b0] sm:$0xff] %v411
                %v413 = vld [vmem:[%s173 + $0x758] sm:$0xff]
                %414 = vst [vmem:[%s174 + $0x3b8] sm:$0xff] %v413
                %v415 = vld [vmem:[%s173 + $0x780] sm:$0xff]
                %416 = vst [vmem:[%s174 + $0x3c0] sm:$0xff] %v415
                %v417 = vld [vmem:[%s173 + $0x788] sm:$0xff]
                %418 = vst [vmem:[%s174 + $0x3c8] sm:$0xff] %v417
                %v419 = vld [vmem:[%s173 + $0x790] sm:$0xff]
                %420 = vst [vmem:[%s174 + $0x3d0] sm:$0xff] %v419
                %v421 = vld [vmem:[%s173 + $0x798] sm:$0xff]
                %422 = vst [vmem:[%s174 + $0x3d8] sm:$0xff] %v421
                %v423 = vld [vmem:[%s173 + $0x7c0] sm:$0xff]
                %424 = vst [vmem:[%s174 + $0x3e0] sm:$0xff] %v423
                %v425 = vld [vmem:[%s173 + $0x7c8] sm:$0xff]
                %426 = vst [vmem:[%s174 + $0x3e8] sm:$0xff] %v425
                %v427 = vld [vmem:[%s173 + $0x7d0] sm:$0xff]
                %428 = vst [vmem:[%s174 + $0x3f0] sm:$0xff] %v427
                %v429 = vld [vmem:[%s173 + $0x7d8] sm:$0xff]
                %430 = vst [vmem:[%s174 + $0x3f8] sm:$0xff] %v429
                %v431 = vld [vmem:[%s173 + $0x800] sm:$0xff]
                %432 = vst [vmem:[%s174 + $0x400] sm:$0xff] %v431
                %v433 = vld [vmem:[%s173 + $0x808] sm:$0xff]
                %434 = vst [vmem:[%s174 + $0x408] sm:$0xff] %v433
                %v435 = vld [vmem:[%s173 + $0x810] sm:$0xff]
                %436 = vst [vmem:[%s174 + $0x410] sm:$0xff] %v435
                %v437 = vld [vmem:[%s173 + $0x818] sm:$0xff]
                %438 = vst [vmem:[%s174 + $0x418] sm:$0xff] %v437
                %v439 = vld [vmem:[%s173 + $0x840] sm:$0xff]
                %440 = vst [vmem:[%s174 + $0x420] sm:$0xff] %v439
                %v441 = vld [vmem:[%s173 + $0x848] sm:$0xff]
                %442 = vst [vmem:[%s174 + $0x428] sm:$0xff] %v441
                %v443 = vld [vmem:[%s173 + $0x850] sm:$0xff]
                %444 = vst [vmem:[%s174 + $0x430] sm:$0xff] %v443
                %v445 = vld [vmem:[%s173 + $0x858] sm:$0xff]
                %446 = vst [vmem:[%s174 + $0x438] sm:$0xff] %v445
                %v447 = vld [vmem:[%s173 + $0x880] sm:$0xff]
                %448 = vst [vmem:[%s174 + $0x440] sm:$0xff] %v447
                %v449 = vld [vmem:[%s173 + $0x888] sm:$0xff]
                %450 = vst [vmem:[%s174 + $0x448] sm:$0xff] %v449
                %v451 = vld [vmem:[%s173 + $0x890] sm:$0xff]
                %452 = vst [vmem:[%s174 + $0x450] sm:$0xff] %v451
                %v453 = vld [vmem:[%s173 + $0x898] sm:$0xff]
                %454 = vst [vmem:[%s174 + $0x458] sm:$0xff] %v453
                %v455 = vld [vmem:[%s173 + $0x8c0] sm:$0xff]
                %456 = vst [vmem:[%s174 + $0x460] sm:$0xff] %v455
                %v457 = vld [vmem:[%s173 + $0x8c8] sm:$0xff]
                %458 = vst [vmem:[%s174 + $0x468] sm:$0xff] %v457
                %v459 = vld [vmem:[%s173 + $0x8d0] sm:$0xff]
                %460 = vst [vmem:[%s174 + $0x470] sm:$0xff] %v459
                %v461 = vld [vmem:[%s173 + $0x8d8] sm:$0xff]
                %462 = vst [vmem:[%s174 + $0x478] sm:$0xff] %v461
                %v463 = vld [vmem:[%s173 + $0x900] sm:$0xff]
                %464 = vst [vmem:[%s174 + $0x480] sm:$0xff] %v463
                %v465 = vld [vmem:[%s173 + $0x908] sm:$0xff]
                %466 = vst [vmem:[%s174 + $0x488] sm:$0xff] %v465
                %v467 = vld [vmem:[%s173 + $0x910] sm:$0xff]
                %468 = vst [vmem:[%s174 + $0x490] sm:$0xff] %v467
                %v469 = vld [vmem:[%s173 + $0x918] sm:$0xff]
                %470 = vst [vmem:[%s174 + $0x498] sm:$0xff] %v469
                %v471 = vld [vmem:[%s173 + $0x940] sm:$0xff]
                %472 = vst [vmem:[%s174 + $0x4a0] sm:$0xff] %v471
                %v473 = vld [vmem:[%s173 + $0x948] sm:$0xff]
                %474 = vst [vmem:[%s174 + $0x4a8] sm:$0xff] %v473
                %v475 = vld [vmem:[%s173 + $0x950] sm:$0xff]
                %476 = vst [vmem:[%s174 + $0x4b0] sm:$0xff] %v475
                %v477 = vld [vmem:[%s173 + $0x958] sm:$0xff]
                %478 = vst [vmem:[%s174 + $0x4b8] sm:$0xff] %v477
                %v479 = vld [vmem:[%s173 + $0x980] sm:$0xff]
                %480 = vst [vmem:[%s174 + $0x4c0] sm:$0xff] %v479
                %v481 = vld [vmem:[%s173 + $0x988] sm:$0xff]
                %482 = vst [vmem:[%s174 + $0x4c8] sm:$0xff] %v481
                %v483 = vld [vmem:[%s173 + $0x990] sm:$0xff]
                %484 = vst [vmem:[%s174 + $0x4d0] sm:$0xff] %v483
                %v485 = vld [vmem:[%s173 + $0x998] sm:$0xff]
                %486 = vst [vmem:[%s174 + $0x4d8] sm:$0xff] %v485
                %v487 = vld [vmem:[%s173 + $0x9c0] sm:$0xff]
                %488 = vst [vmem:[%s174 + $0x4e0] sm:$0xff] %v487
                %v489 = vld [vmem:[%s173 + $0x9c8] sm:$0xff]
                %490 = vst [vmem:[%s174 + $0x4e8] sm:$0xff] %v489
                %v491 = vld [vmem:[%s173 + $0x9d0] sm:$0xff]
                %492 = vst [vmem:[%s174 + $0x4f0] sm:$0xff] %v491
                %v493 = vld [vmem:[%s173 + $0x9d8] sm:$0xff]
                %494 = vst [vmem:[%s174 + $0x4f8] sm:$0xff] %v493
                %v495 = vld [vmem:[%s173 + $0xa00] sm:$0xff]
                %496 = vst [vmem:[%s174 + $0x500] sm:$0xff] %v495
                %v497 = vld [vmem:[%s173 + $0xa08] sm:$0xff]
                %498 = vst [vmem:[%s174 + $0x508] sm:$0xff] %v497
                %v499 = vld [vmem:[%s173 + $0xa10] sm:$0xff]
                %500 = vst [vmem:[%s174 + $0x510] sm:$0xff] %v499
                %v501 = vld [vmem:[%s173 + $0xa18] sm:$0xff]
                %502 = vst [vmem:[%s174 + $0x518] sm:$0xff] %v501
                %v503 = vld [vmem:[%s173 + $0xa40] sm:$0xff]
                %504 = vst [vmem:[%s174 + $0x520] sm:$0xff] %v503
                %v505 = vld [vmem:[%s173 + $0xa48] sm:$0xff]
                %506 = vst [vmem:[%s174 + $0x528] sm:$0xff] %v505
                %v507 = vld [vmem:[%s173 + $0xa50] sm:$0xff]
                %508 = vst [vmem:[%s174 + $0x530] sm:$0xff] %v507
                %v509 = vld [vmem:[%s173 + $0xa58] sm:$0xff]
                %510 = vst [vmem:[%s174 + $0x538] sm:$0xff] %v509
                %v511 = vld [vmem:[%s173 + $0xa80] sm:$0xff]
                %512 = vst [vmem:[%s174 + $0x540] sm:$0xff] %v511
                %v513 = vld [vmem:[%s173 + $0xa88] sm:$0xff]
                %514 = vst [vmem:[%s174 + $0x548] sm:$0xff] %v513
                %v515 = vld [vmem:[%s173 + $0xa90] sm:$0xff]
                %516 = vst [vmem:[%s174 + $0x550] sm:$0xff] %v515
                %v517 = vld [vmem:[%s173 + $0xa98] sm:$0xff]
                %518 = vst [vmem:[%s174 + $0x558] sm:$0xff] %v517
                %v519 = vld [vmem:[%s173 + $0xac0] sm:$0xff]
                %520 = vst [vmem:[%s174 + $0x560] sm:$0xff] %v519
                %v521 = vld [vmem:[%s173 + $0xac8] sm:$0xff]
                %522 = vst [vmem:[%s174 + $0x568] sm:$0xff] %v521
                %v523 = vld [vmem:[%s173 + $0xad0] sm:$0xff]
                %524 = vst [vmem:[%s174 + $0x570] sm:$0xff] %v523
                %v525 = vld [vmem:[%s173 + $0xad8] sm:$0xff]
                %526 = vst [vmem:[%s174 + $0x578] sm:$0xff] %v525
                %v527 = vld [vmem:[%s173 + $0xb00] sm:$0xff]
                %528 = vst [vmem:[%s174 + $0x580] sm:$0xff] %v527
                %v529 = vld [vmem:[%s173 + $0xb08] sm:$0xff]
                %530 = vst [vmem:[%s174 + $0x588] sm:$0xff] %v529
                %v531 = vld [vmem:[%s173 + $0xb10] sm:$0xff]
                %532 = vst [vmem:[%s174 + $0x590] sm:$0xff] %v531
                %v533 = vld [vmem:[%s173 + $0xb18] sm:$0xff]
                %534 = vst [vmem:[%s174 + $0x598] sm:$0xff] %v533
                %v535 = vld [vmem:[%s173 + $0xb40] sm:$0xff]
                %536 = vst [vmem:[%s174 + $0x5a0] sm:$0xff] %v535
                %v537 = vld [vmem:[%s173 + $0xb48] sm:$0xff]
                %538 = vst [vmem:[%s174 + $0x5a8] sm:$0xff] %v537
                %v539 = vld [vmem:[%s173 + $0xb50] sm:$0xff]
                %540 = vst [vmem:[%s174 + $0x5b0] sm:$0xff] %v539
                %v541 = vld [vmem:[%s173 + $0xb58] sm:$0xff]
                %542 = vst [vmem:[%s174 + $0x5b8] sm:$0xff] %v541
                %v543 = vld [vmem:[%s173 + $0xb80] sm:$0xff]
                %544 = vst [vmem:[%s174 + $0x5c0] sm:$0xff] %v543
                %v545 = vld [vmem:[%s173 + $0xb88] sm:$0xff]
                %546 = vst [vmem:[%s174 + $0x5c8] sm:$0xff] %v545
                %v547 = vld [vmem:[%s173 + $0xb90] sm:$0xff]
                %548 = vst [vmem:[%s174 + $0x5d0] sm:$0xff] %v547
                %v549 = vld [vmem:[%s173 + $0xb98] sm:$0xff]
                %550 = vst [vmem:[%s174 + $0x5d8] sm:$0xff] %v549
                %v551 = vld [vmem:[%s173 + $0xbc0] sm:$0xff]
                %552 = vst [vmem:[%s174 + $0x5e0] sm:$0xff] %v551
                %v553 = vld [vmem:[%s173 + $0xbc8] sm:$0xff]
                %554 = vst [vmem:[%s174 + $0x5e8] sm:$0xff] %v553
                %v555 = vld [vmem:[%s173 + $0xbd0] sm:$0xff]
                %556 = vst [vmem:[%s174 + $0x5f0] sm:$0xff] %v555
                %v557 = vld [vmem:[%s173 + $0xbd8] sm:$0xff]
                %558 = vst [vmem:[%s174 + $0x5f8] sm:$0xff] %v557
                %v559 = vld [vmem:[%s173 + $0xc00] sm:$0xff]
                %560 = vst [vmem:[%s174 + $0x600] sm:$0xff] %v559
                %v561 = vld [vmem:[%s173 + $0xc08] sm:$0xff]
                %562 = vst [vmem:[%s174 + $0x608] sm:$0xff] %v561
                %v563 = vld [vmem:[%s173 + $0xc10] sm:$0xff]
                %564 = vst [vmem:[%s174 + $0x610] sm:$0xff] %v563
                %v565 = vld [vmem:[%s173 + $0xc18] sm:$0xff]
                %566 = vst [vmem:[%s174 + $0x618] sm:$0xff] %v565
                %v567 = vld [vmem:[%s173 + $0xc40] sm:$0xff]
                %568 = vst [vmem:[%s174 + $0x620] sm:$0xff] %v567
                %v569 = vld [vmem:[%s173 + $0xc48] sm:$0xff]
                %570 = vst [vmem:[%s174 + $0x628] sm:$0xff] %v569
                %v571 = vld [vmem:[%s173 + $0xc50] sm:$0xff]
                %572 = vst [vmem:[%s174 + $0x630] sm:$0xff] %v571
                %v573 = vld [vmem:[%s173 + $0xc58] sm:$0xff]
                %574 = vst [vmem:[%s174 + $0x638] sm:$0xff] %v573
                %v575 = vld [vmem:[%s173 + $0xc80] sm:$0xff]
                %576 = vst [vmem:[%s174 + $0x640] sm:$0xff] %v575
                %v577 = vld [vmem:[%s173 + $0xc88] sm:$0xff]
                %578 = vst [vmem:[%s174 + $0x648] sm:$0xff] %v577
                %v579 = vld [vmem:[%s173 + $0xc90] sm:$0xff]
                %580 = vst [vmem:[%s174 + $0x650] sm:$0xff] %v579
                %v581 = vld [vmem:[%s173 + $0xc98] sm:$0xff]
                %582 = vst [vmem:[%s174 + $0x658] sm:$0xff] %v581
                %v583 = vld [vmem:[%s173 + $0xcc0] sm:$0xff]
                %584 = vst [vmem:[%s174 + $0x660] sm:$0xff] %v583
                %v585 = vld [vmem:[%s173 + $0xcc8] sm:$0xff]
                %586 = vst [vmem:[%s174 + $0x668] sm:$0xff] %v585
                %v587 = vld [vmem:[%s173 + $0xcd0] sm:$0xff]
                %588 = vst [vmem:[%s174 + $0x670] sm:$0xff] %v587
                %v589 = vld [vmem:[%s173 + $0xcd8] sm:$0xff]
                %590 = vst [vmem:[%s174 + $0x678] sm:$0xff] %v589
                %v591 = vld [vmem:[%s173 + $0xd00] sm:$0xff]
                %592 = vst [vmem:[%s174 + $0x680] sm:$0xff] %v591
                %v593 = vld [vmem:[%s173 + $0xd08] sm:$0xff]
                %594 = vst [vmem:[%s174 + $0x688] sm:$0xff] %v593
                %v595 = vld [vmem:[%s173 + $0xd10] sm:$0xff]
                %596 = vst [vmem:[%s174 + $0x690] sm:$0xff] %v595
                %v597 = vld [vmem:[%s173 + $0xd18] sm:$0xff]
                %598 = vst [vmem:[%s174 + $0x698] sm:$0xff] %v597
                %v599 = vld [vmem:[%s173 + $0xd40] sm:$0xff]
                %600 = vst [vmem:[%s174 + $0x6a0] sm:$0xff] %v599
                %v601 = vld [vmem:[%s173 + $0xd48] sm:$0xff]
                %602 = vst [vmem:[%s174 + $0x6a8] sm:$0xff] %v601
                %v603 = vld [vmem:[%s173 + $0xd50] sm:$0xff]
                %604 = vst [vmem:[%s174 + $0x6b0] sm:$0xff] %v603
                %v605 = vld [vmem:[%s173 + $0xd58] sm:$0xff]
                %606 = vst [vmem:[%s174 + $0x6b8] sm:$0xff] %v605
                %v607 = vld [vmem:[%s173 + $0xd80] sm:$0xff]
                %608 = vst [vmem:[%s174 + $0x6c0] sm:$0xff] %v607
                %v609 = vld [vmem:[%s173 + $0xd88] sm:$0xff]
                %610 = vst [vmem:[%s174 + $0x6c8] sm:$0xff] %v609
                %v611 = vld [vmem:[%s173 + $0xd90] sm:$0xff]
                %612 = vst [vmem:[%s174 + $0x6d0] sm:$0xff] %v611
                %v613 = vld [vmem:[%s173 + $0xd98] sm:$0xff]
                %614 = vst [vmem:[%s174 + $0x6d8] sm:$0xff] %v613
                %v615 = vld [vmem:[%s173 + $0xdc0] sm:$0xff]
                %616 = vst [vmem:[%s174 + $0x6e0] sm:$0xff] %v615
                %v617 = vld [vmem:[%s173 + $0xdc8] sm:$0xff]
                %618 = vst [vmem:[%s174 + $0x6e8] sm:$0xff] %v617
                %v619 = vld [vmem:[%s173 + $0xdd0] sm:$0xff]
                %620 = vst [vmem:[%s174 + $0x6f0] sm:$0xff] %v619
                %v621 = vld [vmem:[%s173 + $0xdd8] sm:$0xff]
                %622 = vst [vmem:[%s174 + $0x6f8] sm:$0xff] %v621
                %v623 = vld [vmem:[%s173 + $0xe00] sm:$0xff]
                %624 = vst [vmem:[%s174 + $0x700] sm:$0xff] %v623
                %v625 = vld [vmem:[%s173 + $0xe08] sm:$0xff]
                %626 = vst [vmem:[%s174 + $0x708] sm:$0xff] %v625
                %v627 = vld [vmem:[%s173 + $0xe10] sm:$0xff]
                %628 = vst [vmem:[%s174 + $0x710] sm:$0xff] %v627
                %v629 = vld [vmem:[%s173 + $0xe18] sm:$0xff]
                %630 = vst [vmem:[%s174 + $0x718] sm:$0xff] %v629
                %v631 = vld [vmem:[%s173 + $0xe40] sm:$0xff]
                %632 = vst [vmem:[%s174 + $0x720] sm:$0xff] %v631
                %v633 = vld [vmem:[%s173 + $0xe48] sm:$0xff]
                %634 = vst [vmem:[%s174 + $0x728] sm:$0xff] %v633
                %v635 = vld [vmem:[%s173 + $0xe50] sm:$0xff]
                %636 = vst [vmem:[%s174 + $0x730] sm:$0xff] %v635
                %v637 = vld [vmem:[%s173 + $0xe58] sm:$0xff]
                %638 = vst [vmem:[%s174 + $0x738] sm:$0xff] %v637
                %v639 = vld [vmem:[%s173 + $0xe80] sm:$0xff]
                %640 = vst [vmem:[%s174 + $0x740] sm:$0xff] %v639
                %v641 = vld [vmem:[%s173 + $0xe88] sm:$0xff]
                %642 = vst [vmem:[%s174 + $0x748] sm:$0xff] %v641
                %v643 = vld [vmem:[%s173 + $0xe90] sm:$0xff]
                %644 = vst [vmem:[%s174 + $0x750] sm:$0xff] %v643
                %v645 = vld [vmem:[%s173 + $0xe98] sm:$0xff]
                %646 = vst [vmem:[%s174 + $0x758] sm:$0xff] %v645
                %v647 = vld [vmem:[%s173 + $0xec0] sm:$0xff]
                %648 = vst [vmem:[%s174 + $0x760] sm:$0xff] %v647
                %v649 = vld [vmem:[%s173 + $0xec8] sm:$0xff]
                %650 = vst [vmem:[%s174 + $0x768] sm:$0xff] %v649
                %v651 = vld [vmem:[%s173 + $0xed0] sm:$0xff]
                %652 = vst [vmem:[%s174 + $0x770] sm:$0xff] %v651
                %v653 = vld [vmem:[%s173 + $0xed8] sm:$0xff]
                %654 = vst [vmem:[%s174 + $0x778] sm:$0xff] %v653
                %v655 = vld [vmem:[%s173 + $0xf00] sm:$0xff]
                %656 = vst [vmem:[%s174 + $0x780] sm:$0xff] %v655
                %v657 = vld [vmem:[%s173 + $0xf08] sm:$0xff]
                %658 = vst [vmem:[%s174 + $0x788] sm:$0xff] %v657
                %v659 = vld [vmem:[%s173 + $0xf10] sm:$0xff]
                %660 = vst [vmem:[%s174 + $0x790] sm:$0xff] %v659
                %v661 = vld [vmem:[%s173 + $0xf18] sm:$0xff]
                %662 = vst [vmem:[%s174 + $0x798] sm:$0xff] %v661
                %v663 = vld [vmem:[%s173 + $0xf40] sm:$0xff]
                %664 = vst [vmem:[%s174 + $0x7a0] sm:$0xff] %v663
                %v665 = vld [vmem:[%s173 + $0xf48] sm:$0xff]
                %666 = vst [vmem:[%s174 + $0x7a8] sm:$0xff] %v665
                %v667 = vld [vmem:[%s173 + $0xf50] sm:$0xff]
                %668 = vst [vmem:[%s174 + $0x7b0] sm:$0xff] %v667
                %v669 = vld [vmem:[%s173 + $0xf58] sm:$0xff]
                %670 = vst [vmem:[%s174 + $0x7b8] sm:$0xff] %v669
                %v671 = vld [vmem:[%s173 + $0xf80] sm:$0xff]
                %672 = vst [vmem:[%s174 + $0x7c0] sm:$0xff] %v671
                %v673 = vld [vmem:[%s173 + $0xf88] sm:$0xff]
                %674 = vst [vmem:[%s174 + $0x7c8] sm:$0xff] %v673
                %v675 = vld [vmem:[%s173 + $0xf90] sm:$0xff]
                %676 = vst [vmem:[%s174 + $0x7d0] sm:$0xff] %v675
                %v677 = vld [vmem:[%s173 + $0xf98] sm:$0xff]
                %678 = vst [vmem:[%s174 + $0x7d8] sm:$0xff] %v677
                %v679 = vld [vmem:[%s173 + $0xfc0] sm:$0xff]
                %680 = vst [vmem:[%s174 + $0x7e0] sm:$0xff] %v679
                %v681 = vld [vmem:[%s173 + $0xfc8] sm:$0xff]
                %682 = vst [vmem:[%s174 + $0x7e8] sm:$0xff] %v681
                %v683 = vld [vmem:[%s173 + $0xfd0] sm:$0xff]
                %684 = vst [vmem:[%s174 + $0x7f0] sm:$0xff] %v683
                %v685 = vld [vmem:[%s173 + $0xfd8] sm:$0xff]
                %686 = vst [vmem:[%s174 + $0x7f8] sm:$0xff] %v685
                %v687 = vld [vmem:[%s173 + $0x1000] sm:$0xff]
                %688 = vst [vmem:[%s174 + $0x800] sm:$0xff] %v687
                %v689 = vld [vmem:[%s173 + $0x1008] sm:$0xff]
                %690 = vst [vmem:[%s174 + $0x808] sm:$0xff] %v689
                %v691 = vld [vmem:[%s173 + $0x1010] sm:$0xff]
                %692 = vst [vmem:[%s174 + $0x810] sm:$0xff] %v691
                %v693 = vld [vmem:[%s173 + $0x1018] sm:$0xff]
                %694 = vst [vmem:[%s174 + $0x818] sm:$0xff] %v693
                %v695 = vld [vmem:[%s173 + $0x1040] sm:$0xff]
                %696 = vst [vmem:[%s174 + $0x820] sm:$0xff] %v695
                %v697 = vld [vmem:[%s173 + $0x1048] sm:$0xff]
                %698 = vst [vmem:[%s174 + $0x828] sm:$0xff] %v697
                %v699 = vld [vmem:[%s173 + $0x1050] sm:$0xff]
                %700 = vst [vmem:[%s174 + $0x830] sm:$0xff] %v699
                %v701 = vld [vmem:[%s173 + $0x1058] sm:$0xff]
                %702 = vst [vmem:[%s174 + $0x838] sm:$0xff] %v701
                %v703 = vld [vmem:[%s173 + $0x1080] sm:$0xff]
                %704 = vst [vmem:[%s174 + $0x840] sm:$0xff] %v703
                %v705 = vld [vmem:[%s173 + $0x1088] sm:$0xff]
                %706 = vst [vmem:[%s174 + $0x848] sm:$0xff] %v705
                %v707 = vld [vmem:[%s173 + $0x1090] sm:$0xff]
                %708 = vst [vmem:[%s174 + $0x850] sm:$0xff] %v707
                %v709 = vld [vmem:[%s173 + $0x1098] sm:$0xff]
                %710 = vst [vmem:[%s174 + $0x858] sm:$0xff] %v709
                %v711 = vld [vmem:[%s173 + $0x10c0] sm:$0xff]
                %712 = vst [vmem:[%s174 + $0x860] sm:$0xff] %v711
                %v713 = vld [vmem:[%s173 + $0x10c8] sm:$0xff]
                %714 = vst [vmem:[%s174 + $0x868] sm:$0xff] %v713
                %v715 = vld [vmem:[%s173 + $0x10d0] sm:$0xff]
                %716 = vst [vmem:[%s174 + $0x870] sm:$0xff] %v715
                %v717 = vld [vmem:[%s173 + $0x10d8] sm:$0xff]
                %718 = vst [vmem:[%s174 + $0x878] sm:$0xff] %v717
                %v719 = vld [vmem:[%s173 + $0x1100] sm:$0xff]
                %720 = vst [vmem:[%s174 + $0x880] sm:$0xff] %v719
                %v721 = vld [vmem:[%s173 + $0x1108] sm:$0xff]
                %722 = vst [vmem:[%s174 + $0x888] sm:$0xff] %v721
                %v723 = vld [vmem:[%s173 + $0x1110] sm:$0xff]
                %724 = vst [vmem:[%s174 + $0x890] sm:$0xff] %v723
                %v725 = vld [vmem:[%s173 + $0x1118] sm:$0xff]
                %726 = vst [vmem:[%s174 + $0x898] sm:$0xff] %v725
                %v727 = vld [vmem:[%s173 + $0x1140] sm:$0xff]
                %728 = vst [vmem:[%s174 + $0x8a0] sm:$0xff] %v727
                %v729 = vld [vmem:[%s173 + $0x1148] sm:$0xff]
                %730 = vst [vmem:[%s174 + $0x8a8] sm:$0xff] %v729
                %v731 = vld [vmem:[%s173 + $0x1150] sm:$0xff]
                %732 = vst [vmem:[%s174 + $0x8b0] sm:$0xff] %v731
                %v733 = vld [vmem:[%s173 + $0x1158] sm:$0xff]
                %734 = vst [vmem:[%s174 + $0x8b8] sm:$0xff] %v733
                %v735 = vld [vmem:[%s173 + $0x1180] sm:$0xff]
                %736 = vst [vmem:[%s174 + $0x8c0] sm:$0xff] %v735
                %v737 = vld [vmem:[%s173 + $0x1188] sm:$0xff]
                %738 = vst [vmem:[%s174 + $0x8c8] sm:$0xff] %v737
                %v739 = vld [vmem:[%s173 + $0x1190] sm:$0xff]
                %740 = vst [vmem:[%s174 + $0x8d0] sm:$0xff] %v739
                %v741 = vld [vmem:[%s173 + $0x1198] sm:$0xff]
                %742 = vst [vmem:[%s174 + $0x8d8] sm:$0xff] %v741
                %v743 = vld [vmem:[%s173 + $0x11c0] sm:$0xff]
                %744 = vst [vmem:[%s174 + $0x8e0] sm:$0xff] %v743
                %v745 = vld [vmem:[%s173 + $0x11c8] sm:$0xff]
                %746 = vst [vmem:[%s174 + $0x8e8] sm:$0xff] %v745
                %v747 = vld [vmem:[%s173 + $0x11d0] sm:$0xff]
                %748 = vst [vmem:[%s174 + $0x8f0] sm:$0xff] %v747
                %v749 = vld [vmem:[%s173 + $0x11d8] sm:$0xff]
                %750 = vst [vmem:[%s174 + $0x8f8] sm:$0xff] %v749
                %v751 = vld [vmem:[%s173 + $0x1200] sm:$0xff]
                %752 = vst [vmem:[%s174 + $0x900] sm:$0xff] %v751
                %v753 = vld [vmem:[%s173 + $0x1208] sm:$0xff]
                %754 = vst [vmem:[%s174 + $0x908] sm:$0xff] %v753
                %v755 = vld [vmem:[%s173 + $0x1210] sm:$0xff]
                %756 = vst [vmem:[%s174 + $0x910] sm:$0xff] %v755
                %v757 = vld [vmem:[%s173 + $0x1218] sm:$0xff]
                %758 = vst [vmem:[%s174 + $0x918] sm:$0xff] %v757
                %v759 = vld [vmem:[%s173 + $0x1240] sm:$0xff]
                %760 = vst [vmem:[%s174 + $0x920] sm:$0xff] %v759
                %v761 = vld [vmem:[%s173 + $0x1248] sm:$0xff]
                %762 = vst [vmem:[%s174 + $0x928] sm:$0xff] %v761
                %v763 = vld [vmem:[%s173 + $0x1250] sm:$0xff]
                %764 = vst [vmem:[%s174 + $0x930] sm:$0xff] %v763
                %v765 = vld [vmem:[%s173 + $0x1258] sm:$0xff]
                %766 = vst [vmem:[%s174 + $0x938] sm:$0xff] %v765
                %v767 = vld [vmem:[%s173 + $0x1280] sm:$0xff]
                %768 = vst [vmem:[%s174 + $0x940] sm:$0xff] %v767
                %v769 = vld [vmem:[%s173 + $0x1288] sm:$0xff]
                %770 = vst [vmem:[%s174 + $0x948] sm:$0xff] %v769
                %v771 = vld [vmem:[%s173 + $0x1290] sm:$0xff]
                %772 = vst [vmem:[%s174 + $0x950] sm:$0xff] %v771
                %v773 = vld [vmem:[%s173 + $0x1298] sm:$0xff]
                %774 = vst [vmem:[%s174 + $0x958] sm:$0xff] %v773
                %v775 = vld [vmem:[%s173 + $0x12c0] sm:$0xff]
                %776 = vst [vmem:[%s174 + $0x960] sm:$0xff] %v775
                %v777 = vld [vmem:[%s173 + $0x12c8] sm:$0xff]
                %778 = vst [vmem:[%s174 + $0x968] sm:$0xff] %v777
                %v779 = vld [vmem:[%s173 + $0x12d0] sm:$0xff]
                %780 = vst [vmem:[%s174 + $0x970] sm:$0xff] %v779
                %v781 = vld [vmem:[%s173 + $0x12d8] sm:$0xff]
                %782 = vst [vmem:[%s174 + $0x978] sm:$0xff] %v781
                %v783 = vld [vmem:[%s173 + $0x1300] sm:$0xff]
                %784 = vst [vmem:[%s174 + $0x980] sm:$0xff] %v783
                %v785 = vld [vmem:[%s173 + $0x1308] sm:$0xff]
                %786 = vst [vmem:[%s174 + $0x988] sm:$0xff] %v785
                %v787 = vld [vmem:[%s173 + $0x1310] sm:$0xff]
                %788 = vst [vmem:[%s174 + $0x990] sm:$0xff] %v787
                %v789 = vld [vmem:[%s173 + $0x1318] sm:$0xff]
                %790 = vst [vmem:[%s174 + $0x998] sm:$0xff] %v789
                %v791 = vld [vmem:[%s173 + $0x1340] sm:$0xff]
                %792 = vst [vmem:[%s174 + $0x9a0] sm:$0xff] %v791
                %v793 = vld [vmem:[%s173 + $0x1348] sm:$0xff]
                %794 = vst [vmem:[%s174 + $0x9a8] sm:$0xff] %v793
                %v795 = vld [vmem:[%s173 + $0x1350] sm:$0xff]
                %796 = vst [vmem:[%s174 + $0x9b0] sm:$0xff] %v795
                %v797 = vld [vmem:[%s173 + $0x1358] sm:$0xff]
                %798 = vst [vmem:[%s174 + $0x9b8] sm:$0xff] %v797
                %v799 = vld [vmem:[%s173 + $0x1380] sm:$0xff]
                %800 = vst [vmem:[%s174 + $0x9c0] sm:$0xff] %v799
                %v801 = vld [vmem:[%s173 + $0x1388] sm:$0xff]
                %802 = vst [vmem:[%s174 + $0x9c8] sm:$0xff] %v801
                %v803 = vld [vmem:[%s173 + $0x1390] sm:$0xff]
                %804 = vst [vmem:[%s174 + $0x9d0] sm:$0xff] %v803
                %v805 = vld [vmem:[%s173 + $0x1398] sm:$0xff]
                %806 = vst [vmem:[%s174 + $0x9d8] sm:$0xff] %v805
                %v807 = vld [vmem:[%s173 + $0x13c0] sm:$0xff]
                %808 = vst [vmem:[%s174 + $0x9e0] sm:$0xff] %v807
                %v809 = vld [vmem:[%s173 + $0x13c8] sm:$0xff]
                %810 = vst [vmem:[%s174 + $0x9e8] sm:$0xff] %v809
                %v811 = vld [vmem:[%s173 + $0x13d0] sm:$0xff]
                %812 = vst [vmem:[%s174 + $0x9f0] sm:$0xff] %v811
                %v813 = vld [vmem:[%s173 + $0x13d8] sm:$0xff]
                %814 = vst [vmem:[%s174 + $0x9f8] sm:$0xff] %v813
                %v815 = vld [vmem:[%s173 + $0x1400] sm:$0xff]
                %816 = vst [vmem:[%s174 + $0xa00] sm:$0xff] %v815
                %v817 = vld [vmem:[%s173 + $0x1408] sm:$0xff]
                %818 = vst [vmem:[%s174 + $0xa08] sm:$0xff] %v817
                %v819 = vld [vmem:[%s173 + $0x1410] sm:$0xff]
                %820 = vst [vmem:[%s174 + $0xa10] sm:$0xff] %v819
                %v821 = vld [vmem:[%s173 + $0x1418] sm:$0xff]
                %822 = vst [vmem:[%s174 + $0xa18] sm:$0xff] %v821
                %v823 = vld [vmem:[%s173 + $0x1440] sm:$0xff]
                %824 = vst [vmem:[%s174 + $0xa20] sm:$0xff] %v823
                %v825 = vld [vmem:[%s173 + $0x1448] sm:$0xff]
                %826 = vst [vmem:[%s174 + $0xa28] sm:$0xff] %v825
                %v827 = vld [vmem:[%s173 + $0x1450] sm:$0xff]
                %828 = vst [vmem:[%s174 + $0xa30] sm:$0xff] %v827
                %v829 = vld [vmem:[%s173 + $0x1458] sm:$0xff]
                %830 = vst [vmem:[%s174 + $0xa38] sm:$0xff] %v829
                %v831 = vld [vmem:[%s173 + $0x1480] sm:$0xff]
                %832 = vst [vmem:[%s174 + $0xa40] sm:$0xff] %v831
                %v833 = vld [vmem:[%s173 + $0x1488] sm:$0xff]
                %834 = vst [vmem:[%s174 + $0xa48] sm:$0xff] %v833
                %v835 = vld [vmem:[%s173 + $0x1490] sm:$0xff]
                %836 = vst [vmem:[%s174 + $0xa50] sm:$0xff] %v835
                %v837 = vld [vmem:[%s173 + $0x1498] sm:$0xff]
                %838 = vst [vmem:[%s174 + $0xa58] sm:$0xff] %v837
                %v839 = vld [vmem:[%s173 + $0x14c0] sm:$0xff]
                %840 = vst [vmem:[%s174 + $0xa60] sm:$0xff] %v839
                %v841 = vld [vmem:[%s173 + $0x14c8] sm:$0xff]
                %842 = vst [vmem:[%s174 + $0xa68] sm:$0xff] %v841
                %v843 = vld [vmem:[%s173 + $0x14d0] sm:$0xff]
                %844 = vst [vmem:[%s174 + $0xa70] sm:$0xff] %v843
                %v845 = vld [vmem:[%s173 + $0x14d8] sm:$0xff]
                %846 = vst [vmem:[%s174 + $0xa78] sm:$0xff] %v845
                %v847 = vld [vmem:[%s173 + $0x1500] sm:$0xff]
                %848 = vst [vmem:[%s174 + $0xa80] sm:$0xff] %v847
                %v849 = vld [vmem:[%s173 + $0x1508] sm:$0xff]
                %850 = vst [vmem:[%s174 + $0xa88] sm:$0xff] %v849
                %v851 = vld [vmem:[%s173 + $0x1510] sm:$0xff]
                %852 = vst [vmem:[%s174 + $0xa90] sm:$0xff] %v851
                %v853 = vld [vmem:[%s173 + $0x1518] sm:$0xff]
                %854 = vst [vmem:[%s174 + $0xa98] sm:$0xff] %v853
                %v855 = vld [vmem:[%s173 + $0x1540] sm:$0xff]
                %856 = vst [vmem:[%s174 + $0xaa0] sm:$0xff] %v855
                %v857 = vld [vmem:[%s173 + $0x1548] sm:$0xff]
                %858 = vst [vmem:[%s174 + $0xaa8] sm:$0xff] %v857
                %v859 = vld [vmem:[%s173 + $0x1550] sm:$0xff]
                %860 = vst [vmem:[%s174 + $0xab0] sm:$0xff] %v859
                %v861 = vld [vmem:[%s173 + $0x1558] sm:$0xff]
                %862 = vst [vmem:[%s174 + $0xab8] sm:$0xff] %v861
                %v863 = vld [vmem:[%s173 + $0x1580] sm:$0xff]
                %864 = vst [vmem:[%s174 + $0xac0] sm:$0xff] %v863
                %v865 = vld [vmem:[%s173 + $0x1588] sm:$0xff]
                %866 = vst [vmem:[%s174 + $0xac8] sm:$0xff] %v865
                %v867 = vld [vmem:[%s173 + $0x1590] sm:$0xff]
                %868 = vst [vmem:[%s174 + $0xad0] sm:$0xff] %v867
                %v869 = vld [vmem:[%s173 + $0x1598] sm:$0xff]
                %870 = vst [vmem:[%s174 + $0xad8] sm:$0xff] %v869
                %v871 = vld [vmem:[%s173 + $0x15c0] sm:$0xff]
                %872 = vst [vmem:[%s174 + $0xae0] sm:$0xff] %v871
                %v873 = vld [vmem:[%s173 + $0x15c8] sm:$0xff]
                %874 = vst [vmem:[%s174 + $0xae8] sm:$0xff] %v873
                %v875 = vld [vmem:[%s173 + $0x15d0] sm:$0xff]
                %876 = vst [vmem:[%s174 + $0xaf0] sm:$0xff] %v875
                %v877 = vld [vmem:[%s173 + $0x15d8] sm:$0xff]
                %878 = vst [vmem:[%s174 + $0xaf8] sm:$0xff] %v877
              $region45: #{model_forward.1} parent=39 // loop_footer
                %s172 = sadd.s32 1, %s168
              $region46: #{model_forward.1} parent=39 // loop_footer_branch
                %167 = sbr.rel target = $region42
              $region47: #{model_forward.1} parent=39 // loop_exit
                _
            $region40: #{model_forward.1} parent=35 // pred_fallthru
              _
            // Predicated region
            $region48: #{model_forward.1} parent=35 // pred_check
              _
            $region49: #{model_forward.1} parent=35 // pred_check_branch
              %880 = sbr.rel target = $region51
            $region50: #{model_forward.1} parent=35 // pred_region
              _
            $region51: #{model_forward.1} parent=35 // pred_fallthru
              _
          $region36: #{model_forward.1} parent=31 // pred_fallthru
            _
          %881 = vnop
        $region32: #{model_forward.1} parent=27 // pred_fallthru
          _
      $region28: #{model_forward.1} parent=5 // pred_fallthru
        _
      %p882 = scmp.le.s32.totalorder 1, %s10
      %p883 = scmp.lt.s32.totalorder %s10, 3
      %p884 = pnand %p882, %p883
      %p885 = pneg %p884
      // Predicated region
      $region52: #{model_forward.1} parent=5 // pred_check
        _
      $region53: #{model_forward.1} parent=5 // pred_check_branch
        %887 = sbr.rel (%p884) target = $region55
      $region54: #{model_forward.1} parent=5 // pred_region
        %s888 = ssub.s32 %s10, 1
        %s889 = sand.u32 %s23, 1
        %s890 = sand.u32 %s23, 1
        %s891 = smul.addr %s890, 2816
        %s892 = scalar_lea.vmem [#allocation2], %s891
        // Predicated region
        $region56: #{model_forward.1} parent=54 // pred_check
          %p893 = pneg %p36
        $region57: #{model_forward.1} parent=54 // pred_check_branch
          %895 = sbr.rel (%p893) target = $region59
        $region58: #{model_forward.1} parent=54 // pred_region
          _
        $region59: #{model_forward.1} parent=54 // pred_fallthru
          _
        %s896 = sand.u32 %s23, 1
        %s897 = sand.u32 %s23, 1
        %s898 = smul.addr %s897, 2816
        %s899 = scalar_lea.vmem [#allocation2], %s898
        %p900 = pneg %p36
        %p901 = pneg %p33
        %p902 = pneg %p57
        %p903 = pneg %p54
        %p904 = pneg %p78
        %p905 = pneg %p75
        %p906 = pneg %p99
        %p907 = pneg %p96
        %p908 = pneg %p125
        %p909 = pneg %p122
        %p910 = scmp.lt.s32.totalorder %s15, 1
        %s911 = scalar_select %p910, %s15, 1
        %s912 = smul.addr %s911, 4
        %s913 = scalar_lea.vmem %s4, %s912
        %s914 = smul.u32 4, %s15
        %p915 = scmp.lt.s32.totalorder %s15, 1
        %s916 = scalar_select %p915, %s15, 1
        %s917 = smul.addr %s916, 4
        %s918 = scalar_lea.vmem %s4, %s917
        %v919 = vld [vmem:[%s1] sm:$0xff]
        %v920 = vld [vmem:[%s1 + $0x8] sm:$0xff]
        %v921 = vld [vmem:[%s892] sm:$0xff]
        %v922 = vld [vmem:[%s892 + $0x8] sm:$0xff]
        %v923 = vld [vmem:[%s892 + $0x10] sm:$0xff]
        %v924 = vld [vmem:[%s892 + $0x18] sm:$0xff]
        %v925 = vld [vmem:[%s892 + $0x20] sm:$0xff]
        %v926 = vld [vmem:[%s892 + $0x28] sm:$0xff]
        %v927 = vld [vmem:[%s892 + $0x30] sm:$0xff]
        %v928 = vld [vmem:[%s892 + $0x38] sm:$0xff]
        %v929 = vld [vmem:[%s892 + $0x40] sm:$0xff]
        %v930 = vld [vmem:[%s892 + $0x48] sm:$0xff]
        %v931 = vld [vmem:[%s892 + $0x50] sm:$0xff]
        %v932 = vld [vmem:[%s892 + $0x58] sm:$0xff]
        %v933 = vld [vmem:[%s892 + $0x60] sm:$0xff]
        %v934 = vld [vmem:[%s892 + $0x68] sm:$0xff]
        %v935 = vld [vmem:[%s892 + $0x70] sm:$0xff]
        %v936 = vld [vmem:[%s892 + $0x78] sm:$0xff]
        %v937 = vld [vmem:[%s892 + $0x80] sm:$0xff]
        %v938 = vld [vmem:[%s892 + $0x88] sm:$0xff]
        %v939 = vld [vmem:[%s892 + $0x90] sm:$0xff]
        %v940 = vld [vmem:[%s892 + $0x98] sm:$0xff]
        %v941 = vld [vmem:[%s892 + $0xa0] sm:$0xff]
        %v942 = vld [vmem:[%s892 + $0xa8] sm:$0xff]
        %v943 = vld [vmem:[%s892 + $0xb0] sm:$0xff]
        %v944 = vld [vmem:[%s892 + $0xb8] sm:$0xff]
        %v945 = vld [vmem:[%s892 + $0xc0] sm:$0xff]
        %v946 = vld [vmem:[%s892 + $0xc8] sm:$0xff]
        %v947 = vld [vmem:[%s892 + $0xd0] sm:$0xff]
        %v948 = vld [vmem:[%s892 + $0xd8] sm:$0xff]
        %v949 = vld [vmem:[%s892 + $0xe0] sm:$0xff]
        %v950 = vld [vmem:[%s892 + $0xe8] sm:$0xff]
        %v951 = vld [vmem:[%s892 + $0xf0] sm:$0xff]
        %v952 = vld [vmem:[%s892 + $0xf8] sm:$0xff]
        %v953 = vld [vmem:[%s892 + $0x100] sm:$0xff]
        %v954 = vld [vmem:[%s892 + $0x108] sm:$0xff]
        %v955 = vld [vmem:[%s892 + $0x110] sm:$0xff]
        %v956 = vld [vmem:[%s892 + $0x118] sm:$0xff]
        %v957 = vld [vmem:[%s892 + $0x120] sm:$0xff]
        %v958 = vld [vmem:[%s892 + $0x128] sm:$0xff]
        %v959 = vld [vmem:[%s892 + $0x130] sm:$0xff]
        %v960 = vld [vmem:[%s892 + $0x138] sm:$0xff]
        %v961 = vld [vmem:[%s892 + $0x140] sm:$0x1]
        %v962 = vld [vmem:[%s892 + $0x148] sm:$0x1]
        %v963 = vld [vmem:[%s892 + $0x150] sm:$0x1]
        %v964 = vld [vmem:[%s892 + $0x158] sm:$0x1]
        %vm965 = vcmask 662528
        %v967 = vsel %vm965, %v919, 0
        %v970 = vsel %vm965, %v920, 0
        %vm972 = vcmask 1040384
        %v974 = vsel %vm972, %v961, 0
        %v977 = vsel %vm972, %v962, 0
        %v980 = vsel %vm972, %v963, 0
        %v983 = vsel %vm972, %v964, 0
        %985 = vmatprep.subr.mxu0 %v922
        %986 = vmatpush1.msra.mxu0 %v921
        %987 = vmatprep.subr.mxu0 %v926
        %988 = vmatpush1.msra.mxu0 %v925
        %989 = vmatprep.subr.mxu0 %v930
        %990 = vmatpush1.msra.mxu0 %v929
        %991 = vmatprep.subr.mxu0 %v934
        %992 = vmatpush1.msra.mxu0 %v933
        %993 = vmatprep.subr.mxu0 %v938
        %994 = vmatpush1.msra.mxu0 %v937
        %995 = vmatprep.subr.mxu0 %v942
        %996 = vmatpush1.msra.mxu0 %v941
        %997 = vmatprep.subr.mxu0 %v946
        %998 = vmatpush1.msra.mxu0 %v945
        %999 = vmatprep.subr.mxu0 %v950
        %1000 = vmatpush1.msra.mxu0 %v949
        %1001 = vmatprep.subr.mxu0 %v954
        %1002 = vmatpush1.msra.mxu0 %v953
        %1003 = vmatprep.subr.mxu0 %v958
        %1004 = vmatpush1.msra.mxu0 %v957
        %1005 = vmatprep.subr.mxu0 %v977
        %1006 = vmatpush1.msra.mxu0 %v974
        %1007 = vmatprep.subr.mxu0 0.0
        %1008 = vmatpush1.msra.mxu0 0.0
        %1009 = vmatprep.subr.mxu0 0.0
        %1010 = vmatpush1.msra.mxu0 0.0
        %1011 = vmatprep.subr.mxu0 0.0
        %1012 = vmatpush1.msra.mxu0 0.0
        %1013 = vmatprep.subr.mxu0 0.0
        %1014 = vmatpush1.msra.mxu0 0.0
        %1015 = vmatprep.subr.mxu0 0.0
        %1016 = vmatpush1.msra.mxu0 0.0
        %1017 = vmatprep.subr.mxu0 0.0
        %1018 = vmatpush1.msra.mxu0 0.0
        %1019 = vmatprep.subr.mxu0 0.0
        %1020 = vmatpush1.msra.mxu0 0.0
        %1021 = vmatprep.subr.mxu0 0.0
        %1022 = vmatpush1.msra.mxu0 0.0
        %1023 = vmatprep.subr.mxu0 0.0
        %1024 = vmatpush1.msra.mxu0 0.0
        %1025 = vmatprep.subr.mxu0 0.0
        %1026 = vmatpush1.msra.mxu0 0.0
        %1027 = vmatprep.subr.mxu0 0.0
        %1028 = vmatpush1.msra.mxu0 0.0
        %1029 = vmatprep.subr.mxu0 0.0
        %1030 = vmatpush1.msra.mxu0 0.0
        %1031 = vmatprep.subr.mxu0 0.0
        %1032 = vmatpush1.msra.mxu0 0.0
        %1033 = vmatprep.subr.mxu0 0.0
        %1034 = vmatpush1.msra.mxu0 0.0
        %1035 = vmatprep.subr.mxu0 0.0
        %1036 = vmatpush1.msra.mxu0 0.0
        %1037 = vmatprep.subr.mxu0 0.0
        %1038 = vmatpush1.msra.mxu0 0.0
        %1039 = vmatprep.subr.mxu0 0.0
        %1040 = vmatpush1.msra.mxu0 0.0
        %1041 = vmatprep.subr.mxu0 0.0
        %1042 = vmatpush1.msra.mxu0 0.0
        %1043 = vmatprep.subr.mxu0 0.0
        %1044 = vmatpush1.msra.mxu0 0.0
        %1045 = vmatprep.subr.mxu0 0.0
        %1046 = vmatpush1.msra.mxu0 0.0
        %1047 = vmatprep.subr.mxu0 0.0
        %1048 = vmatpush1.msra.mxu0 0.0
        %1049 = vmatprep.mubr.f32.mxu0 0.0
        %1050 = vmatmul.mubr.f32.gmra.mrb[0].mxu0 %v967
        %v1051 = vpop.f32.mrb[0].mxu0
        %v1052 = vadd.f32 0.0, %v1051
        %v1053 = vpop.f32.mrb[0].mxu0
        %v1054 = vadd.f32 0.0, %v1053
        %1055 = vmatprep.mubr.f32.mxu0 0.0
        %1056 = vmatmul.mubr.f32.gmra.mrb[0].mxu0 %v970
        %v1057 = vpop.f32.mrb[0].mxu0
        %v1058 = vadd.f32 0.0, %v1057
        %v1059 = vpop.f32.mrb[0].mxu0
        %v1060 = vadd.f32 0.0, %v1059
        %1061 = vdwg.mxu0
        %1062 = vmatprep.subr.mxu0 %v924
        %1063 = vmatpush1.msra.mxu0 %v923
        %1064 = vmatprep.subr.mxu0 %v928
        %1065 = vmatpush1.msra.mxu0 %v927
        %1066 = vmatprep.subr.mxu0 %v932
        %1067 = vmatpush1.msra.mxu0 %v931
        %1068 = vmatprep.subr.mxu0 %v936
        %1069 = vmatpush1.msra.mxu0 %v935
        %1070 = vmatprep.subr.mxu0 %v940
        %1071 = vmatpush1.msra.mxu0 %v939
        %1072 = vmatprep.subr.mxu0 %v944
        %1073 = vmatpush1.msra.mxu0 %v943
        %1074 = vmatprep.subr.mxu0 %v948
        %1075 = vmatpush1.msra.mxu0 %v947
        %1076 = vmatprep.subr.mxu0 %v952
        %1077 = vmatpush1.msra.mxu0 %v951
        %1078 = vmatprep.subr.mxu0 %v956
        %1079 = vmatpush1.msra.mxu0 %v955
        %1080 = vmatprep.subr.mxu0 %v960
        %1081 = vmatpush1.msra.mxu0 %v959
        %1082 = vmatprep.subr.mxu0 %v983
        %1083 = vmatpush1.msra.mxu0 %v980
        %1084 = vmatprep.subr.mxu0 0.0
        %1085 = vmatpush1.msra.mxu0 0.0
        %1086 = vmatprep.subr.mxu0 0.0
        %1087 = vmatpush1.msra.mxu0 0.0
        %1088 = vmatprep.subr.mxu0 0.0
        %1089 = vmatpush1.msra.mxu0 0.0
        %1090 = vmatprep.subr.mxu0 0.0
        %1091 = vmatpush1.msra.mxu0 0.0
        %1092 = vmatprep.subr.mxu0 0.0
        %1093 = vmatpush1.msra.mxu0 0.0
        %1094 = vmatprep.subr.mxu0 0.0
        %1095 = vmatpush1.msra.mxu0 0.0
        %1096 = vmatprep.subr.mxu0 0.0
        %1097 = vmatpush1.msra.mxu0 0.0
        %1098 = vmatprep.subr.mxu0 0.0
        %1099 = vmatpush1.msra.mxu0 0.0
        %1100 = vmatprep.subr.mxu0 0.0
        %1101 = vmatpush1.msra.mxu0 0.0
        %1102 = vmatprep.subr.mxu0 0.0
        %1103 = vmatpush1.msra.mxu0 0.0
        %1104 = vmatprep.subr.mxu0 0.0
        %1105 = vmatpush1.msra.mxu0 0.0
        %1106 = vmatprep.subr.mxu0 0.0
        %1107 = vmatpush1.msra.mxu0 0.0
        %1108 = vmatprep.subr.mxu0 0.0
        %1109 = vmatpush1.msra.mxu0 0.0
        %1110 = vmatprep.subr.mxu0 0.0
        %1111 = vmatpush1.msra.mxu0 0.0
        %1112 = vmatprep.subr.mxu0 0.0
        %1113 = vmatpush1.msra.mxu0 0.0
        %1114 = vmatprep.subr.mxu0 0.0
        %1115 = vmatpush1.msra.mxu0 0.0
        %1116 = vmatprep.subr.mxu0 0.0
        %1117 = vmatpush1.msra.mxu0 0.0
        %1118 = vmatprep.subr.mxu0 0.0
        %1119 = vmatpush1.msra.mxu0 0.0
        %1120 = vmatprep.subr.mxu0 0.0
        %1121 = vmatpush1.msra.mxu0 0.0
        %1122 = vmatprep.subr.mxu0 0.0
        %1123 = vmatpush1.msra.mxu0 0.0
        %1124 = vmatprep.subr.mxu0 0.0
        %1125 = vmatpush1.msra.mxu0 0.0
        %1126 = vmatprep.mubr.f32.mxu0 0.0
        %1127 = vmatmul.mubr.f32.gmra.mrb[0].mxu0 %v967
        %v1128 = vpop.f32.mrb[0].mxu0
        %v1129 = vadd.f32 0.0, %v1128
        %v1130 = vpop.f32.mrb[0].mxu0
        %v1131 = vadd.f32 0.0, %v1130
        %1132 = vmatprep.mubr.f32.mxu0 0.0
        %1133 = vmatmul.mubr.f32.gmra.mrb[0].mxu0 %v970
        %v1134 = vpop.f32.mrb[0].mxu0
        %v1135 = vadd.f32 0.0, %v1134
        %v1136 = vpop.f32.mrb[0].mxu0
        %v1137 = vadd.f32 0.0, %v1136
        %1138 = vdwg.mxu0
        %s1139 = scalar_lea.vmem %s892, 352 [#allocation2]
        %v1140 = vld [vmem:[%s1139] sm:$0xff]
        %v1141 = vld [vmem:[%s1139 + $0x8] sm:$0xff]
        %v1142 = vld [vmem:[%s1139 + $0x10] sm:$0xff]
        %v1143 = vld [vmem:[%s1139 + $0x18] sm:$0xff]
        %v1144 = vld [vmem:[%s1139 + $0x20] sm:$0xff]
        %v1145 = vld [vmem:[%s1139 + $0x28] sm:$0xff]
        %v1146 = vld [vmem:[%s1139 + $0x30] sm:$0xff]
        %v1147 = vld [vmem:[%s1139 + $0x38] sm:$0xff]
        %v1148 = vld [vmem:[%s1139 + $0x40] sm:$0xff]
        %v1149 = vld [vmem:[%s1139 + $0x48] sm:$0xff]
        %v1150 = vld [vmem:[%s1139 + $0x50] sm:$0xff]
        %v1151 = vld [vmem:[%s1139 + $0x58] sm:$0xff]
        %v1152 = vld [vmem:[%s1139 + $0x60] sm:$0xff]
        %v1153 = vld [vmem:[%s1139 + $0x68] sm:$0xff]
        %v1154 = vld [vmem:[%s1139 + $0x70] sm:$0xff]
        %v1155 = vld [vmem:[%s1139 + $0x78] sm:$0xff]
        %v1156 = vld [vmem:[%s1139 + $0x80] sm:$0xff]
        %v1157 = vld [vmem:[%s1139 + $0x88] sm:$0xff]
        %v1158 = vld [vmem:[%s1139 + $0x90] sm:$0xff]
        %v1159 = vld [vmem:[%s1139 + $0x98] sm:$0xff]
        %v1160 = vld [vmem:[%s1139 + $0xa0] sm:$0xff]
        %v1161 = vld [vmem:[%s1139 + $0xa8] sm:$0xff]
        %v1162 = vld [vmem:[%s1139 + $0xb0] sm:$0xff]
        %v1163 = vld [vmem:[%s1139 + $0xb8] sm:$0xff]
        %v1164 = vld [vmem:[%s1139 + $0xc0] sm:$0xff]
        %v1165 = vld [vmem:[%s1139 + $0xc8] sm:$0xff]
        %v1166 = vld [vmem:[%s1139 + $0xd0] sm:$0xff]
        %v1167 = vld [vmem:[%s1139 + $0xd8] sm:$0xff]
        %v1168 = vld [vmem:[%s1139 + $0xe0] sm:$0xff]
        %v1169 = vld [vmem:[%s1139 + $0xe8] sm:$0xff]
        %v1170 = vld [vmem:[%s1139 + $0xf0] sm:$0xff]
        %v1171 = vld [vmem:[%s1139 + $0xf8] sm:$0xff]
        %v1172 = vld [vmem:[%s1139 + $0x100] sm:$0xff]
        %v1173 = vld [vmem:[%s1139 + $0x108] sm:$0xff]
        %v1174 = vld [vmem:[%s1139 + $0x110] sm:$0xff]
        %v1175 = vld [vmem:[%s1139 + $0x118] sm:$0xff]
        %v1176 = vld [vmem:[%s1139 + $0x120] sm:$0xff]
        %v1177 = vld [vmem:[%s1139 + $0x128] sm:$0xff]
        %v1178 = vld [vmem:[%s1139 + $0x130] sm:$0xff]
        %v1179 = vld [vmem:[%s1139 + $0x138] sm:$0xff]
        %v1180 = vld [vmem:[%s1139 + $0x140] sm:$0x1]
        %v1181 = vld [vmem:[%s1139 + $0x148] sm:$0x1]
        %v1182 = vld [vmem:[%s1139 + $0x150] sm:$0x1]
        %v1183 = vld [vmem:[%s1139 + $0x158] sm:$0x1]
        %v1185 = vsel %vm972, %v1180, 0
        %v1188 = vsel %vm972, %v1181, 0
        %v1191 = vsel %vm972, %v1182, 0
        %v1194 = vsel %vm972, %v1183, 0
        %1196 = vmatprep.subr.mxu0 %v1141
        %1197 = vmatpush1.msra.mxu0 %v1140
        %1198 = vmatprep.subr.mxu0 %v1145
        %1199 = vmatpush1.msra.mxu0 %v1144
        %1200 = vmatprep.subr.mxu0 %v1149
        %1201 = vmatpush1.msra.mxu0 %v1148
        %1202 = vmatprep.subr.mxu0 %v1153
        %1203 = vmatpush1.msra.mxu0 %v1152
        %1204 = vmatprep.subr.mxu0 %v1157
        %1205 = vmatpush1.msra.mxu0 %v1156
        %1206 = vmatprep.subr.mxu0 %v1161
        %1207 = vmatpush1.msra.mxu0 %v1160
        %1208 = vmatprep.subr.mxu0 %v1165
        %1209 = vmatpush1.msra.mxu0 %v1164
        %1210 = vmatprep.subr.mxu0 %v1169
        %1211 = vmatpush1.msra.mxu0 %v1168
        %1212 = vmatprep.subr.mxu0 %v1173
        %1213 = vmatpush1.msra.mxu0 %v1172
        %1214 = vmatprep.subr.mxu0 %v1177
        %1215 = vmatpush1.msra.mxu0 %v1176
        %1216 = vmatprep.subr.mxu0 %v1188
        %1217 = vmatpush1.msra.mxu0 %v1185
        %1218 = vmatprep.subr.mxu0 0.0
        %1219 = vmatpush1.msra.mxu0 0.0
        %1220 = vmatprep.subr.mxu0 0.0
        %1221 = vmatpush1.msra.mxu0 0.0
        %1222 = vmatprep.subr.mxu0 0.0
        %1223 = vmatpush1.msra.mxu0 0.0
        %1224 = vmatprep.subr.mxu0 0.0
        %1225 = vmatpush1.msra.mxu0 0.0
        %1226 = vmatprep.subr.mxu0 0.0
        %1227 = vmatpush1.msra.mxu0 0.0
        %1228 = vmatprep.subr.mxu0 0.0
        %1229 = vmatpush1.msra.mxu0 0.0
        %1230 = vmatprep.subr.mxu0 0.0
        %1231 = vmatpush1.msra.mxu0 0.0
        %1232 = vmatprep.subr.mxu0 0.0
        %1233 = vmatpush1.msra.mxu0 0.0
        %1234 = vmatprep.subr.mxu0 0.0
        %1235 = vmatpush1.msra.mxu0 0.0
        %1236 = vmatprep.subr.mxu0 0.0
        %1237 = vmatpush1.msra.mxu0 0.0
        %1238 = vmatprep.subr.mxu0 0.0
        %1239 = vmatpush1.msra.mxu0 0.0
        %1240 = vmatprep.subr.mxu0 0.0
        %1241 = vmatpush1.msra.mxu0 0.0
        %1242 = vmatprep.subr.mxu0 0.0
        %1243 = vmatpush1.msra.mxu0 0.0
        %1244 = vmatprep.subr.mxu0 0.0
        %1245 = vmatpush1.msra.mxu0 0.0
        %1246 = vmatprep.subr.mxu0 0.0
        %1247 = vmatpush1.msra.mxu0 0.0
        %1248 = vmatprep.subr.mxu0 0.0
        %1249 = vmatpush1.msra.mxu0 0.0
        %1250 = vmatprep.subr.mxu0 0.0
        %1251 = vmatpush1.msra.mxu0 0.0
        %1252 = vmatprep.subr.mxu0 0.0
        %1253 = vmatpush1.msra.mxu0 0.0
        %1254 = vmatprep.subr.mxu0 0.0
        %1255 = vmatpush1.msra.mxu0 0.0
        %1256 = vmatprep.subr.mxu0 0.0
        %1257 = vmatpush1.msra.mxu0 0.0
        %1258 = vmatprep.subr.mxu0 0.0
        %1259 = vmatpush1.msra.mxu0 0.0
        %1260 = vmatprep.mubr.f32.mxu0 0.0
        %1261 = vmatmul.mubr.f32.gmra.mrb[0].mxu0 %v967
        %v1262 = vpop.f32.mrb[0].mxu0
        %v1263 = vadd.f32 0.0, %v1262
        %v1264 = vpop.f32.mrb[0].mxu0
        %v1265 = vadd.f32 0.0, %v1264
        %1266 = vmatprep.mubr.f32.mxu0 0.0
        %1267 = vmatmul.mubr.f32.gmra.mrb[0].mxu0 %v970
        %v1268 = vpop.f32.mrb[0].mxu0
        %v1269 = vadd.f32 0.0, %v1268
        %v1270 = vpop.f32.mrb[0].mxu0
        %v1271 = vadd.f32 0.0, %v1270
        %1272 = vdwg.mxu0
        %1273 = vmatprep.subr.mxu0 %v1143
        %1274 = vmatpush1.msra.mxu0 %v1142
        %1275 = vmatprep.subr.mxu0 %v1147
        %1276 = vmatpush1.msra.mxu0 %v1146
        %1277 = vmatprep.subr.mxu0 %v1151
        %1278 = vmatpush1.msra.mxu0 %v1150
        %1279 = vmatprep.subr.mxu0 %v1155
        %1280 = vmatpush1.msra.mxu0 %v1154
        %1281 = vmatprep.subr.mxu0 %v1159
        %1282 = vmatpush1.msra.mxu0 %v1158
        %1283 = vmatprep.subr.mxu0 %v1163
        %1284 = vmatpush1.msra.mxu0 %v1162
        %1285 = vmatprep.subr.mxu0 %v1167
        %1286 = vmatpush1.msra.mxu0 %v1166
        %1287 = vmatprep.subr.mxu0 %v1171
        %1288 = vmatpush1.msra.mxu0 %v1170
        %1289 = vmatprep.subr.mxu0 %v1175
        %1290 = vmatpush1.msra.mxu0 %v1174
        %1291 = vmatprep.subr.mxu0 %v1179
        %1292 = vmatpush1.msra.mxu0 %v1178
        %1293 = vmatprep.subr.mxu0 %v1194
        %1294 = vmatpush1.msra.mxu0 %v1191
        %1295 = vmatprep.subr.mxu0 0.0
        %1296 = vmatpush1.msra.mxu0 0.0
        %1297 = vmatprep.subr.mxu0 0.0
        %1298 = vmatpush1.msra.mxu0 0.0
        %1299 = vmatprep.subr.mxu0 0.0
        %1300 = vmatpush1.msra.mxu0 0.0
        %1301 = vmatprep.subr.mxu0 0.0
        %1302 = vmatpush1.msra.mxu0 0.0
        %1303 = vmatprep.subr.mxu0 0.0
        %1304 = vmatpush1.msra.mxu0 0.0
        %1305 = vmatprep.subr.mxu0 0.0
        %1306 = vmatpush1.msra.mxu0 0.0
        %1307 = vmatprep.subr.mxu0 0.0
        %1308 = vmatpush1.msra.mxu0 0.0
        %1309 = vmatprep.subr.mxu0 0.0
        %1310 = vmatpush1.msra.mxu0 0.0
        %1311 = vmatprep.subr.mxu0 0.0
        %1312 = vmatpush1.msra.mxu0 0.0
        %1313 = vmatprep.subr.mxu0 0.0
        %1314 = vmatpush1.msra.mxu0 0.0
        %1315 = vmatprep.subr.mxu0 0.0
        %1316 = vmatpush1.msra.mxu0 0.0
        %1317 = vmatprep.subr.mxu0 0.0
        %1318 = vmatpush1.msra.mxu0 0.0
        %1319 = vmatprep.subr.mxu0 0.0
        %1320 = vmatpush1.msra.mxu0 0.0
        %1321 = vmatprep.subr.mxu0 0.0
        %1322 = vmatpush1.msra.mxu0 0.0
        %1323 = vmatprep.subr.mxu0 0.0
        %1324 = vmatpush1.msra.mxu0 0.0
        %1325 = vmatprep.subr.mxu0 0.0
        %1326 = vmatpush1.msra.mxu0 0.0
        %1327 = vmatprep.subr.mxu0 0.0
        %1328 = vmatpush1.msra.mxu0 0.0
        %1329 = vmatprep.subr.mxu0 0.0
        %1330 = vmatpush1.msra.mxu0 0.0
        %1331 = vmatprep.subr.mxu0 0.0
        %1332 = vmatpush1.msra.mxu0 0.0
        %1333 = vmatprep.subr.mxu0 0.0
        %1334 = vmatpush1.msra.mxu0 0.0
        %1335 = vmatprep.subr.mxu0 0.0
        %1336 = vmatpush1.msra.mxu0 0.0
        %1337 = vmatprep.mubr.f32.mxu0 0.0
        %1338 = vmatmul.mubr.f32.gmra.mrb[0].mxu0 %v967
        %v1339 = vpop.f32.mrb[0].mxu0
        %v1340 = vadd.f32 0.0, %v1339
        %v1341 = vpop.f32.mrb[0].mxu0
        %v1342 = vadd.f32 0.0, %v1341
        %1343 = vmatprep.mubr.f32.mxu0 0.0
        %1344 = vmatmul.mubr.f32.gmra.mrb[0].mxu0 %v970
        %v1345 = vpop.f32.mrb[0].mxu0
        %v1346 = vadd.f32 0.0, %v1345
        %v1347 = vpop.f32.mrb[0].mxu0
        %v1348 = vadd.f32 0.0, %v1347
        %1349 = vdwg.mxu0
        %v1350 = vmax.f32 %v1052, %v1263
        %v1351 = vmax.f32 %v1054, %v1265
        %v1352 = vmax.f32 %v1129, %v1340
        %v1353 = vmax.f32 %v1131, %v1342
        %v1354 = vmax.f32 %v1058, %v1269
        %v1355 = vmax.f32 %v1060, %v1271
        %v1356 = vmax.f32 %v1135, %v1346
        %v1357 = vmax.f32 %v1137, %v1348
        %s1358 = scalar_lea.vmem %s892, 704 [#allocation2]
        %v1359 = vld [vmem:[%s1358] sm:$0xff]
        %v1360 = vld [vmem:[%s1358 + $0x8] sm:$0xff]
        %v1361 = vld [vmem:[%s1358 + $0x10] sm:$0xff]
        %v1362 = vld [vmem:[%s1358 + $0x18] sm:$0xff]
        %v1363 = vld [vmem:[%s1358 + $0x20] sm:$0xff]
        %v1364 = vld [vmem:[%s1358 + $0x28] sm:$0xff]
        %v1365 = vld [vmem:[%s1358 + $0x30] sm:$0xff]
        %v1366 = vld [vmem:[%s1358 + $0x38] sm:$0xff]
        %v1367 = vld [vmem:[%s1358 + $0x40] sm:$0xff]
        %v1368 = vld [vmem:[%s1358 + $0x48] sm:$0xff]
        %v1369 = vld [vmem:[%s1358 + $0x50] sm:$0xff]
        %v1370 = vld [vmem:[%s1358 + $0x58] sm:$0xff]
        %v1371 = vld [vmem:[%s1358 + $0x60] sm:$0xff]
        %v1372 = vld [vmem:[%s1358 + $0x68] sm:$0xff]
        %v1373 = vld [vmem:[%s1358 + $0x70] sm:$0xff]
        %v1374 = vld [vmem:[%s1358 + $0x78] sm:$0xff]
        %v1375 = vld [vmem:[%s1358 + $0x80] sm:$0xff]
        %v1376 = vld [vmem:[%s1358 + $0x88] sm:$0xff]
        %v1377 = vld [vmem:[%s1358 + $0x90] sm:$0xff]
        %v1378 = vld [vmem:[%s1358 + $0x98] sm:$0xff]
        %v1379 = vld [vmem:[%s1358 + $0xa0] sm:$0xff]
        %v1380 = vld [vmem:[%s1358 + $0xa8] sm:$0xff]
        %v1381 = vld [vmem:[%s1358 + $0xb0] sm:$0xff]
        %v1382 = vld [vmem:[%s1358 + $0xb8] sm:$0xff]
        %v1383 = vld [vmem:[%s1358 + $0xc0] sm:$0xff]
        %v1384 = vld [vmem:[%s1358 + $0xc8] sm:$0xff]
        %v1385 = vld [vmem:[%s1358 + $0xd0] sm:$0xff]
        %v1386 = vld [vmem:[%s1358 + $0xd8] sm:$0xff]
        %v1387 = vld [vmem:[%s1358 + $0xe0] sm:$0xff]
        %v1388 = vld [vmem:[%s1358 + $0xe8] sm:$0xff]
        %v1389 = vld [vmem:[%s1358 + $0xf0] sm:$0xff]
        %v1390 = vld [vmem:[%s1358 + $0xf8] sm:$0xff]
        %v1391 = vld [vmem:[%s1358 + $0x100] sm:$0xff]
        %v1392 = vld [vmem:[%s1358 + $0x108] sm:$0xff]
        %v1393 = vld [vmem:[%s1358 + $0x110] sm:$0xff]
        %v1394 = vld [vmem:[%s1358 + $0x118] sm:$0xff]
        %v1395 = vld [vmem:[%s1358 + $0x120] sm:$0xff]
        %v1396 = vld [vmem:[%s1358 + $0x128] sm:$0xff]
        %v1397 = vld [vmem:[%s1358 + $0x130] sm:$0xff]
        %v1398 = vld [vmem:[%s1358 + $0x138] sm:$0xff]
        %v1399 = vld [vmem:[%s1358 + $0x140] sm:$0x1]
        %v1400 = vld [vmem:[%s1358 + $0x148] sm:$0x1]
        %v1401 = vld [vmem:[%s1358 + $0x150] sm:$0x1]
        %v1402 = vld [vmem:[%s1358 + $0x158] sm:$0x1]
        %v1404 = vsel %vm972, %v1399, 0
        %v1407 = vsel %vm972, %v1400, 0
        %v1410 = vsel %vm972, %v1401, 0
        %v1413 = vsel %vm972, %v1402, 0
        %1415 = vmatprep.subr.mxu0 %v1360
        %1416 = vmatpush1.msra.mxu0 %v1359
        %1417 = vmatprep.subr.mxu0 %v1364
        %1418 = vmatpush1.msra.mxu0 %v1363
        %1419 = vmatprep.subr.mxu0 %v1368
        %1420 = vmatpush1.msra.mxu0 %v1367
        %1421 = vmatprep.subr.mxu0 %v1372
        %1422 = vmatpush1.msra.mxu0 %v1371
        %1423 = vmatprep.subr.mxu0 %v1376
        %1424 = vmatpush1.msra.mxu0 %v1375
        %1425 = vmatprep.subr.mxu0 %v1380
        %1426 = vmatpush1.msra.mxu0 %v1379
        %1427 = vmatprep.subr.mxu0 %v1384
        %1428 = vmatpush1.msra.mxu0 %v1383
        %1429 = vmatprep.subr.mxu0 %v1388
        %1430 = vmatpush1.msra.mxu0 %v1387
        %1431 = vmatprep.subr.mxu0 %v1392
        %1432 = vmatpush1.msra.mxu0 %v1391
        %1433 = vmatprep.subr.mxu0 %v1396
        %1434 = vmatpush1.msra.mxu0 %v1395
        %1435 = vmatprep.subr.mxu0 %v1407
        %1436 = vmatpush1.msra.mxu0 %v1404
        %1437 = vmatprep.subr.mxu0 0.0
        %1438 = vmatpush1.msra.mxu0 0.0
        %1439 = vmatprep.subr.mxu0 0.0
        %1440 = vmatpush1.msra.mxu0 0.0
        %1441 = vmatprep.subr.mxu0 0.0
        %1442 = vmatpush1.msra.mxu0 0.0
        %1443 = vmatprep.subr.mxu0 0.0
        %1444 = vmatpush1.msra.mxu0 0.0
        %1445 = vmatprep.subr.mxu0 0.0
        %1446 = vmatpush1.msra.mxu0 0.0
        %1447 = vmatprep.subr.mxu0 0.0
        %1448 = vmatpush1.msra.mxu0 0.0
        %1449 = vmatprep.subr.mxu0 0.0
        %1450 = vmatpush1.msra.mxu0 0.0
        %1451 = vmatprep.subr.mxu0 0.0
        %1452 = vmatpush1.msra.mxu0 0.0
        %1453 = vmatprep.subr.mxu0 0.0
        %1454 = vmatpush1.msra.mxu0 0.0
        %1455 = vmatprep.subr.mxu0 0.0
        %1456 = vmatpush1.msra.mxu0 0.0
        %1457 = vmatprep.subr.mxu0 0.0
        %1458 = vmatpush1.msra.mxu0 0.0
        %1459 = vmatprep.subr.mxu0 0.0
        %1460 = vmatpush1.msra.mxu0 0.0
        %1461 = vmatprep.subr.mxu0 0.0
        %1462 = vmatpush1.msra.mxu0 0.0
        %1463 = vmatprep.subr.mxu0 0.0
        %1464 = vmatpush1.msra.mxu0 0.0
        %1465 = vmatprep.subr.mxu0 0.0
        %1466 = vmatpush1.msra.mxu0 0.0
        %1467 = vmatprep.subr.mxu0 0.0
        %1468 = vmatpush1.msra.mxu0 0.0
        %1469 = vmatprep.subr.mxu0 0.0
        %1470 = vmatpush1.msra.mxu0 0.0
        %1471 = vmatprep.subr.mxu0 0.0
        %1472 = vmatpush1.msra.mxu0 0.0
        %1473 = vmatprep.subr.mxu0 0.0
        %1474 = vmatpush1.msra.mxu0 0.0
        %1475 = vmatprep.subr.mxu0 0.0
        %1476 = vmatpush1.msra.mxu0 0.0
        %1477 = vmatprep.subr.mxu0 0.0
        %1478 = vmatpush1.msra.mxu0 0.0
        %1479 = vmatprep.mubr.f32.mxu0 0.0
        %1480 = vmatmul.mubr.f32.gmra.mrb[0].mxu0 %v967
        %v1481 = vpop.f32.mrb[0].mxu0
        %v1482 = vadd.f32 0.0, %v1481
        %v1483 = vpop.f32.mrb[0].mxu0
        %v1484 = vadd.f32 0.0, %v1483
        %1485 = vmatprep.mubr.f32.mxu0 0.0
        %1486 = vmatmul.mubr.f32.gmra.mrb[0].mxu0 %v970
        %v1487 = vpop.f32.mrb[0].mxu0
        %v1488 = vadd.f32 0.0, %v1487
        %v1489 = vpop.f32.mrb[0].mxu0
        %v1490 = vadd.f32 0.0, %v1489
        %1491 = vdwg.mxu0
        %1492 = vmatprep.subr.mxu0 %v1362
        %1493 = vmatpush1.msra.mxu0 %v1361
        %1494 = vmatprep.subr.mxu0 %v1366
        %1495 = vmatpush1.msra.mxu0 %v1365
        %1496 = vmatprep.subr.mxu0 %v1370
        %1497 = vmatpush1.msra.mxu0 %v1369
        %1498 = vmatprep.subr.mxu0 %v1374
        %1499 = vmatpush1.msra.mxu0 %v1373
        %1500 = vmatprep.subr.mxu0 %v1378
        %1501 = vmatpush1.msra.mxu0 %v1377
        %1502 = vmatprep.subr.mxu0 %v1382
        %1503 = vmatpush1.msra.mxu0 %v1381
        %1504 = vmatprep.subr.mxu0 %v1386
        %1505 = vmatpush1.msra.mxu0 %v1385
        %1506 = vmatprep.subr.mxu0 %v1390
        %1507 = vmatpush1.msra.mxu0 %v1389
        %1508 = vmatprep.subr.mxu0 %v1394
        %1509 = vmatpush1.msra.mxu0 %v1393
        %1510 = vmatprep.subr.mxu0 %v1398
        %1511 = vmatpush1.msra.mxu0 %v1397
        %1512 = vmatprep.subr.mxu0 %v1413
        %1513 = vmatpush1.msra.mxu0 %v1410
        %1514 = vmatprep.subr.mxu0 0.0
        %1515 = vmatpush1.msra.mxu0 0.0
        %1516 = vmatprep.subr.mxu0 0.0
        %1517 = vmatpush1.msra.mxu0 0.0
        %1518 = vmatprep.subr.mxu0 0.0
        %1519 = vmatpush1.msra.mxu0 0.0
        %1520 = vmatprep.subr.mxu0 0.0
        %1521 = vmatpush1.msra.mxu0 0.0
        %1522 = vmatprep.subr.mxu0 0.0
        %1523 = vmatpush1.msra.mxu0 0.0
        %1524 = vmatprep.subr.mxu0 0.0
        %1525 = vmatpush1.msra.mxu0 0.0
        %1526 = vmatprep.subr.mxu0 0.0
        %1527 = vmatpush1.msra.mxu0 0.0
        %1528 = vmatprep.subr.mxu0 0.0
        %1529 = vmatpush1.msra.mxu0 0.0
        %1530 = vmatprep.subr.mxu0 0.0
        %1531 = vmatpush1.msra.mxu0 0.0
        %1532 = vmatprep.subr.mxu0 0.0
        %1533 = vmatpush1.msra.mxu0 0.0
        %1534 = vmatprep.subr.mxu0 0.0
        %1535 = vmatpush1.msra.mxu0 0.0
        %1536 = vmatprep.subr.mxu0 0.0
        %1537 = vmatpush1.msra.mxu0 0.0
        %1538 = vmatprep.subr.mxu0 0.0
        %1539 = vmatpush1.msra.mxu0 0.0
        %1540 = vmatprep.subr.mxu0 0.0
        %1541 = vmatpush1.msra.mxu0 0.0
        %1542 = vmatprep.subr.mxu0 0.0
        %1543 = vmatpush1.msra.mxu0 0.0
        %1544 = vmatprep.subr.mxu0 0.0
        %1545 = vmatpush1.msra.mxu0 0.0
        %1546 = vmatprep.subr.mxu0 0.0
        %1547 = vmatpush1.msra.mxu0 0.0
        %1548 = vmatprep.subr.mxu0 0.0
        %1549 = vmatpush1.msra.mxu0 0.0
        %1550 = vmatprep.subr.mxu0 0.0
        %1551 = vmatpush1.msra.mxu0 0.0
        %1552 = vmatprep.subr.mxu0 0.0
        %1553 = vmatpush1.msra.mxu0 0.0
        %1554 = vmatprep.subr.mxu0 0.0
        %1555 = vmatpush1.msra.mxu0 0.0
        %1556 = vmatprep.mubr.f32.mxu0 0.0
        %1557 = vmatmul.mubr.f32.gmra.mrb[0].mxu0 %v967
        %v1558 = vpop.f32.mrb[0].mxu0
        %v1559 = vadd.f32 0.0, %v1558
        %v1560 = vpop.f32.mrb[0].mxu0
        %v1561 = vadd.f32 0.0, %v1560
        %1562 = vmatprep.mubr.f32.mxu0 0.0
        %1563 = vmatmul.mubr.f32.gmra.mrb[0].mxu0 %v970
        %v1564 = vpop.f32.mrb[0].mxu0
        %v1565 = vadd.f32 0.0, %v1564
        %v1566 = vpop.f32.mrb[0].mxu0
        %v1567 = vadd.f32 0.0, %v1566
        %1568 = vdwg.mxu0
        %v1569 = vmax.f32 %v1350, %v1482
        %v1570 = vmax.f32 %v1351, %v1484
        %v1571 = vmax.f32 %v1352, %v1559
        %v1572 = vmax.f32 %v1353, %v1561
        %v1573 = vmax.f32 %v1354, %v1488
        %v1574 = vmax.f32 %v1355, %v1490
        %v1575 = vmax.f32 %v1356, %v1565
        %v1576 = vmax.f32 %v1357, %v1567
        %s1577 = scalar_lea.vmem %s892, 1056 [#allocation2]
        %v1578 = vld [vmem:[%s1577] sm:$0xff]
        %v1579 = vld [vmem:[%s1577 + $0x8] sm:$0xff]
        %v1580 = vld [vmem:[%s1577 + $0x10] sm:$0xff]
        %v1581 = vld [vmem:[%s1577 + $0x18] sm:$0xff]
        %v1582 = vld [vmem:[%s1577 + $0x20] sm:$0xff]
        %v1583 = vld [vmem:[%s1577 + $0x28] sm:$0xff]
        %v1584 = vld [vmem:[%s1577 + $0x30] sm:$0xff]
        %v1585 = vld [vmem:[%s1577 + $0x38] sm:$0xff]
        %v1586 = vld [vmem:[%s1577 + $0x40] sm:$0xff]
        %v1587 = vld [vmem:[%s1577 + $0x48] sm:$0xff]
        %v1588 = vld [vmem:[%s1577 + $0x50] sm:$0xff]
        %v1589 = vld [vmem:[%s1577 + $0x58] sm:$0xff]
        %v1590 = vld [vmem:[%s1577 + $0x60] sm:$0xff]
        %v1591 = vld [vmem:[%s1577 + $0x68] sm:$0xff]
        %v1592 = vld [vmem:[%s1577 + $0x70] sm:$0xff]
        %v1593 = vld [vmem:[%s1577 + $0x78] sm:$0xff]
        %v1594 = vld [vmem:[%s1577 + $0x80] sm:$0xff]
        %v1595 = vld [vmem:[%s1577 + $0x88] sm:$0xff]
        %v1596 = vld [vmem:[%s1577 + $0x90] sm:$0xff]
        %v1597 = vld [vmem:[%s1577 + $0x98] sm:$0xff]
        %v1598 = vld [vmem:[%s1577 + $0xa0] sm:$0xff]
        %v1599 = vld [vmem:[%s1577 + $0xa8] sm:$0xff]
        %v1600 = vld [vmem:[%s1577 + $0xb0] sm:$0xff]
        %v1601 = vld [vmem:[%s1577 + $0xb8] sm:$0xff]
        %v1602 = vld [vmem:[%s1577 + $0xc0] sm:$0xff]
        %v1603 = vld [vmem:[%s1577 + $0xc8] sm:$0xff]
        %v1604 = vld [vmem:[%s1577 + $0xd0] sm:$0xff]
        %v1605 = vld [vmem:[%s1577 + $0xd8] sm:$0xff]
        %v1606 = vld [vmem:[%s1577 + $0xe0] sm:$0xff]
        %v1607 = vld [vmem:[%s1577 + $0xe8] sm:$0xff]
        %v1608 = vld [vmem:[%s1577 + $0xf0] sm:$0xff]
        %v1609 = vld [vmem:[%s1577 + $0xf8] sm:$0xff]
        %v1610 = vld [vmem:[%s1577 + $0x100] sm:$0xff]
        %v1611 = vld [vmem:[%s1577 + $0x108] sm:$0xff]
        %v1612 = vld [vmem:[%s1577 + $0x110] sm:$0xff]
        %v1613 = vld [vmem:[%s1577 + $0x118] sm:$0xff]
        %v1614 = vld [vmem:[%s1577 + $0x120] sm:$0xff]
        %v1615 = vld [vmem:[%s1577 + $0x128] sm:$0xff]
        %v1616 = vld [vmem:[%s1577 + $0x130] sm:$0xff]
        %v1617 = vld [vmem:[%s1577 + $0x138] sm:$0xff]
        %v1618 = vld [vmem:[%s1577 + $0x140] sm:$0x1]
        %v1619 = vld [vmem:[%s1577 + $0x148] sm:$0x1]
        %v1620 = vld [vmem:[%s1577 + $0x150] sm:$0x1]
        %v1621 = vld [vmem:[%s1577 + $0x158] sm:$0x1]
        %v1623 = vsel %vm972, %v1618, 0
        %v1626 = vsel %vm972, %v1619, 0
        %v1629 = vsel %vm972, %v1620, 0
        %v1632 = vsel %vm972, %v1621, 0
        %1634 = vmatprep.subr.mxu0 %v1579
        %1635 = vmatpush1.msra.mxu0 %v1578
        %1636 = vmatprep.subr.mxu0 %v1583
        %1637 = vmatpush1.msra.mxu0 %v1582
        %1638 = vmatprep.subr.mxu0 %v1587
        %1639 = vmatpush1.msra.mxu0 %v1586
        %1640 = vmatprep.subr.mxu0 %v1591
        %1641 = vmatpush1.msra.mxu0 %v1590
        %1642 = vmatprep.subr.mxu0 %v1595
        %1643 = vmatpush1.msra.mxu0 %v1594
        %1644 = vmatprep.subr.mxu0 %v1599
        %1645 = vmatpush1.msra.mxu0 %v1598
        %1646 = vmatprep.subr.mxu0 %v1603
        %1647 = vmatpush1.msra.mxu0 %v1602
        %1648 = vmatprep.subr.mxu0 %v1607
        %1649 = vmatpush1.msra.mxu0 %v1606
        %1650 = vmatprep.subr.mxu0 %v1611
        %1651 = vmatpush1.msra.mxu0 %v1610
        %1652 = vmatprep.subr.mxu0 %v1615
        %1653 = vmatpush1.msra.mxu0 %v1614
        %1654 = vmatprep.subr.mxu0 %v1626
        %1655 = vmatpush1.msra.mxu0 %v1623
        %1656 = vmatprep.subr.mxu0 0.0
        %1657 = vmatpush1.msra.mxu0 0.0
        %1658 = vmatprep.subr.mxu0 0.0
        %1659 = vmatpush1.msra.mxu0 0.0
        %1660 = vmatprep.subr.mxu0 0.0
        %1661 = vmatpush1.msra.mxu0 0.0
        %1662 = vmatprep.subr.mxu0 0.0
        %1663 = vmatpush1.msra.mxu0 0.0
        %1664 = vmatprep.subr.mxu0 0.0
        %1665 = vmatpush1.msra.mxu0 0.0
        %1666 = vmatprep.subr.mxu0 0.0
        %1667 = vmatpush1.msra.mxu0 0.0
        %1668 = vmatprep.subr.mxu0 0.0
        %1669 = vmatpush1.msra.mxu0 0.0
        %1670 = vmatprep.subr.mxu0 0.0
        %1671 = vmatpush1.msra.mxu0 0.0
        %1672 = vmatprep.subr.mxu0 0.0
        %1673 = vmatpush1.msra.mxu0 0.0
        %1674 = vmatprep.subr.mxu0 0.0
        %1675 = vmatpush1.msra.mxu0 0.0
        %1676 = vmatprep.subr.mxu0 0.0
        %1677 = vmatpush1.msra.mxu0 0.0
        %1678 = vmatprep.subr.mxu0 0.0
        %1679 = vmatpush1.msra.mxu0 0.0
        %1680 = vmatprep.subr.mxu0 0.0
        %1681 = vmatpush1.msra.mxu0 0.0
        %1682 = vmatprep.subr.mxu0 0.0
        %1683 = vmatpush1.msra.mxu0 0.0
        %1684 = vmatprep.subr.mxu0 0.0
        %1685 = vmatpush1.msra.mxu0 0.0
        %1686 = vmatprep.subr.mxu0 0.0
        %1687 = vmatpush1.msra.mxu0 0.0
        %1688 = vmatprep.subr.mxu0 0.0
        %1689 = vmatpush1.msra.mxu0 0.0
        %1690 = vmatprep.subr.mxu0 0.0
        %1691 = vmatpush1.msra.mxu0 0.0
        %1692 = vmatprep.subr.mxu0 0.0
        %1693 = vmatpush1.msra.mxu0 0.0
        %1694 = vmatprep.subr.mxu0 0.0
        %1695 = vmatpush1.msra.mxu0 0.0
        %1696 = vmatprep.subr.mxu0 0.0
        %1697 = vmatpush1.msra.mxu0 0.0
        %1698 = vmatprep.mubr.f32.mxu0 0.0
        %1699 = vmatmul.mubr.f32.gmra.mrb[0].mxu0 %v967
        %v1700 = vpop.f32.mrb[0].mxu0
        %v1701 = vadd.f32 0.0, %v1700
        %v1702 = vpop.f32.mrb[0].mxu0
        %v1703 = vadd.f32 0.0, %v1702
        %1704 = vmatprep.mubr.f32.mxu0 0.0
        %1705 = vmatmul.mubr.f32.gmra.mrb[0].mxu0 %v970
        %v1706 = vpop.f32.mrb[0].mxu0
        %v1707 = vadd.f32 0.0, %v1706
        %v1708 = vpop.f32.mrb[0].mxu0
        %v1709 = vadd.f32 0.0, %v1708
        %1710 = vdwg.mxu0
        %1711 = vmatprep.subr.mxu0 %v1581
        %1712 = vmatpush1.msra.mxu0 %v1580
        %1713 = vmatprep.subr.mxu0 %v1585
        %1714 = vmatpush1.msra.mxu0 %v1584
        %1715 = vmatprep.subr.mxu0 %v1589
        %1716 = vmatpush1.msra.mxu0 %v1588
        %1717 = vmatprep.subr.mxu0 %v1593
        %1718 = vmatpush1.msra.mxu0 %v1592
        %1719 = vmatprep.subr.mxu0 %v1597
        %1720 = vmatpush1.msra.mxu0 %v1596
        %1721 = vmatprep.subr.mxu0 %v1601
        %1722 = vmatpush1.msra.mxu0 %v1600
        %1723 = vmatprep.subr.mxu0 %v1605
        %1724 = vmatpush1.msra.mxu0 %v1604
        %1725 = vmatprep.subr.mxu0 %v1609
        %1726 = vmatpush1.msra.mxu0 %v1608
        %1727 = vmatprep.subr.mxu0 %v1613
        %1728 = vmatpush1.msra.mxu0 %v1612
        %1729 = vmatprep.subr.mxu0 %v1617
        %1730 = vmatpush1.msra.mxu0 %v1616
        %1731 = vmatprep.subr.mxu0 %v1632
        %1732 = vmatpush1.msra.mxu0 %v1629
        %1733 = vmatprep.subr.mxu0 0.0
        %1734 = vmatpush1.msra.mxu0 0.0
        %1735 = vmatprep.subr.mxu0 0.0
        %1736 = vmatpush1.msra.mxu0 0.0
        %1737 = vmatprep.subr.mxu0 0.0
        %1738 = vmatpush1.msra.mxu0 0.0
        %1739 = vmatprep.subr.mxu0 0.0
        %1740 = vmatpush1.msra.mxu0 0.0
        %1741 = vmatprep.subr.mxu0 0.0
        %1742 = vmatpush1.msra.mxu0 0.0
        %1743 = vmatprep.subr.mxu0 0.0
        %1744 = vmatpush1.msra.mxu0 0.0
        %1745 = vmatprep.subr.mxu0 0.0
        %1746 = vmatpush1.msra.mxu0 0.0
        %1747 = vmatprep.subr.mxu0 0.0
        %1748 = vmatpush1.msra.mxu0 0.0
        %1749 = vmatprep.subr.mxu0 0.0
        %1750 = vmatpush1.msra.mxu0 0.0
        %1751 = vmatprep.subr.mxu0 0.0
        %1752 = vmatpush1.msra.mxu0 0.0
        %1753 = vmatprep.subr.mxu0 0.0
        %1754 = vmatpush1.msra.mxu0 0.0
        %1755 = vmatprep.subr.mxu0 0.0
        %1756 = vmatpush1.msra.mxu0 0.0
        %1757 = vmatprep.subr.mxu0 0.0
        %1758 = vmatpush1.msra.mxu0 0.0
        %1759 = vmatprep.subr.mxu0 0.0
        %1760 = vmatpush1.msra.mxu0 0.0
        %1761 = vmatprep.subr.mxu0 0.0
        %1762 = vmatpush1.msra.mxu0 0.0
        %1763 = vmatprep.subr.mxu0 0.0
        %1764 = vmatpush1.msra.mxu0 0.0
        %1765 = vmatprep.subr.mxu0 0.0
        %1766 = vmatpush1.msra.mxu0 0.0
        %1767 = vmatprep.subr.mxu0 0.0
        %1768 = vmatpush1.msra.mxu0 0.0
        %1769 = vmatprep.subr.mxu0 0.0
        %1770 = vmatpush1.msra.mxu0 0.0
        %1771 = vmatprep.subr.mxu0 0.0
        %1772 = vmatpush1.msra.mxu0 0.0
        %1773 = vmatprep.subr.mxu0 0.0
        %1774 = vmatpush1.msra.mxu0 0.0
        %1775 = vmatprep.mubr.f32.mxu0 0.0
        %1776 = vmatmul.mubr.f32.gmra.mrb[0].mxu0 %v967
        %v1777 = vpop.f32.mrb[0].mxu0
        %v1778 = vadd.f32 0.0, %v1777
        %v1779 = vpop.f32.mrb[0].mxu0
        %v1780 = vadd.f32 0.0, %v1779
        %1781 = vmatprep.mubr.f32.mxu0 0.0
        %1782 = vmatmul.mubr.f32.gmra.mrb[0].mxu0 %v970
        %v1783 = vpop.f32.mrb[0].mxu0
        %v1784 = vadd.f32 0.0, %v1783
        %v1785 = vpop.f32.mrb[0].mxu0
        %v1786 = vadd.f32 0.0, %v1785
        %1787 = vdwg.mxu0
        %v1788 = vmax.f32 %v1569, %v1701
        %v1789 = vmax.f32 %v1570, %v1703
        %v1790 = vmax.f32 %v1571, %v1778
        %v1791 = vmax.f32 %v1572, %v1780
        %v1792 = vmax.f32 %v1573, %v1707
        %v1793 = vmax.f32 %v1574, %v1709
        %v1794 = vmax.f32 %v1575, %v1784
        %v1795 = vmax.f32 %v1576, %v1786
        %s1796 = scalar_lea.vmem %s892, 1408 [#allocation2]
        %v1797 = vld [vmem:[%s1796] sm:$0xff]
        %v1798 = vld [vmem:[%s1796 + $0x8] sm:$0xff]
        %v1799 = vld [vmem:[%s1796 + $0x10] sm:$0xff]
        %v1800 = vld [vmem:[%s1796 + $0x18] sm:$0xff]
        %v1801 = vld [vmem:[%s1796 + $0x20] sm:$0xff]
        %v1802 = vld [vmem:[%s1796 + $0x28] sm:$0xff]
        %v1803 = vld [vmem:[%s1796 + $0x30] sm:$0xff]
        %v1804 = vld [vmem:[%s1796 + $0x38] sm:$0xff]
        %v1805 = vld [vmem:[%s1796 + $0x40] sm:$0xff]
        %v1806 = vld [vmem:[%s1796 + $0x48] sm:$0xff]
        %v1807 = vld [vmem:[%s1796 + $0x50] sm:$0xff]
        %v1808 = vld [vmem:[%s1796 + $0x58] sm:$0xff]
        %v1809 = vld [vmem:[%s1796 + $0x60] sm:$0xff]
        %v1810 = vld [vmem:[%s1796 + $0x68] sm:$0xff]
        %v1811 = vld [vmem:[%s1796 + $0x70] sm:$0xff]
        %v1812 = vld [vmem:[%s1796 + $0x78] sm:$0xff]
        %v1813 = vld [vmem:[%s1796 + $0x80] sm:$0xff]
        %v1814 = vld [vmem:[%s1796 + $0x88] sm:$0xff]
        %v1815 = vld [vmem:[%s1796 + $0x90] sm:$0xff]
        %v1816 = vld [vmem:[%s1796 + $0x98] sm:$0xff]
        %v1817 = vld [vmem:[%s1796 + $0xa0] sm:$0xff]
        %v1818 = vld [vmem:[%s1796 + $0xa8] sm:$0xff]
        %v1819 = vld [vmem:[%s1796 + $0xb0] sm:$0xff]
        %v1820 = vld [vmem:[%s1796 + $0xb8] sm:$0xff]
        %v1821 = vld [vmem:[%s1796 + $0xc0] sm:$0xff]
        %v1822 = vld [vmem:[%s1796 + $0xc8] sm:$0xff]
        %v1823 = vld [vmem:[%s1796 + $0xd0] sm:$0xff]
        %v1824 = vld [vmem:[%s1796 + $0xd8] sm:$0xff]
        %v1825 = vld [vmem:[%s1796 + $0xe0] sm:$0xff]
        %v1826 = vld [vmem:[%s1796 + $0xe8] sm:$0xff]
        %v1827 = vld [vmem:[%s1796 + $0xf0] sm:$0xff]
        %v1828 = vld [vmem:[%s1796 + $0xf8] sm:$0xff]
        %v1829 = vld [vmem:[%s1796 + $0x100] sm:$0xff]
        %v1830 = vld [vmem:[%s1796 + $0x108] sm:$0xff]
        %v1831 = vld [vmem:[%s1796 + $0x110] sm:$0xff]
        %v1832 = vld [vmem:[%s1796 + $0x118] sm:$0xff]
        %v1833 = vld [vmem:[%s1796 + $0x120] sm:$0xff]
        %v1834 = vld [vmem:[%s1796 + $0x128] sm:$0xff]
        %v1835 = vld [vmem:[%s1796 + $0x130] sm:$0xff]
        %v1836 = vld [vmem:[%s1796 + $0x138] sm:$0xff]
        %v1837 = vld [vmem:[%s1796 + $0x140] sm:$0x1]
        %v1838 = vld [vmem:[%s1796 + $0x148] sm:$0x1]
        %v1839 = vld [vmem:[%s1796 + $0x150] sm:$0x1]
        %v1840 = vld [vmem:[%s1796 + $0x158] sm:$0x1]
        %v1842 = vsel %vm972, %v1837, 0
        %v1845 = vsel %vm972, %v1838, 0
        %v1848 = vsel %vm972, %v1839, 0
        %v1851 = vsel %vm972, %v1840, 0
        %1853 = vmatprep.subr.mxu0 %v1798
        %1854 = vmatpush1.msra.mxu0 %v1797
        %1855 = vmatprep.subr.mxu0 %v1802
        %1856 = vmatpush1.msra.mxu0 %v1801
        %1857 = vmatprep.subr.mxu0 %v1806
        %1858 = vmatpush1.msra.mxu0 %v1805
        %1859 = vmatprep.subr.mxu0 %v1810
        %1860 = vmatpush1.msra.mxu0 %v1809
        %1861 = vmatprep.subr.mxu0 %v1814
        %1862 = vmatpush1.msra.mxu0 %v1813
        %1863 = vmatprep.subr.mxu0 %v1818
        %1864 = vmatpush1.msra.mxu0 %v1817
        %1865 = vmatprep.subr.mxu0 %v1822
        %1866 = vmatpush1.msra.mxu0 %v1821
        %1867 = vmatprep.subr.mxu0 %v1826
        %1868 = vmatpush1.msra.mxu0 %v1825
        %1869 = vmatprep.subr.mxu0 %v1830
        %1870 = vmatpush1.msra.mxu0 %v1829
        %1871 = vmatprep.subr.mxu0 %v1834
        %1872 = vmatpush1.msra.mxu0 %v1833
        %1873 = vmatprep.subr.mxu0 %v1845
        %1874 = vmatpush1.msra.mxu0 %v1842
        %1875 = vmatprep.subr.mxu0 0.0
        %1876 = vmatpush1.msra.mxu0 0.0
        %1877 = vmatprep.subr.mxu0 0.0
        %1878 = vmatpush1.msra.mxu0 0.0
        %1879 = vmatprep.subr.mxu0 0.0
        %1880 = vmatpush1.msra.mxu0 0.0
        %1881 = vmatprep.subr.mxu0 0.0
        %1882 = vmatpush1.msra.mxu0 0.0
        %1883 = vmatprep.subr.mxu0 0.0
        %1884 = vmatpush1.msra.mxu0 0.0
        %1885 = vmatprep.subr.mxu0 0.0
        %1886 = vmatpush1.msra.mxu0 0.0
        %1887 = vmatprep.subr.mxu0 0.0
        %1888 = vmatpush1.msra.mxu0 0.0
        %1889 = vmatprep.subr.mxu0 0.0
        %1890 = vmatpush1.msra.mxu0 0.0
        %1891 = vmatprep.subr.mxu0 0.0
        %1892 = vmatpush1.msra.mxu0 0.0
        %1893 = vmatprep.subr.mxu0 0.0
        %1894 = vmatpush1.msra.mxu0 0.0
        %1895 = vmatprep.subr.mxu0 0.0
        %1896 = vmatpush1.msra.mxu0 0.0
        %1897 = vmatprep.subr.mxu0 0.0
        %1898 = vmatpush1.msra.mxu0 0.0
        %1899 = vmatprep.subr.mxu0 0.0
        %1900 = vmatpush1.msra.mxu0 0.0
        %1901 = vmatprep.subr.mxu0 0.0
        %1902 = vmatpush1.msra.mxu0 0.0
        %1903 = vmatprep.subr.mxu0 0.0
        %1904 = vmatpush1.msra.mxu0 0.0
        %1905 = vmatprep.subr.mxu0 0.0
        %1906 = vmatpush1.msra.mxu0 0.0
        %1907 = vmatprep.subr.mxu0 0.0
        %1908 = vmatpush1.msra.mxu0 0.0
        %1909 = vmatprep.subr.mxu0 0.0
        %1910 = vmatpush1.msra.mxu0 0.0
        %1911 = vmatprep.subr.mxu0 0.0
        %1912 = vmatpush1.msra.mxu0 0.0
        %1913 = vmatprep.subr.mxu0 0.0
        %1914 = vmatpush1.msra.mxu0 0.0
        %1915 = vmatprep.subr.mxu0 0.0
        %1916 = vmatpush1.msra.mxu0 0.0
        %1917 = vmatprep.mubr.f32.mxu0 0.0
        %1918 = vmatmul.mubr.f32.gmra.mrb[0].mxu0 %v967
        %v1919 = vpop.f32.mrb[0].mxu0
        %v1920 = vadd.f32 0.0, %v1919
        %v1921 = vpop.f32.mrb[0].mxu0
        %v1922 = vadd.f32 0.0, %v1921
        %1923 = vmatprep.mubr.f32.mxu0 0.0
        %1924 = vmatmul.mubr.f32.gmra.mrb[0].mxu0 %v970
        %v1925 = vpop.f32.mrb[0].mxu0
        %v1926 = vadd.f32 0.0, %v1925
        %v1927 = vpop.f32.mrb[0].mxu0
        %v1928 = vadd.f32 0.0, %v1927
        %1929 = vdwg.mxu0
        %1930 = vmatprep.subr.mxu0 %v1800
        %1931 = vmatpush1.msra.mxu0 %v1799
        %1932 = vmatprep.subr.mxu0 %v1804
        %1933 = vmatpush1.msra.mxu0 %v1803
        %1934 = vmatprep.subr.mxu0 %v1808
        %1935 = vmatpush1.msra.mxu0 %v1807
        %1936 = vmatprep.subr.mxu0 %v1812
        %1937 = vmatpush1.msra.mxu0 %v1811
        %1938 = vmatprep.subr.mxu0 %v1816
        %1939 = vmatpush1.msra.mxu0 %v1815
        %1940 = vmatprep.subr.mxu0 %v1820
        %1941 = vmatpush1.msra.mxu0 %v1819
        %1942 = vmatprep.subr.mxu0 %v1824
        %1943 = vmatpush1.msra.mxu0 %v1823
        %1944 = vmatprep.subr.mxu0 %v1828
        %1945 = vmatpush1.msra.mxu0 %v1827
        %1946 = vmatprep.subr.mxu0 %v1832
        %1947 = vmatpush1.msra.mxu0 %v1831
        %1948 = vmatprep.subr.mxu0 %v1836
        %1949 = vmatpush1.msra.mxu0 %v1835
        %1950 = vmatprep.subr.mxu0 %v1851
        %1951 = vmatpush1.msra.mxu0 %v1848
        %1952 = vmatprep.subr.mxu0 0.0
        %1953 = vmatpush1.msra.mxu0 0.0
        %1954 = vmatprep.subr.mxu0 0.0
        %1955 = vmatpush1.msra.mxu0 0.0
        %1956 = vmatprep.subr.mxu0 0.0
        %1957 = vmatpush1.msra.mxu0 0.0
        %1958 = vmatprep.subr.mxu0 0.0
        %1959 = vmatpush1.msra.mxu0 0.0
        %1960 = vmatprep.subr.mxu0 0.0
        %1961 = vmatpush1.msra.mxu0 0.0
        %1962 = vmatprep.subr.mxu0 0.0
        %1963 = vmatpush1.msra.mxu0 0.0
        %1964 = vmatprep.subr.mxu0 0.0
        %1965 = vmatpush1.msra.mxu0 0.0
        %1966 = vmatprep.subr.mxu0 0.0
        %1967 = vmatpush1.msra.mxu0 0.0
        %1968 = vmatprep.subr.mxu0 0.0
        %1969 = vmatpush1.msra.mxu0 0.0
        %1970 = vmatprep.subr.mxu0 0.0
        %1971 = vmatpush1.msra.mxu0 0.0
        %1972 = vmatprep.subr.mxu0 0.0
        %1973 = vmatpush1.msra.mxu0 0.0
        %1974 = vmatprep.subr.mxu0 0.0
        %1975 = vmatpush1.msra.mxu0 0.0
        %1976 = vmatprep.subr.mxu0 0.0
        %1977 = vmatpush1.msra.mxu0 0.0
        %1978 = vmatprep.subr.mxu0 0.0
        %1979 = vmatpush1.msra.mxu0 0.0
        %1980 = vmatprep.subr.mxu0 0.0
        %1981 = vmatpush1.msra.mxu0 0.0
        %1982 = vmatprep.subr.mxu0 0.0
        %1983 = vmatpush1.msra.mxu0 0.0
        %1984 = vmatprep.subr.mxu0 0.0
        %1985 = vmatpush1.msra.mxu0 0.0
        %1986 = vmatprep.subr.mxu0 0.0
        %1987 = vmatpush1.msra.mxu0 0.0
        %1988 = vmatprep.subr.mxu0 0.0
        %1989 = vmatpush1.msra.mxu0 0.0
        %1990 = vmatprep.subr.mxu0 0.0
        %1991 = vmatpush1.msra.mxu0 0.0
        %1992 = vmatprep.subr.mxu0 0.0
        %1993 = vmatpush1.msra.mxu0 0.0
        %1994 = vmatprep.mubr.f32.mxu0 0.0
        %1995 = vmatmul.mubr.f32.gmra.mrb[0].mxu0 %v967
        %v1996 = vpop.f32.mrb[0].mxu0
        %v1997 = vadd.f32 0.0, %v1996
        %v1998 = vpop.f32.mrb[0].mxu0
        %v1999 = vadd.f32 0.0, %v1998
        %2000 = vmatprep.mubr.f32.mxu0 0.0
        %2001 = vmatmul.mubr.f32.gmra.mrb[0].mxu0 %v970
        %v2002 = vpop.f32.mrb[0].mxu0
        %v2003 = vadd.f32 0.0, %v2002
        %v2004 = vpop.f32.mrb[0].mxu0
        %v2005 = vadd.f32 0.0, %v2004
        %2006 = vdwg.mxu0
        %v2007 = vmax.f32 %v1788, %v1920
        %v2008 = vmax.f32 %v1789, %v1922
        %v2009 = vmax.f32 %v1790, %v1997
        %v2010 = vmax.f32 %v1791, %v1999
        %v2011 = vmax.f32 %v1792, %v1926
        %v2012 = vmax.f32 %v1793, %v1928
        %v2013 = vmax.f32 %v1794, %v2003
        %v2014 = vmax.f32 %v1795, %v2005
        %s2015 = scalar_lea.vmem %s892, 1760 [#allocation2]
        %v2016 = vld [vmem:[%s2015] sm:$0xff]
        %v2017 = vld [vmem:[%s2015 + $0x8] sm:$0xff]
        %v2018 = vld [vmem:[%s2015 + $0x10] sm:$0xff]
        %v2019 = vld [vmem:[%s2015 + $0x18] sm:$0xff]
        %v2020 = vld [vmem:[%s2015 + $0x20] sm:$0xff]
        %v2021 = vld [vmem:[%s2015 + $0x28] sm:$0xff]
        %v2022 = vld [vmem:[%s2015 + $0x30] sm:$0xff]
        %v2023 = vld [vmem:[%s2015 + $0x38] sm:$0xff]
        %v2024 = vld [vmem:[%s2015 + $0x40] sm:$0xff]
        %v2025 = vld [vmem:[%s2015 + $0x48] sm:$0xff]
        %v2026 = vld [vmem:[%s2015 + $0x50] sm:$0xff]
        %v2027 = vld [vmem:[%s2015 + $0x58] sm:$0xff]
        %v2028 = vld [vmem:[%s2015 + $0x60] sm:$0xff]
        %v2029 = vld [vmem:[%s2015 + $0x68] sm:$0xff]
        %v2030 = vld [vmem:[%s2015 + $0x70] sm:$0xff]
        %v2031 = vld [vmem:[%s2015 + $0x78] sm:$0xff]
        %v2032 = vld [vmem:[%s2015 + $0x80] sm:$0xff]
        %v2033 = vld [vmem:[%s2015 + $0x88] sm:$0xff]
        %v2034 = vld [vmem:[%s2015 + $0x90] sm:$0xff]
        %v2035 = vld [vmem:[%s2015 + $0x98] sm:$0xff]
        %v2036 = vld [vmem:[%s2015 + $0xa0] sm:$0xff]
        %v2037 = vld [vmem:[%s2015 + $0xa8] sm:$0xff]
        %v2038 = vld [vmem:[%s2015 + $0xb0] sm:$0xff]
        %v2039 = vld [vmem:[%s2015 + $0xb8] sm:$0xff]
        %v2040 = vld [vmem:[%s2015 + $0xc0] sm:$0xff]
        %v2041 = vld [vmem:[%s2015 + $0xc8] sm:$0xff]
        %v2042 = vld [vmem:[%s2015 + $0xd0] sm:$0xff]
        %v2043 = vld [vmem:[%s2015 + $0xd8] sm:$0xff]
        %v2044 = vld [vmem:[%s2015 + $0xe0] sm:$0xff]
        %v2045 = vld [vmem:[%s2015 + $0xe8] sm:$0xff]
        %v2046 = vld [vmem:[%s2015 + $0xf0] sm:$0xff]
        %v2047 = vld [vmem:[%s2015 + $0xf8] sm:$0xff]
        %v2048 = vld [vmem:[%s2015 + $0x100] sm:$0xff]
        %v2049 = vld [vmem:[%s2015 + $0x108] sm:$0xff]
        %v2050 = vld [vmem:[%s2015 + $0x110] sm:$0xff]
        %v2051 = vld [vmem:[%s2015 + $0x118] sm:$0xff]
        %v2052 = vld [vmem:[%s2015 + $0x120] sm:$0xff]
        %v2053 = vld [vmem:[%s2015 + $0x128] sm:$0xff]
        %v2054 = vld [vmem:[%s2015 + $0x130] sm:$0xff]
        %v2055 = vld [vmem:[%s2015 + $0x138] sm:$0xff]
        %v2056 = vld [vmem:[%s2015 + $0x140] sm:$0x1]
        %v2057 = vld [vmem:[%s2015 + $0x148] sm:$0x1]
        %v2058 = vld [vmem:[%s2015 + $0x150] sm:$0x1]
        %v2059 = vld [vmem:[%s2015 + $0x158] sm:$0x1]
        %v2061 = vsel %vm972, %v2056, 0
        %v2064 = vsel %vm972, %v2057, 0
        %v2067 = vsel %vm972, %v2058, 0
        %v2070 = vsel %vm972, %v2059, 0
        %2072 = vmatprep.subr.mxu0 %v2017
        %2073 = vmatpush1.msra.mxu0 %v2016
        %2074 = vmatprep.subr.mxu0 %v2021
        %2075 = vmatpush1.msra.mxu0 %v2020
        %2076 = vmatprep.subr.mxu0 %v2025
        %2077 = vmatpush1.msra.mxu0 %v2024
        %2078 = vmatprep.subr.mxu0 %v2029
        %2079 = vmatpush1.msra.mxu0 %v2028
        %2080 = vmatprep.subr.mxu0 %v2033
        %2081 = vmatpush1.msra.mxu0 %v2032
        %2082 = vmatprep.subr.mxu0 %v2037
        %2083 = vmatpush1.msra.mxu0 %v2036
        %2084 = vmatprep.subr.mxu0 %v2041
        %2085 = vmatpush1.msra.mxu0 %v2040
        %2086 = vmatprep.subr.mxu0 %v2045
        %2087 = vmatpush1.msra.mxu0 %v2044
        %2088 = vmatprep.subr.mxu0 %v2049
        %2089 = vmatpush1.msra.mxu0 %v2048
        %2090 = vmatprep.subr.mxu0 %v2053
        %2091 = vmatpush1.msra.mxu0 %v2052
        %2092 = vmatprep.subr.mxu0 %v2064
        %2093 = vmatpush1.msra.mxu0 %v2061
        %2094 = vmatprep.subr.mxu0 0.0
        %2095 = vmatpush1.msra.mxu0 0.0
        %2096 = vmatprep.subr.mxu0 0.0
        %2097 = vmatpush1.msra.mxu0 0.0
        %2098 = vmatprep.subr.mxu0 0.0
        %2099 = vmatpush1.msra.mxu0 0.0
        %2100 = vmatprep.subr.mxu0 0.0
        %2101 = vmatpush1.msra.mxu0 0.0
        %2102 = vmatprep.subr.mxu0 0.0
        %2103 = vmatpush1.msra.mxu0 0.0
        %2104 = vmatprep.subr.mxu0 0.0
        %2105 = vmatpush1.msra.mxu0 0.0
        %2106 = vmatprep.subr.mxu0 0.0
        %2107 = vmatpush1.msra.mxu0 0.0
        %2108 = vmatprep.subr.mxu0 0.0
        %2109 = vmatpush1.msra.mxu0 0.0
        %2110 = vmatprep.subr.mxu0 0.0
        %2111 = vmatpush1.msra.mxu0 0.0
        %2112 = vmatprep.subr.mxu0 0.0
        %2113 = vmatpush1.msra.mxu0 0.0
        %2114 = vmatprep.subr.mxu0 0.0
        %2115 = vmatpush1.msra.mxu0 0.0
        %2116 = vmatprep.subr.mxu0 0.0
        %2117 = vmatpush1.msra.mxu0 0.0
        %2118 = vmatprep.subr.mxu0 0.0
        %2119 = vmatpush1.msra.mxu0 0.0
        %2120 = vmatprep.subr.mxu0 0.0
        %2121 = vmatpush1.msra.mxu0 0.0
        %2122 = vmatprep.subr.mxu0 0.0
        %2123 = vmatpush1.msra.mxu0 0.0
        %2124 = vmatprep.subr.mxu0 0.0
        %2125 = vmatpush1.msra.mxu0 0.0
        %2126 = vmatprep.subr.mxu0 0.0
        %2127 = vmatpush1.msra.mxu0 0.0
        %2128 = vmatprep.subr.mxu0 0.0
        %2129 = vmatpush1.msra.mxu0 0.0
        %2130 = vmatprep.subr.mxu0 0.0
        %2131 = vmatpush1.msra.mxu0 0.0
        %2132 = vmatprep.subr.mxu0 0.0
        %2133 = vmatpush1.msra.mxu0 0.0
        %2134 = vmatprep.subr.mxu0 0.0
        %2135 = vmatpush1.msra.mxu0 0.0
        %2136 = vmatprep.mubr.f32.mxu0 0.0
        %2137 = vmatmul.mubr.f32.gmra.mrb[0].mxu0 %v967
        %v2138 = vpop.f32.mrb[0].mxu0
        %v2139 = vadd.f32 0.0, %v2138
        %v2140 = vpop.f32.mrb[0].mxu0
        %v2141 = vadd.f32 0.0, %v2140
        %2142 = vmatprep.mubr.f32.mxu0 0.0
        %2143 = vmatmul.mubr.f32.gmra.mrb[0].mxu0 %v970
        %v2144 = vpop.f32.mrb[0].mxu0
        %v2145 = vadd.f32 0.0, %v2144
        %v2146 = vpop.f32.mrb[0].mxu0
        %v2147 = vadd.f32 0.0, %v2146
        %2148 = vdwg.mxu0
        %2149 = vmatprep.subr.mxu0 %v2019
        %2150 = vmatpush1.msra.mxu0 %v2018
        %2151 = vmatprep.subr.mxu0 %v2023
        %2152 = vmatpush1.msra.mxu0 %v2022
        %2153 = vmatprep.subr.mxu0 %v2027
        %2154 = vmatpush1.msra.mxu0 %v2026
        %2155 = vmatprep.subr.mxu0 %v2031
        %2156 = vmatpush1.msra.mxu0 %v2030
        %2157 = vmatprep.subr.mxu0 %v2035
        %2158 = vmatpush1.msra.mxu0 %v2034
        %2159 = vmatprep.subr.mxu0 %v2039
        %2160 = vmatpush1.msra.mxu0 %v2038
        %2161 = vmatprep.subr.mxu0 %v2043
        %2162 = vmatpush1.msra.mxu0 %v2042
        %2163 = vmatprep.subr.mxu0 %v2047
        %2164 = vmatpush1.msra.mxu0 %v2046
        %2165 = vmatprep.subr.mxu0 %v2051
        %2166 = vmatpush1.msra.mxu0 %v2050
        %2167 = vmatprep.subr.mxu0 %v2055
        %2168 = vmatpush1.msra.mxu0 %v2054
        %2169 = vmatprep.subr.mxu0 %v2070
        %2170 = vmatpush1.msra.mxu0 %v2067
        %2171 = vmatprep.subr.mxu0 0.0
        %2172 = vmatpush1.msra.mxu0 0.0
        %2173 = vmatprep.subr.mxu0 0.0
        %2174 = vmatpush1.msra.mxu0 0.0
        %2175 = vmatprep.subr.mxu0 0.0
        %2176 = vmatpush1.msra.mxu0 0.0
        %2177 = vmatprep.subr.mxu0 0.0
        %2178 = vmatpush1.msra.mxu0 0.0
        %2179 = vmatprep.subr.mxu0 0.0
        %2180 = vmatpush1.msra.mxu0 0.0
        %2181 = vmatprep.subr.mxu0 0.0
        %2182 = vmatpush1.msra.mxu0 0.0
        %2183 = vmatprep.subr.mxu0 0.0
        %2184 = vmatpush1.msra.mxu0 0.0
        %2185 = vmatprep.subr.mxu0 0.0
        %2186 = vmatpush1.msra.mxu0 0.0
        %2187 = vmatprep.subr.mxu0 0.0
        %2188 = vmatpush1.msra.mxu0 0.0
        %2189 = vmatprep.subr.mxu0 0.0
        %2190 = vmatpush1.msra.mxu0 0.0
        %2191 = vmatprep.subr.mxu0 0.0
        %2192 = vmatpush1.msra.mxu0 0.0
        %2193 = vmatprep.subr.mxu0 0.0
        %2194 = vmatpush1.msra.mxu0 0.0
        %2195 = vmatprep.subr.mxu0 0.0
        %2196 = vmatpush1.msra.mxu0 0.0
        %2197 = vmatprep.subr.mxu0 0.0
        %2198 = vmatpush1.msra.mxu0 0.0
        %2199 = vmatprep.subr.mxu0 0.0
        %2200 = vmatpush1.msra.mxu0 0.0
        %2201 = vmatprep.subr.mxu0 0.0
        %2202 = vmatpush1.msra.mxu0 0.0
        %2203 = vmatprep.subr.mxu0 0.0
        %2204 = vmatpush1.msra.mxu0 0.0
        %2205 = vmatprep.subr.mxu0 0.0
        %2206 = vmatpush1.msra.mxu0 0.0
        %2207 = vmatprep.subr.mxu0 0.0
        %2208 = vmatpush1.msra.mxu0 0.0
        %2209 = vmatprep.subr.mxu0 0.0
        %2210 = vmatpush1.msra.mxu0 0.0
        %2211 = vmatprep.subr.mxu0 0.0
        %2212 = vmatpush1.msra.mxu0 0.0
        %2213 = vmatprep.mubr.f32.mxu0 0.0
        %2214 = vmatmul.mubr.f32.gmra.mrb[0].mxu0 %v967
        %v2215 = vpop.f32.mrb[0].mxu0
        %v2216 = vadd.f32 0.0, %v2215
        %v2217 = vpop.f32.mrb[0].mxu0
        %v2218 = vadd.f32 0.0, %v2217
        %2219 = vmatprep.mubr.f32.mxu0 0.0
        %2220 = vmatmul.mubr.f32.gmra.mrb[0].mxu0 %v970
        %v2221 = vpop.f32.mrb[0].mxu0
        %v2222 = vadd.f32 0.0, %v2221
        %v2223 = vpop.f32.mrb[0].mxu0
        %v2224 = vadd.f32 0.0, %v2223
        %2225 = vdwg.mxu0
        %v2226 = vmax.f32 %v2007, %v2139
        %v2227 = vmax.f32 %v2008, %v2141
        %v2228 = vmax.f32 %v2009, %v2216
        %v2229 = vmax.f32 %v2010, %v2218
        %v2230 = vmax.f32 %v2011, %v2145
        %v2231 = vmax.f32 %v2012, %v2147
        %v2232 = vmax.f32 %v2013, %v2222
        %v2233 = vmax.f32 %v2014, %v2224
        %s2234 = scalar_lea.vmem %s892, 2112 [#allocation2]
        %v2235 = vld [vmem:[%s2234] sm:$0xff]
        %v2236 = vld [vmem:[%s2234 + $0x8] sm:$0xff]
        %v2237 = vld [vmem:[%s2234 + $0x10] sm:$0xff]
        %v2238 = vld [vmem:[%s2234 + $0x18] sm:$0xff]
        %v2239 = vld [vmem:[%s2234 + $0x20] sm:$0xff]
        %v2240 = vld [vmem:[%s2234 + $0x28] sm:$0xff]
        %v2241 = vld [vmem:[%s2234 + $0x30] sm:$0xff]
        %v2242 = vld [vmem:[%s2234 + $0x38] sm:$0xff]
        %v2243 = vld [vmem:[%s2234 + $0x40] sm:$0xff]
        %v2244 = vld [vmem:[%s2234 + $0x48] sm:$0xff]
        %v2245 = vld [vmem:[%s2234 + $0x50] sm:$0xff]
        %v2246 = vld [vmem:[%s2234 + $0x58] sm:$0xff]
        %v2247 = vld [vmem:[%s2234 + $0x60] sm:$0xff]
        %v2248 = vld [vmem:[%s2234 + $0x68] sm:$0xff]
        %v2249 = vld [vmem:[%s2234 + $0x70] sm:$0xff]
        %v2250 = vld [vmem:[%s2234 + $0x78] sm:$0xff]
        %v2251 = vld [vmem:[%s2234 + $0x80] sm:$0xff]
        %v2252 = vld [vmem:[%s2234 + $0x88] sm:$0xff]
        %v2253 = vld [vmem:[%s2234 + $0x90] sm:$0xff]
        %v2254 = vld [vmem:[%s2234 + $0x98] sm:$0xff]
        %v2255 = vld [vmem:[%s2234 + $0xa0] sm:$0xff]
        %v2256 = vld [vmem:[%s2234 + $0xa8] sm:$0xff]
        %v2257 = vld [vmem:[%s2234 + $0xb0] sm:$0xff]
        %v2258 = vld [vmem:[%s2234 + $0xb8] sm:$0xff]
        %v2259 = vld [vmem:[%s2234 + $0xc0] sm:$0xff]
        %v2260 = vld [vmem:[%s2234 + $0xc8] sm:$0xff]
        %v2261 = vld [vmem:[%s2234 + $0xd0] sm:$0xff]
        %v2262 = vld [vmem:[%s2234 + $0xd8] sm:$0xff]
        %v2263 = vld [vmem:[%s2234 + $0xe0] sm:$0xff]
        %v2264 = vld [vmem:[%s2234 + $0xe8] sm:$0xff]
        %v2265 = vld [vmem:[%s2234 + $0xf0] sm:$0xff]
        %v2266 = vld [vmem:[%s2234 + $0xf8] sm:$0xff]
        %v2267 = vld [vmem:[%s2234 + $0x100] sm:$0xff]
        %v2268 = vld [vmem:[%s2234 + $0x108] sm:$0xff]
        %v2269 = vld [vmem:[%s2234 + $0x110] sm:$0xff]
        %v2270 = vld [vmem:[%s2234 + $0x118] sm:$0xff]
        %v2271 = vld [vmem:[%s2234 + $0x120] sm:$0xff]
        %v2272 = vld [vmem:[%s2234 + $0x128] sm:$0xff]
        %v2273 = vld [vmem:[%s2234 + $0x130] sm:$0xff]
        %v2274 = vld [vmem:[%s2234 + $0x138] sm:$0xff]
        %v2275 = vld [vmem:[%s2234 + $0x140] sm:$0x1]
        %v2276 = vld [vmem:[%s2234 + $0x148] sm:$0x1]
        %v2277 = vld [vmem:[%s2234 + $0x150] sm:$0x1]
        %v2278 = vld [vmem:[%s2234 + $0x158] sm:$0x1]
        %v2280 = vsel %vm972, %v2275, 0
        %v2283 = vsel %vm972, %v2276, 0
        %v2286 = vsel %vm972, %v2277, 0
        %v2289 = vsel %vm972, %v2278, 0
        %2291 = vmatprep.subr.mxu0 %v2236
        %2292 = vmatpush1.msra.mxu0 %v2235
        %2293 = vmatprep.subr.mxu0 %v2240
        %2294 = vmatpush1.msra.mxu0 %v2239
        %2295 = vmatprep.subr.mxu0 %v2244
        %2296 = vmatpush1.msra.mxu0 %v2243
        %2297 = vmatprep.subr.mxu0 %v2248
        %2298 = vmatpush1.msra.mxu0 %v2247
        %2299 = vmatprep.subr.mxu0 %v2252
        %2300 = vmatpush1.msra.mxu0 %v2251
        %2301 = vmatprep.subr.mxu0 %v2256
        %2302 = vmatpush1.msra.mxu0 %v2255
        %2303 = vmatprep.subr.mxu0 %v2260
        %2304 = vmatpush1.msra.mxu0 %v2259
        %2305 = vmatprep.subr.mxu0 %v2264
        %2306 = vmatpush1.msra.mxu0 %v2263
        %2307 = vmatprep.subr.mxu0 %v2268
        %2308 = vmatpush1.msra.mxu0 %v2267
        %2309 = vmatprep.subr.mxu0 %v2272
        %2310 = vmatpush1.msra.mxu0 %v2271
        %2311 = vmatprep.subr.mxu0 %v2283
        %2312 = vmatpush1.msra.mxu0 %v2280
        %2313 = vmatprep.subr.mxu0 0.0
        %2314 = vmatpush1.msra.mxu0 0.0
        %2315 = vmatprep.subr.mxu0 0.0
        %2316 = vmatpush1.msra.mxu0 0.0
        %2317 = vmatprep.subr.mxu0 0.0
        %2318 = vmatpush1.msra.mxu0 0.0
        %2319 = vmatprep.subr.mxu0 0.0
        %2320 = vmatpush1.msra.mxu0 0.0
        %2321 = vmatprep.subr.mxu0 0.0
        %2322 = vmatpush1.msra.mxu0 0.0
        %2323 = vmatprep.subr.mxu0 0.0
        %2324 = vmatpush1.msra.mxu0 0.0
        %2325 = vmatprep.subr.mxu0 0.0
        %2326 = vmatpush1.msra.mxu0 0.0
        %2327 = vmatprep.subr.mxu0 0.0
        %2328 = vmatpush1.msra.mxu0 0.0
        %2329 = vmatprep.subr.mxu0 0.0
        %2330 = vmatpush1.msra.mxu0 0.0
        %2331 = vmatprep.subr.mxu0 0.0
        %2332 = vmatpush1.msra.mxu0 0.0
        %2333 = vmatprep.subr.mxu0 0.0
        %2334 = vmatpush1.msra.mxu0 0.0
        %2335 = vmatprep.subr.mxu0 0.0
        %2336 = vmatpush1.msra.mxu0 0.0
        %2337 = vmatprep.subr.mxu0 0.0
        %2338 = vmatpush1.msra.mxu0 0.0
        %2339 = vmatprep.subr.mxu0 0.0
        %2340 = vmatpush1.msra.mxu0 0.0
        %2341 = vmatprep.subr.mxu0 0.0
        %2342 = vmatpush1.msra.mxu0 0.0
        %2343 = vmatprep.subr.mxu0 0.0
        %2344 = vmatpush1.msra.mxu0 0.0
        %2345 = vmatprep.subr.mxu0 0.0
        %2346 = vmatpush1.msra.mxu0 0.0
        %2347 = vmatprep.subr.mxu0 0.0
        %2348 = vmatpush1.msra.mxu0 0.0
        %2349 = vmatprep.subr.mxu0 0.0
        %2350 = vmatpush1.msra.mxu0 0.0
        %2351 = vmatprep.subr.mxu0 0.0
        %2352 = vmatpush1.msra.mxu0 0.0
        %2353 = vmatprep.subr.mxu0 0.0
        %2354 = vmatpush1.msra.mxu0 0.0
        %2355 = vmatprep.mubr.f32.mxu0 0.0
        %2356 = vmatmul.mubr.f32.gmra.mrb[0].mxu0 %v967
        %v2357 = vpop.f32.mrb[0].mxu0
        %v2358 = vadd.f32 0.0, %v2357
        %v2359 = vpop.f32.mrb[0].mxu0
        %v2360 = vadd.f32 0.0, %v2359
        %2361 = vmatprep.mubr.f32.mxu0 0.0
        %2362 = vmatmul.mubr.f32.gmra.mrb[0].mxu0 %v970
        %v2363 = vpop.f32.mrb[0].mxu0
        %v2364 = vadd.f32 0.0, %v2363
        %v2365 = vpop.f32.mrb[0].mxu0
        %v2366 = vadd.f32 0.0, %v2365
        %2367 = vdwg.mxu0
        %2368 = vmatprep.subr.mxu0 %v2238
        %2369 = vmatpush1.msra.mxu0 %v2237
        %2370 = vmatprep.subr.mxu0 %v2242
        %2371 = vmatpush1.msra.mxu0 %v2241
        %2372 = vmatprep.subr.mxu0 %v2246
        %2373 = vmatpush1.msra.mxu0 %v2245
        %2374 = vmatprep.subr.mxu0 %v2250
        %2375 = vmatpush1.msra.mxu0 %v2249
        %2376 = vmatprep.subr.mxu0 %v2254
        %2377 = vmatpush1.msra.mxu0 %v2253
        %2378 = vmatprep.subr.mxu0 %v2258
        %2379 = vmatpush1.msra.mxu0 %v2257
        %2380 = vmatprep.subr.mxu0 %v2262
        %2381 = vmatpush1.msra.mxu0 %v2261
        %2382 = vmatprep.subr.mxu0 %v2266
        %2383 = vmatpush1.msra.mxu0 %v2265
        %2384 = vmatprep.subr.mxu0 %v2270
        %2385 = vmatpush1.msra.mxu0 %v2269
        %2386 = vmatprep.subr.mxu0 %v2274
        %2387 = vmatpush1.msra.mxu0 %v2273
        %2388 = vmatprep.subr.mxu0 %v2289
        %2389 = vmatpush1.msra.mxu0 %v2286
        %2390 = vmatprep.subr.mxu0 0.0
        %2391 = vmatpush1.msra.mxu0 0.0
        %2392 = vmatprep.subr.mxu0 0.0
        %2393 = vmatpush1.msra.mxu0 0.0
        %2394 = vmatprep.subr.mxu0 0.0
        %2395 = vmatpush1.msra.mxu0 0.0
        %2396 = vmatprep.subr.mxu0 0.0
        %2397 = vmatpush1.msra.mxu0 0.0
        %2398 = vmatprep.subr.mxu0 0.0
        %2399 = vmatpush1.msra.mxu0 0.0
        %2400 = vmatprep.subr.mxu0 0.0
        %2401 = vmatpush1.msra.mxu0 0.0
        %2402 = vmatprep.subr.mxu0 0.0
        %2403 = vmatpush1.msra.mxu0 0.0
        %2404 = vmatprep.subr.mxu0 0.0
        %2405 = vmatpush1.msra.mxu0 0.0
        %2406 = vmatprep.subr.mxu0 0.0
        %2407 = vmatpush1.msra.mxu0 0.0
        %2408 = vmatprep.subr.mxu0 0.0
        %2409 = vmatpush1.msra.mxu0 0.0
        %2410 = vmatprep.subr.mxu0 0.0
        %2411 = vmatpush1.msra.mxu0 0.0
        %2412 = vmatprep.subr.mxu0 0.0
        %2413 = vmatpush1.msra.mxu0 0.0
        %2414 = vmatprep.subr.mxu0 0.0
        %2415 = vmatpush1.msra.mxu0 0.0
        %2416 = vmatprep.subr.mxu0 0.0
        %2417 = vmatpush1.msra.mxu0 0.0
        %2418 = vmatprep.subr.mxu0 0.0
        %2419 = vmatpush1.msra.mxu0 0.0
        %2420 = vmatprep.subr.mxu0 0.0
        %2421 = vmatpush1.msra.mxu0 0.0
        %2422 = vmatprep.subr.mxu0 0.0
        %2423 = vmatpush1.msra.mxu0 0.0
        %2424 = vmatprep.subr.mxu0 0.0
        %2425 = vmatpush1.msra.mxu0 0.0
        %2426 = vmatprep.subr.mxu0 0.0
        %2427 = vmatpush1.msra.mxu0 0.0
        %2428 = vmatprep.subr.mxu0 0.0
        %2429 = vmatpush1.msra.mxu0 0.0
        %2430 = vmatprep.subr.mxu0 0.0
        %2431 = vmatpush1.msra.mxu0 0.0
        %2432 = vmatprep.mubr.f32.mxu0 0.0
        %2433 = vmatmul.mubr.f32.gmra.mrb[0].mxu0 %v967
        %v2434 = vpop.f32.mrb[0].mxu0
        %v2435 = vadd.f32 0.0, %v2434
        %v2436 = vpop.f32.mrb[0].mxu0
        %v2437 = vadd.f32 0.0, %v2436
        %2438 = vmatprep.mubr.f32.mxu0 0.0
        %2439 = vmatmul.mubr.f32.gmra.mrb[0].mxu0 %v970
        %v2440 = vpop.f32.mrb[0].mxu0
        %v2441 = vadd.f32 0.0, %v2440
        %v2442 = vpop.f32.mrb[0].mxu0
        %v2443 = vadd.f32 0.0, %v2442
        %2444 = vdwg.mxu0
        %v2445 = vmax.f32 %v2226, %v2358
        %v2446 = vmax.f32 %v2227, %v2360
        %v2447 = vmax.f32 %v2228, %v2435
        %v2448 = vmax.f32 %v2229, %v2437
        %v2449 = vmax.f32 %v2230, %v2364
        %v2450 = vmax.f32 %v2231, %v2366
        %v2451 = vmax.f32 %v2232, %v2441
        %v2452 = vmax.f32 %v2233, %v2443
        %s2453 = scalar_lea.vmem %s892, 2464 [#allocation2]
        %v2454 = vld [vmem:[%s2453] sm:$0xff]
        %v2455 = vld [vmem:[%s2453 + $0x8] sm:$0xff]
        %v2456 = vld [vmem:[%s2453 + $0x10] sm:$0xff]
        %v2457 = vld [vmem:[%s2453 + $0x18] sm:$0xff]
        %v2458 = vld [vmem:[%s2453 + $0x20] sm:$0xff]
        %v2459 = vld [vmem:[%s2453 + $0x28] sm:$0xff]
        %v2460 = vld [vmem:[%s2453 + $0x30] sm:$0xff]
        %v2461 = vld [vmem:[%s2453 + $0x38] sm:$0xff]
        %v2462 = vld [vmem:[%s2453 + $0x40] sm:$0xff]
        %v2463 = vld [vmem:[%s2453 + $0x48] sm:$0xff]
        %v2464 = vld [vmem:[%s2453 + $0x50] sm:$0xff]
        %v2465 = vld [vmem:[%s2453 + $0x58] sm:$0xff]
        %v2466 = vld [vmem:[%s2453 + $0x60] sm:$0xff]
        %v2467 = vld [vmem:[%s2453 + $0x68] sm:$0xff]
        %v2468 = vld [vmem:[%s2453 + $0x70] sm:$0xff]
        %v2469 = vld [vmem:[%s2453 + $0x78] sm:$0xff]
        %v2470 = vld [vmem:[%s2453 + $0x80] sm:$0xff]
        %v2471 = vld [vmem:[%s2453 + $0x88] sm:$0xff]
        %v2472 = vld [vmem:[%s2453 + $0x90] sm:$0xff]
        %v2473 = vld [vmem:[%s2453 + $0x98] sm:$0xff]
        %v2474 = vld [vmem:[%s2453 + $0xa0] sm:$0xff]
        %v2475 = vld [vmem:[%s2453 + $0xa8] sm:$0xff]
        %v2476 = vld [vmem:[%s2453 + $0xb0] sm:$0xff]
        %v2477 = vld [vmem:[%s2453 + $0xb8] sm:$0xff]
        %v2478 = vld [vmem:[%s2453 + $0xc0] sm:$0xff]
        %v2479 = vld [vmem:[%s2453 + $0xc8] sm:$0xff]
        %v2480 = vld [vmem:[%s2453 + $0xd0] sm:$0xff]
        %v2481 = vld [vmem:[%s2453 + $0xd8] sm:$0xff]
        %v2482 = vld [vmem:[%s2453 + $0xe0] sm:$0xff]
        %v2483 = vld [vmem:[%s2453 + $0xe8] sm:$0xff]
        %v2484 = vld [vmem:[%s2453 + $0xf0] sm:$0xff]
        %v2485 = vld [vmem:[%s2453 + $0xf8] sm:$0xff]
        %v2486 = vld [vmem:[%s2453 + $0x100] sm:$0xff]
        %v2487 = vld [vmem:[%s2453 + $0x108] sm:$0xff]
        %v2488 = vld [vmem:[%s2453 + $0x110] sm:$0xff]
        %v2489 = vld [vmem:[%s2453 + $0x118] sm:$0xff]
        %v2490 = vld [vmem:[%s2453 + $0x120] sm:$0xff]
        %v2491 = vld [vmem:[%s2453 + $0x128] sm:$0xff]
        %v2492 = vld [vmem:[%s2453 + $0x130] sm:$0xff]
        %v2493 = vld [vmem:[%s2453 + $0x138] sm:$0xff]
        %v2494 = vld [vmem:[%s2453 + $0x140] sm:$0x1]
        %v2495 = vld [vmem:[%s2453 + $0x148] sm:$0x1]
        %v2496 = vld [vmem:[%s2453 + $0x150] sm:$0x1]
        %v2497 = vld [vmem:[%s2453 + $0x158] sm:$0x1]
        %v2499 = vsel %vm972, %v2494, 0
        %v2502 = vsel %vm972, %v2495, 0
        %v2505 = vsel %vm972, %v2496, 0
        %v2508 = vsel %vm972, %v2497, 0
        %2510 = vmatprep.subr.mxu0 %v2455
        %2511 = vmatpush1.msra.mxu0 %v2454
        %2512 = vmatprep.subr.mxu0 %v2459
        %2513 = vmatpush1.msra.mxu0 %v2458
        %2514 = vmatprep.subr.mxu0 %v2463
        %2515 = vmatpush1.msra.mxu0 %v2462
        %2516 = vmatprep.subr.mxu0 %v2467
        %2517 = vmatpush1.msra.mxu0 %v2466
        %2518 = vmatprep.subr.mxu0 %v2471
        %2519 = vmatpush1.msra.mxu0 %v2470
        %2520 = vmatprep.subr.mxu0 %v2475
        %2521 = vmatpush1.msra.mxu0 %v2474
        %2522 = vmatprep.subr.mxu0 %v2479
        %2523 = vmatpush1.msra.mxu0 %v2478
        %2524 = vmatprep.subr.mxu0 %v2483
        %2525 = vmatpush1.msra.mxu0 %v2482
        %2526 = vmatprep.subr.mxu0 %v2487
        %2527 = vmatpush1.msra.mxu0 %v2486
        %2528 = vmatprep.subr.mxu0 %v2491
        %2529 = vmatpush1.msra.mxu0 %v2490
        %2530 = vmatprep.subr.mxu0 %v2502
        %2531 = vmatpush1.msra.mxu0 %v2499
        %2532 = vmatprep.subr.mxu0 0.0
        %2533 = vmatpush1.msra.mxu0 0.0
        %2534 = vmatprep.subr.mxu0 0.0
        %2535 = vmatpush1.msra.mxu0 0.0
        %2536 = vmatprep.subr.mxu0 0.0
        %2537 = vmatpush1.msra.mxu0 0.0
        %2538 = vmatprep.subr.mxu0 0.0
        %2539 = vmatpush1.msra.mxu0 0.0
        %2540 = vmatprep.subr.mxu0 0.0
        %2541 = vmatpush1.msra.mxu0 0.0
        %2542 = vmatprep.subr.mxu0 0.0
        %2543 = vmatpush1.msra.mxu0 0.0
        %2544 = vmatprep.subr.mxu0 0.0
        %2545 = vmatpush1.msra.mxu0 0.0
        %2546 = vmatprep.subr.mxu0 0.0
        %2547 = vmatpush1.msra.mxu0 0.0
        %2548 = vmatprep.subr.mxu0 0.0
        %2549 = vmatpush1.msra.mxu0 0.0
        %2550 = vmatprep.subr.mxu0 0.0
        %2551 = vmatpush1.msra.mxu0 0.0
        %2552 = vmatprep.subr.mxu0 0.0
        %2553 = vmatpush1.msra.mxu0 0.0
        %2554 = vmatprep.subr.mxu0 0.0
        %2555 = vmatpush1.msra.mxu0 0.0
        %2556 = vmatprep.subr.mxu0 0.0
        %2557 = vmatpush1.msra.mxu0 0.0
        %2558 = vmatprep.subr.mxu0 0.0
        %2559 = vmatpush1.msra.mxu0 0.0
        %2560 = vmatprep.subr.mxu0 0.0
        %2561 = vmatpush1.msra.mxu0 0.0
        %2562 = vmatprep.subr.mxu0 0.0
        %2563 = vmatpush1.msra.mxu0 0.0
        %2564 = vmatprep.subr.mxu0 0.0
        %2565 = vmatpush1.msra.mxu0 0.0
        %2566 = vmatprep.subr.mxu0 0.0
        %2567 = vmatpush1.msra.mxu0 0.0
        %2568 = vmatprep.subr.mxu0 0.0
        %2569 = vmatpush1.msra.mxu0 0.0
        %2570 = vmatprep.subr.mxu0 0.0
        %2571 = vmatpush1.msra.mxu0 0.0
        %2572 = vmatprep.subr.mxu0 0.0
        %2573 = vmatpush1.msra.mxu0 0.0
        %2574 = vmatprep.mubr.f32.mxu0 0.0
        %2575 = vmatmul.mubr.f32.gmra.mrb[0].mxu0 %v967
        %v2576 = vpop.f32.mrb[0].mxu0
        %v2577 = vadd.f32 0.0, %v2576
        %v2578 = vpop.f32.mrb[0].mxu0
        %v2579 = vadd.f32 0.0, %v2578
        %2580 = vmatprep.mubr.f32.mxu0 0.0
        %2581 = vmatmul.mubr.f32.gmra.mrb[0].mxu0 %v970
        %v2582 = vpop.f32.mrb[0].mxu0
        %v2583 = vadd.f32 0.0, %v2582
        %v2584 = vpop.f32.mrb[0].mxu0
        %v2585 = vadd.f32 0.0, %v2584
        %2586 = vdwg.mxu0
        %2587 = vmatprep.subr.mxu0 %v2457
        %2588 = vmatpush1.msra.mxu0 %v2456
        %2589 = vmatprep.subr.mxu0 %v2461
        %2590 = vmatpush1.msra.mxu0 %v2460
        %2591 = vmatprep.subr.mxu0 %v2465
        %2592 = vmatpush1.msra.mxu0 %v2464
        %2593 = vmatprep.subr.mxu0 %v2469
        %2594 = vmatpush1.msra.mxu0 %v2468
        %2595 = vmatprep.subr.mxu0 %v2473
        %2596 = vmatpush1.msra.mxu0 %v2472
        %2597 = vmatprep.subr.mxu0 %v2477
        %2598 = vmatpush1.msra.mxu0 %v2476
        %2599 = vmatprep.subr.mxu0 %v2481
        %2600 = vmatpush1.msra.mxu0 %v2480
        %2601 = vmatprep.subr.mxu0 %v2485
        %2602 = vmatpush1.msra.mxu0 %v2484
        %2603 = vmatprep.subr.mxu0 %v2489
        %2604 = vmatpush1.msra.mxu0 %v2488
        %2605 = vmatprep.subr.mxu0 %v2493
        %2606 = vmatpush1.msra.mxu0 %v2492
        %2607 = vmatprep.subr.mxu0 %v2508
        %2608 = vmatpush1.msra.mxu0 %v2505
        %2609 = vmatprep.subr.mxu0 0.0
        %2610 = vmatpush1.msra.mxu0 0.0
        %2611 = vmatprep.subr.mxu0 0.0
        %2612 = vmatpush1.msra.mxu0 0.0
        %2613 = vmatprep.subr.mxu0 0.0
        %2614 = vmatpush1.msra.mxu0 0.0
        %2615 = vmatprep.subr.mxu0 0.0
        %2616 = vmatpush1.msra.mxu0 0.0
        %2617 = vmatprep.subr.mxu0 0.0
        %2618 = vmatpush1.msra.mxu0 0.0
        %2619 = vmatprep.subr.mxu0 0.0
        %2620 = vmatpush1.msra.mxu0 0.0
        %2621 = vmatprep.subr.mxu0 0.0
        %2622 = vmatpush1.msra.mxu0 0.0
        %2623 = vmatprep.subr.mxu0 0.0
        %2624 = vmatpush1.msra.mxu0 0.0
        %2625 = vmatprep.subr.mxu0 0.0
        %2626 = vmatpush1.msra.mxu0 0.0
        %2627 = vmatprep.subr.mxu0 0.0
        %2628 = vmatpush1.msra.mxu0 0.0
        %2629 = vmatprep.subr.mxu0 0.0
        %2630 = vmatpush1.msra.mxu0 0.0
        %2631 = vmatprep.subr.mxu0 0.0
        %2632 = vmatpush1.msra.mxu0 0.0
        %2633 = vmatprep.subr.mxu0 0.0
        %2634 = vmatpush1.msra.mxu0 0.0
        %2635 = vmatprep.subr.mxu0 0.0
        %2636 = vmatpush1.msra.mxu0 0.0
        %2637 = vmatprep.subr.mxu0 0.0
        %2638 = vmatpush1.msra.mxu0 0.0
        %2639 = vmatprep.subr.mxu0 0.0
        %2640 = vmatpush1.msra.mxu0 0.0
        %2641 = vmatprep.subr.mxu0 0.0
        %2642 = vmatpush1.msra.mxu0 0.0
        %2643 = vmatprep.subr.mxu0 0.0
        %2644 = vmatpush1.msra.mxu0 0.0
        %2645 = vmatprep.subr.mxu0 0.0
        %2646 = vmatpush1.msra.mxu0 0.0
        %2647 = vmatprep.subr.mxu0 0.0
        %2648 = vmatpush1.msra.mxu0 0.0
        %2649 = vmatprep.subr.mxu0 0.0
        %2650 = vmatpush1.msra.mxu0 0.0
        %2651 = vmatprep.mubr.f32.mxu0 0.0
        %2652 = vmatmul.mubr.f32.gmra.mrb[0].mxu0 %v967
        %v2653 = vpop.f32.mrb[0].mxu0
        %v2654 = vadd.f32 0.0, %v2653
        %v2655 = vpop.f32.mrb[0].mxu0
        %v2656 = vadd.f32 0.0, %v2655
        %2657 = vmatprep.mubr.f32.mxu0 0.0
        %2658 = vmatmul.mubr.f32.gmra.mrb[0].mxu0 %v970
        %v2659 = vpop.f32.mrb[0].mxu0
        %v2660 = vadd.f32 0.0, %v2659
        %v2661 = vpop.f32.mrb[0].mxu0
        %v2662 = vadd.f32 0.0, %v2661
        %2663 = vdwg.mxu0
        %v2664 = vmax.f32 %v2445, %v2577
        %v2665 = vmax.f32 %v2446, %v2579
        %v2666 = vmax.f32 %v2447, %v2654
        %v2667 = vmax.f32 %v2448, %v2656
        %v2668 = vmax.f32 %v2449, %v2583
        %v2669 = vmax.f32 %v2450, %v2585
        %v2670 = vmax.f32 %v2451, %v2660
        %v2671 = vmax.f32 %v2452, %v2662
        %v2672 = vld [vmem:[%s2] sm:$0xff]
        %v2673 = vld [vmem:[%s2 + $0x8] sm:$0xff]
        %2675 = vset.pattern.permute.xlu0 0
        %2676 = vperm.xlu0 %2675, %v2672
        %v2677 = vpop.permute.xlu0 %2676
        %2680 = vset.pattern.permute.xlu0 0
        %2681 = vperm.xlu0 %2680, %v2673
        %v2682 = vpop.permute.xlu0 %2681
        %v2684 = vadd.f32 %v2664, %v2677
        %v2685 = vadd.f32 %v2665, %v2677
        %v2686 = vadd.f32 %v2666, %v2677
        %v2687 = vadd.f32 %v2667, %v2677
        %v2688 = vadd.f32 %v2668, %v2682
        %v2689 = vadd.f32 %v2669, %v2682
        %v2690 = vadd.f32 %v2670, %v2682
        %v2691 = vadd.f32 %v2671, %v2682
        %v2692 = vmax.f32 %v2684, %v2688
        %v2693 = vrot.slane %v2692, 4
        %v2694 = vmax.f32 %v2692, %v2693
        %v2695 = vrot.slane %v2694, 2
        %v2696 = vmax.f32 %v2694, %v2695
        %v2697 = vrot.slane %v2696, 1
        %v2698 = vmax.f32 %v2696, %v2697
        %v2699 = vmax.f32 %v2685, %v2689
        %v2700 = vrot.slane %v2699, 4
        %v2701 = vmax.f32 %v2699, %v2700
        %v2702 = vrot.slane %v2701, 2
        %v2703 = vmax.f32 %v2701, %v2702
        %v2704 = vrot.slane %v2703, 1
        %v2705 = vmax.f32 %v2703, %v2704
        %v2706 = vmax.f32 %v2686, %v2690
        %v2707 = vrot.slane %v2706, 4
        %v2708 = vmax.f32 %v2706, %v2707
        %v2709 = vrot.slane %v2708, 2
        %v2710 = vmax.f32 %v2708, %v2709
        %v2711 = vrot.slane %v2710, 1
        %v2712 = vmax.f32 %v2710, %v2711
        %v2713 = vmax.f32 %v2687, %v2691
        %v2714 = vrot.slane %v2713, 4
        %v2715 = vmax.f32 %v2713, %v2714
        %v2716 = vrot.slane %v2715, 2
        %v2717 = vmax.f32 %v2715, %v2716
        %v2718 = vrot.slane %v2717, 1
        %v2719 = vmax.f32 %v2717, %v2718
        %v2720 = vsub.f32 %v2684, %v2698
        %v2721 = vsub.f32 %v2685, %v2705
        %v2722 = vsub.f32 %v2686, %v2712
        %v2723 = vsub.f32 %v2687, %v2719
        %v2724 = vsub.f32 %v2688, %v2698
        %v2725 = vsub.f32 %v2689, %v2705
        %v2726 = vsub.f32 %v2690, %v2712
        %v2727 = vsub.f32 %v2691, %v2719
        %v2728 = vmul.f32 %v2720, 1.442695
        %v2729 = vpow.pop %v2728
        %v2730 = vmul.f32 %v2721, 1.442695
        %v2731 = vpow.pop %v2730
        %v2732 = vmul.f32 %v2722, 1.442695
        %v2733 = vpow.pop %v2732
        %v2734 = vmul.f32 %v2723, 1.442695
        %v2735 = vpow.pop %v2734
        %v2736 = vmul.f32 %v2724, 1.442695
        %v2737 = vpow.pop %v2736
        %v2738 = vmul.f32 %v2725, 1.442695
        %v2739 = vpow.pop %v2738
        %v2740 = vmul.f32 %v2726, 1.442695
        %v2741 = vpow.pop %v2740
        %v2742 = vmul.f32 %v2727, 1.442695
        %v2743 = vpow.pop %v2742
        %v2744 = vadd.f32 %v2729, %v2737
        %v2745 = vrot.slane %v2744, 4
        %v2746 = vadd.f32 %v2744, %v2745
        %v2747 = vrot.slane %v2746, 2
        %v2748 = vadd.f32 %v2746, %v2747
        %v2749 = vrot.slane %v2748, 1
        %v2750 = vadd.f32 %v2748, %v2749
        %v2751 = vadd.f32 %v2731, %v2739
        %v2752 = vrot.slane %v2751, 4
        %v2753 = vadd.f32 %v2751, %v2752
        %v2754 = vrot.slane %v2753, 2
        %v2755 = vadd.f32 %v2753, %v2754
        %v2756 = vrot.slane %v2755, 1
        %v2757 = vadd.f32 %v2755, %v2756
        %v2758 = vadd.f32 %v2733, %v2741
        %v2759 = vrot.slane %v2758, 4
        %v2760 = vadd.f32 %v2758, %v2759
        %v2761 = vrot.slane %v2760, 2
        %v2762 = vadd.f32 %v2760, %v2761
        %v2763 = vrot.slane %v2762, 1
        %v2764 = vadd.f32 %v2762, %v2763
        %v2765 = vadd.f32 %v2735, %v2743
        %v2766 = vrot.slane %v2765, 4
        %v2767 = vadd.f32 %v2765, %v2766
        %v2768 = vrot.slane %v2767, 2
        %v2769 = vadd.f32 %v2767, %v2768
        %v2770 = vrot.slane %v2769, 1
        %v2771 = vadd.f32 %v2769, %v2770
        %v2772 = vrcp.pop %v2750
        %v2773 = vrcp.pop %v2757
        %v2774 = vrcp.pop %v2764
        %v2775 = vrcp.pop %v2771
        %v2776 = vmul.f32 %v2729, %v2772
        %v2777 = vmul.f32 %v2731, %v2773
        %v2778 = vmul.f32 %v2733, %v2774
        %v2779 = vmul.f32 %v2735, %v2775
        %v2780 = vmul.f32 %v2737, %v2772
        %v2781 = vmul.f32 %v2739, %v2773
        %v2782 = vmul.f32 %v2741, %v2774
        %v2783 = vmul.f32 %v2743, %v2775
        %v2784 = vld [vmem:[%s3] sm:$0xff]
        %v2785 = vld [vmem:[%s3 + $0x8] sm:$0xff]
        %2787 = vset.pattern.permute.xlu0 0
        %2788 = vperm.xlu0 %2787, %v2784
        %v2789 = vpop.permute.xlu0 %2788
        %2792 = vset.pattern.permute.xlu0 0
        %2793 = vperm.xlu0 %2792, %v2785
        %v2794 = vpop.permute.xlu0 %2793
        %v2796 = vsub.f32 %v2776, %v2789
        %v2797 = vsub.f32 %v2777, %v2789
        %v2798 = vsub.f32 %v2778, %v2789
        %v2799 = vsub.f32 %v2779, %v2789
        %v2800 = vsub.f32 %v2780, %v2794
        %v2801 = vsub.f32 %v2781, %v2794
        %v2802 = vsub.f32 %v2782, %v2794
        %v2803 = vsub.f32 %v2783, %v2794
        %v2804 = vsub.f32 0.0, %v2796
        %v2805 = vsub.f32 0.0, %v2797
        %v2806 = vsub.f32 0.0, %v2798
        %v2807 = vsub.f32 0.0, %v2799
        %v2808 = vsub.f32 0.0, %v2800
        %v2809 = vsub.f32 0.0, %v2801
        %v2810 = vsub.f32 0.0, %v2802
        %v2811 = vsub.f32 0.0, %v2803
        %v2812 = vmul.f32 %v2804, 1.442695
        %v2813 = vpow.pop %v2812
        %v2814 = vmul.f32 %v2805, 1.442695
        %v2815 = vpow.pop %v2814
        %v2816 = vmul.f32 %v2806, 1.442695
        %v2817 = vpow.pop %v2816
        %v2818 = vmul.f32 %v2807, 1.442695
        %v2819 = vpow.pop %v2818
        %v2820 = vmul.f32 %v2808, 1.442695
        %v2821 = vpow.pop %v2820
        %v2822 = vmul.f32 %v2809, 1.442695
        %v2823 = vpow.pop %v2822
        %v2824 = vmul.f32 %v2810, 1.442695
        %v2825 = vpow.pop %v2824
        %v2826 = vmul.f32 %v2811, 1.442695
        %v2827 = vpow.pop %v2826
        %v2828 = vadd.f32 %v2813, 1.0
        %v2829 = vadd.f32 %v2815, 1.0
        %v2830 = vadd.f32 %v2817, 1.0
        %v2831 = vadd.f32 %v2819, 1.0
        %v2832 = vadd.f32 %v2821, 1.0
        %v2833 = vadd.f32 %v2823, 1.0
        %v2834 = vadd.f32 %v2825, 1.0
        %v2835 = vadd.f32 %v2827, 1.0
        %v2836 = vrcp.pop %v2828
        %v2837 = vrcp.pop %v2829
        %v2838 = vrcp.pop %v2830
        %v2839 = vrcp.pop %v2831
        %v2840 = vrcp.pop %v2832
        %v2841 = vrcp.pop %v2833
        %v2842 = vrcp.pop %v2834
        %v2843 = vrcp.pop %v2835
        %v2844 = vmul.f32 %v2796, %v2836
        %v2845 = vmul.f32 %v2797, %v2837
        %v2846 = vmul.f32 %v2798, %v2838
        %v2847 = vmul.f32 %v2799, %v2839
        %v2848 = vmul.f32 %v2800, %v2840
        %v2849 = vmul.f32 %v2801, %v2841
        %v2850 = vmul.f32 %v2802, %v2842
        %v2851 = vmul.f32 %v2803, %v2843
        %v2852 = vmax.f32 %v2844, %v2848
        %v2853 = vrot.slane %v2852, 4
        %v2854 = vmax.f32 %v2852, %v2853
        %v2855 = vrot.slane %v2854, 2
        %v2856 = vmax.f32 %v2854, %v2855
        %v2857 = vrot.slane %v2856, 1
        %v2858 = vmax.f32 %v2856, %v2857
        %v2859 = vmax.f32 %v2845, %v2849
        %v2860 = vrot.slane %v2859, 4
        %v2861 = vmax.f32 %v2859, %v2860
        %v2862 = vrot.slane %v2861, 2
        %v2863 = vmax.f32 %v2861, %v2862
        %v2864 = vrot.slane %v2863, 1
        %v2865 = vmax.f32 %v2863, %v2864
        %v2866 = vmax.f32 %v2846, %v2850
        %v2867 = vrot.slane %v2866, 4
        %v2868 = vmax.f32 %v2866, %v2867
        %v2869 = vrot.slane %v2868, 2
        %v2870 = vmax.f32 %v2868, %v2869
        %v2871 = vrot.slane %v2870, 1
        %v2872 = vmax.f32 %v2870, %v2871
        %v2873 = vmax.f32 %v2847, %v2851
        %v2874 = vrot.slane %v2873, 4
        %v2875 = vmax.f32 %v2873, %v2874
        %v2876 = vrot.slane %v2875, 2
        %v2877 = vmax.f32 %v2875, %v2876
        %v2878 = vrot.slane %v2877, 1
        %v2879 = vmax.f32 %v2877, %v2878
        %v2884 = vcombine.low %v2858, %v2865
        %v2885 = vcombine.low %v2872, %v2879
        %v2887 = vunpack.c.l.s4 1966171168
        %v2888 = vunpack.c.0.s8 %v2887
        %v2889 = vlaneseq
        %v2890 = vshrl.u32 %v2889, 7
        %v2891 = vsub.s32 %v2888, %v2890
        %v2892 = vrot.slane %v2884, %v2891
        %v2894 = vunpack.c.l.s4 1966171168
        %v2895 = vunpack.c.0.s8 %v2894
        %v2896 = vlaneseq
        %v2897 = vshrl.u32 %v2896, 7
        %v2898 = vsub.s32 %v2895, %v2897
        %v2899 = vrot.slane %v2885, %v2898
        %v2900 = vcombine.low %v2892, %v2899
        %v2902 = vunpack.c.l.s4 1966171168
        %v2903 = vunpack.c.0.s8 %v2902
        %v2904 = vlaneseq
        %v2905 = vshrl.u32 %v2904, 7
        %v2906 = vsub.s32 %v2903, %v2905
        %v2907 = vrot.slane %v2900, %v2906
        %v2909 = vlaneseq
        %vm2910 = vcmp.ge.s32.totalorder %v2909, 0
        %vm2911 = vcmp.lt.s32.totalorder %v2909, 512
        %vm2912 = vmand %vm2910, %vm2911
        %2913 = vst.msk [vmem:[%s918] sm:$0xf] %vm2912, %v2907
        %p2914 = scmp.lt.s32.totalorder %s15, 1
        %s2915 = scalar_select %p2914, %s15, 1
        %s2916 = smul.addr %s2915, 4
        %s2917 = scalar_lea.vmem %s4, %s2916
        // Predicated region
        $region60: #{model_forward.1} parent=54 // pred_check
          %p2918 = pneg %p122
        $region61: #{model_forward.1} parent=54 // pred_check_branch
          %2920 = sbr.rel (%p2918) target = $region63
        $region62: #{model_forward.1} parent=54 // pred_region
          _
        $region63: #{model_forward.1} parent=54 // pred_fallthru
          _
      $region55: #{model_forward.1} parent=5 // pred_fallthru
        _
      %p2921 = scmp.le.s32.totalorder 2, %s10
      // Predicated region
      $region64: #{model_forward.1} parent=5 // pred_check
        %p2922 = pneg %p2921
      $region65: #{model_forward.1} parent=5 // pred_check_branch
        %2924 = sbr.rel (%p2922) target = $region67
      $region66: #{model_forward.1} parent=5 // pred_region
        %s2925 = ssub.s32 %s10, 2
        // Predicated region
        $region68: #{model_forward.1} parent=66 // pred_check
          %p2926 = pneg %p128
        $region69: #{model_forward.1} parent=66 // pred_check_branch
          %2928 = sbr.rel (%p2926) target = $region71
        $region70: #{model_forward.1} parent=66 // pred_region
          %p2929 = scmp.lt.s32.totalorder %s16, 1
          %s2930 = scalar_select %p2929, %s16, 1
          %s2931 = smul.addr %s2930, 4
          %s2932 = scalar_lea.vmem %s4, %s2931
        $region71: #{model_forward.1} parent=66 // pred_fallthru
          _
      $region67: #{model_forward.1} parent=5 // pred_fallthru
        _
    $region6: #{model_forward.1} parent=1 // loop_footer
      %s14 = sadd.s32 1, %s10
    $region7: #{model_forward.1} parent=1 // loop_footer_branch
      %9 = sbr.rel target = $region3
    $region8: #{model_forward.1} parent=1 // loop_exit
      _

</llo_original>
